<compile_context>
chip_gen: v7x
topology: tpu7x:2x2x1
jax: 0.10.0
libtpu: 0.0.40
codegen_flags: <defaults>
</compile_context>

<pallas_src>
import math

import jax
import jax.numpy as jnp
from jax.experimental import pallas as pl
from jax.experimental.pallas import tpu as pltpu

# ----------------------- small-ViT configuration ---------------------------
BATCH = 2
IN_CH = 3
IMG = 32
PATCH = 16
HIDDEN = 32
NUM_HEADS = 4
HEAD_DIM = HIDDEN // NUM_HEADS
MLP_DIM = 64
NUM_LAYERS = 2
NUM_CLASSES = 3
LN_EPS = 1e-6                                   # torchvision ViT uses LayerNorm(eps=1e-6)

PATCH_DIM = IN_CH * PATCH * PATCH               # 768
S_TOKENS = (IMG // PATCH) ** 2 + 1              # 4 patches + class token = 5
S_PAD = 8                                       # pad sequence to a sublane multiple
NC_PAD = 128                                    # lane-dense classifier output
ATT_SCALE = 1.0 / math.sqrt(HEAD_DIM)
NEG_INF = -1e30


# ------------------------------ fused kernel --------------------------------
def _layernorm(x, g, b):
    mu = jnp.mean(x, axis=-1, keepdims=True)
    var = jnp.mean(jnp.square(x - mu), axis=-1, keepdims=True)
    return (x - mu) * jax.lax.rsqrt(var + LN_EPS) * g + b


def _vit_kernel(*refs):
    # refs = [patches, add_emb, conv_w, (12 per layer)*NUM_LAYERS, ln_g, ln_b, head_w, head_b, out]
    patches_ref, add_emb_ref, conv_w_ref = refs[:3]
    pos = 3
    layer_refs = []
    for _ in range(NUM_LAYERS):
        layer_refs.append(refs[pos:pos + 12])
        pos += 12
    ln_g_ref, ln_b_ref, head_w_ref, head_b_ref, o_ref = refs[pos:pos + 5]

    # Patch embedding (Conv2d(k=stride=PATCH) as matmul). The additive term already
    # contains conv bias (patch rows), class token + pos-emb (row 0) and zeros (pad rows).
    x = jnp.dot(patches_ref[...], conv_w_ref[...],
                preferred_element_type=jnp.float32) + add_emb_ref[...]          # (S_PAD, HIDDEN)

    # Key-padding mask: only the first S_TOKENS key positions are real tokens.
    key_valid = jax.lax.broadcasted_iota(jnp.int32, (S_PAD, S_PAD), 1) < S_TOKENS

    for (ln1_g, ln1_b, w_qkv, b_qkv, w_o, b_o,
         ln2_g, ln2_b, w1, b1, w2, b2) in layer_refs:
        # ---------------- multi-head self-attention (pre-LN) ----------------
        h = _layernorm(x, ln1_g[...], ln1_b[...])
        qkv = jnp.dot(h, w_qkv[...], preferred_element_type=jnp.float32) + b_qkv[...]
        q = qkv[:, 0 * HIDDEN:1 * HIDDEN]
        k = qkv[:, 1 * HIDDEN:2 * HIDDEN]
        v = qkv[:, 2 * HIDDEN:3 * HIDDEN]

        proj = jnp.zeros((S_PAD, HIDDEN), jnp.float32)
        for hh in range(NUM_HEADS):                         # static, fully unrolled
            sl = slice(hh * HEAD_DIM, (hh + 1) * HEAD_DIM)
            qh, kh, vh = q[:, sl], k[:, sl], v[:, sl]
            s = jax.lax.dot_general(qh, kh, (((1,), (1,)), ((), ())),
                                    preferred_element_type=jnp.float32) * ATT_SCALE
            s = jnp.where(key_valid, s, NEG_INF)
            m = jnp.max(s, axis=-1, keepdims=True)
            p = jnp.exp(s - m)
            p = p * pl.reciprocal(jnp.sum(p, axis=-1, keepdims=True), approx=True)
            oh = jnp.dot(p, vh, preferred_element_type=jnp.float32)
            # Fold the output projection per head: attn @ Wo == sum_h oh @ Wo[h-rows].
            proj = proj + jnp.dot(oh, w_o[sl, :], preferred_element_type=jnp.float32)
        x = x + proj + b_o[...]

        # ----------------------------- MLP (pre-LN) --------------------------
        h2 = _layernorm(x, ln2_g[...], ln2_b[...])
        h2 = jnp.dot(h2, w1[...], preferred_element_type=jnp.float32) + b1[...]
        # TODO(synk): torch nn.GELU() is exact erf-GELU; tanh approximation used here
        # for Mosaic-safe elementwise lowering (max ~1e-3 difference).
        h2 = jax.nn.gelu(h2, approximate=True)
        h2 = jnp.dot(h2, w2[...], preferred_element_type=jnp.float32) + b2[...]
        x = x + h2

    # Final LN + classification head (lane-padded to 128 columns -> dense stores).
    x = _layernorm(x, ln_g_ref[...], ln_b_ref[...])
    logits = jnp.dot(x, head_w_ref[...], preferred_element_type=jnp.float32) + head_b_ref[...]
    o_ref[...] = logits


# --------------------------- model definition --------------------------------
def init_params(key):
    def nrm(k, shape, std=0.02):
        return (std * jax.random.normal(k, shape)).astype(jnp.float32)

    keys = iter(jax.random.split(key, 64))
    params = {
        "conv_w": nrm(next(keys), (PATCH_DIM, HIDDEN)),
        "conv_b": jnp.zeros((HIDDEN,), jnp.float32),
        "cls_token": jnp.zeros((1, 1, HIDDEN), jnp.float32),
        "pos_emb": nrm(next(keys), (1, S_TOKENS, HIDDEN)),
        "ln_g": jnp.ones((HIDDEN,), jnp.float32),
        "ln_b": jnp.zeros((HIDDEN,), jnp.float32),
        "head_w": nrm(next(keys), (HIDDEN, NUM_CLASSES)),
        "head_b": jnp.zeros((NUM_CLASSES,), jnp.float32),
        "blocks": [],
    }
    for _ in range(NUM_LAYERS):
        blk = {
            "ln1_g": jnp.ones((HIDDEN,), jnp.float32),
            "ln1_b": jnp.zeros((HIDDEN,), jnp.float32),
            "wq": nrm(next(keys), (HIDDEN, HIDDEN)),
            "bq": jnp.zeros((HIDDEN,), jnp.float32),
            "wk": nrm(next(keys), (HIDDEN, HIDDEN)),
            "bk": jnp.zeros((HIDDEN,), jnp.float32),
            "wv": nrm(next(keys), (HIDDEN, HIDDEN)),
            "bv": jnp.zeros((HIDDEN,), jnp.float32),
            "wo": nrm(next(keys), (HIDDEN, HIDDEN)),
            "bo": jnp.zeros((HIDDEN,), jnp.float32),
            "ln2_g": jnp.ones((HIDDEN,), jnp.float32),
            "ln2_b": jnp.zeros((HIDDEN,), jnp.float32),
            "w1": nrm(next(keys), (HIDDEN, MLP_DIM)),
            "b1": jnp.zeros((MLP_DIM,), jnp.float32),
            "w2": nrm(next(keys), (MLP_DIM, HIDDEN)),
            "b2": jnp.zeros((HIDDEN,), jnp.float32),
        }
        params["blocks"].append(blk)
    return params


def vit_forward(images, params):
    """images: (B, C, H, W) float32, NCHW (PyTorch layout)."""
    B, C, H, W = images.shape
    hp, wp = H // PATCH, W // PATCH
    n = hp * wp

    # --- glue: im2col patch extraction, padded token layout (row 0 = cls slot, rows
    #     1..n = patches, rows n+1..S_PAD-1 = zero padding) ---
    patches = images.reshape(B, C, hp, PATCH, wp, PATCH)
    patches = patches.transpose(0, 2, 4, 1, 3, 5).reshape(B, n, PATCH_DIM)
    patches_padded = jnp.zeros((B, S_PAD, PATCH_DIM), jnp.float32)
    patches_padded = patches_padded.at[:, 1:1 + n, :].set(patches)
    patches_padded = patches_padded.reshape(B * S_PAD, PATCH_DIM)

    # Additive term per token slot: cls_token+pos[0] / conv_b+pos[s] / 0 (padding).
    add = jnp.zeros((S_PAD, HIDDEN), jnp.float32)
    add = add.at[0, :].set(params["cls_token"].reshape(HIDDEN) + params["pos_emb"][0, 0])
    add = add.at[1:1 + n, :].set(params["conv_b"][None, :] + params["pos_emb"][0, 1:1 + n])
    add_emb = jnp.tile(add, (B, 1))                                     # (B*S_PAD, HIDDEN)

    def full_spec(shape):
        nd = len(shape)
        return pl.BlockSpec(shape, lambda b: (0,) * nd)                 # resident weight

    inputs = [patches_padded, add_emb, params["conv_w"]]
    in_specs = [
        pl.BlockSpec((S_PAD, PATCH_DIM), lambda b: (b, 0)),
        pl.BlockSpec((S_PAD, HIDDEN), lambda b: (b, 0)),
        full_spec(params["conv_w"].shape),
    ]
    for blk in params["blocks"]:
        w_qkv = jnp.concatenate([blk["wq"], blk["wk"], blk["wv"]], axis=1)      # (H, 3H)
        b_qkv = jnp.concatenate([blk["bq"], blk["bk"], blk["bv"]]).reshape(1, 3 * HIDDEN)
        layer_arrays = [
            blk["ln1_g"].reshape(1, HIDDEN), blk["ln1_b"].reshape(1, HIDDEN),
            w_qkv, b_qkv,
            blk["wo"], blk["bo"].reshape(1, HIDDEN),
            blk["ln2_g"].reshape(1, HIDDEN), blk["ln2_b"].reshape(1, HIDDEN),
            blk["w1"], blk["b1"].reshape(1, MLP_DIM),
            blk["w2"], blk["b2"].reshape(1, HIDDEN),
        ]
        inputs += layer_arrays
        in_specs += [full_spec(a.shape) for a in layer_arrays]

    head_w = jnp.zeros((HIDDEN, NC_PAD), jnp.float32).at[:, :NUM_CLASSES].set(params["head_w"])
    head_b = jnp.zeros((1, NC_PAD), jnp.float32).at[0, :NUM_CLASSES].set(params["head_b"])
    tail = [params["ln_g"].reshape(1, HIDDEN), params["ln_b"].reshape(1, HIDDEN), head_w, head_b]
    inputs += tail
    in_specs += [full_spec(a.shape) for a in tail]

    out = pl.pallas_call(
        _vit_kernel,
        out_shape=jax.ShapeDtypeStruct((B * S_PAD, NC_PAD), jnp.float32),
        grid=(B,),                                   # batch-parallel (2 TCs on v7x)
        in_specs=in_specs,
        out_specs=pl.BlockSpec((S_PAD, NC_PAD), lambda b: (b, 0)),
        compiler_params=pltpu.CompilerParams(dimension_semantics=("parallel",)),
    )(*inputs)

    # Class-token row of each batch element, real classes only.
    logits = out.reshape(B, S_PAD, NC_PAD)[:, 0, :NUM_CLASSES]
    return logits


# --------------------------------- main ---------------------------------------
if __name__ == "__main__":
    key = jax.random.PRNGKey(0)
    k_img, k_par = jax.random.split(key)
    images = jax.random.normal(k_img, (BATCH, IN_CH, IMG, IMG), dtype=jnp.float32)
    params = init_params(k_par)

    logits = jax.jit(vit_forward)(images, params)
    logits = jax.block_until_ready(logits)
    assert logits.shape == (BATCH, NUM_CLASSES)
    assert bool(jnp.all(jnp.isfinite(logits)))
    print("KERNEL_OK")
</pallas_src>

<mosaic_0001>
module attributes {stable_mosaic.version = 11 : i64} {
  func.func @_vit_kernel(%arg0: i32, %arg1: memref<8x768xf32, #tpu.memory_space<vmem>>, %arg2: memref<8x32xf32, #tpu.memory_space<vmem>>, %arg3: memref<768x32xf32, #tpu.memory_space<vmem>>, %arg4: memref<1x32xf32, #tpu.memory_space<vmem>>, %arg5: memref<1x32xf32, #tpu.memory_space<vmem>>, %arg6: memref<32x96xf32, #tpu.memory_space<vmem>>, %arg7: memref<1x96xf32, #tpu.memory_space<vmem>>, %arg8: memref<32x32xf32, #tpu.memory_space<vmem>>, %arg9: memref<1x32xf32, #tpu.memory_space<vmem>>, %arg10: memref<1x32xf32, #tpu.memory_space<vmem>>, %arg11: memref<1x32xf32, #tpu.memory_space<vmem>>, %arg12: memref<32x64xf32, #tpu.memory_space<vmem>>, %arg13: memref<1x64xf32, #tpu.memory_space<vmem>>, %arg14: memref<64x32xf32, #tpu.memory_space<vmem>>, %arg15: memref<1x32xf32, #tpu.memory_space<vmem>>, %arg16: memref<1x32xf32, #tpu.memory_space<vmem>>, %arg17: memref<1x32xf32, #tpu.memory_space<vmem>>, %arg18: memref<32x96xf32, #tpu.memory_space<vmem>>, %arg19: memref<1x96xf32, #tpu.memory_space<vmem>>, %arg20: memref<32x32xf32, #tpu.memory_space<vmem>>, %arg21: memref<1x32xf32, #tpu.memory_space<vmem>>, %arg22: memref<1x32xf32, #tpu.memory_space<vmem>>, %arg23: memref<1x32xf32, #tpu.memory_space<vmem>>, %arg24: memref<32x64xf32, #tpu.memory_space<vmem>>, %arg25: memref<1x64xf32, #tpu.memory_space<vmem>>, %arg26: memref<64x32xf32, #tpu.memory_space<vmem>>, %arg27: memref<1x32xf32, #tpu.memory_space<vmem>>, %arg28: memref<1x32xf32, #tpu.memory_space<vmem>>, %arg29: memref<1x32xf32, #tpu.memory_space<vmem>>, %arg30: memref<32x128xf32, #tpu.memory_space<vmem>>, %arg31: memref<1x128xf32, #tpu.memory_space<vmem>>, %arg32: memref<8x128xf32, #tpu.memory_space<vmem>>) attributes {dimension_semantics = [#tpu.dimension_semantics<parallel>], iteration_bounds = array<i64: 2>, scalar_prefetch = 0 : i64, scratch_operands = 0 : i64, tpu.core_type = #tpu.core_type<tc>, window_params = [{transform_indices = @transform_0, window_bounds = array<i64: 8, 768>}, {transform_indices = @transform_1, window_bounds = array<i64: 8, 32>}, {pipeline_mode = #tpu.pipeline_mode<synchronous>, transform_indices = @transform_2, window_bounds = array<i64: 768, 32>}, {pipeline_mode = #tpu.pipeline_mode<synchronous>, transform_indices = @transform_3, window_bounds = array<i64: 1, 32>}, {pipeline_mode = #tpu.pipeline_mode<synchronous>, transform_indices = @transform_4, window_bounds = array<i64: 1, 32>}, {pipeline_mode = #tpu.pipeline_mode<synchronous>, transform_indices = @transform_5, window_bounds = array<i64: 32, 96>}, {pipeline_mode = #tpu.pipeline_mode<synchronous>, transform_indices = @transform_6, window_bounds = array<i64: 1, 96>}, {pipeline_mode = #tpu.pipeline_mode<synchronous>, transform_indices = @transform_7, window_bounds = array<i64: 32, 32>}, {pipeline_mode = #tpu.pipeline_mode<synchronous>, transform_indices = @transform_8, window_bounds = array<i64: 1, 32>}, {pipeline_mode = #tpu.pipeline_mode<synchronous>, transform_indices = @transform_9, window_bounds = array<i64: 1, 32>}, {pipeline_mode = #tpu.pipeline_mode<synchronous>, transform_indices = @transform_10, window_bounds = array<i64: 1, 32>}, {pipeline_mode = #tpu.pipeline_mode<synchronous>, transform_indices = @transform_11, window_bounds = array<i64: 32, 64>}, {pipeline_mode = #tpu.pipeline_mode<synchronous>, transform_indices = @transform_12, window_bounds = array<i64: 1, 64>}, {pipeline_mode = #tpu.pipeline_mode<synchronous>, transform_indices = @transform_13, window_bounds = array<i64: 64, 32>}, {pipeline_mode = #tpu.pipeline_mode<synchronous>, transform_indices = @transform_14, window_bounds = array<i64: 1, 32>}, {pipeline_mode = #tpu.pipeline_mode<synchronous>, transform_indices = @transform_15, window_bounds = array<i64: 1, 32>}, {pipeline_mode = #tpu.pipeline_mode<synchronous>, transform_indices = @transform_16, window_bounds = array<i64: 1, 32>}, {pipeline_mode = #tpu.pipeline_mode<synchronous>, transform_indices = @transform_17, window_bounds = array<i64: 32, 96>}, {pipeline_mode = #tpu.pipeline_mode<synchronous>, transform_indices = @transform_18, window_bounds = array<i64: 1, 96>}, {pipeline_mode = #tpu.pipeline_mode<synchronous>, transform_indices = @transform_19, window_bounds = array<i64: 32, 32>}, {pipeline_mode = #tpu.pipeline_mode<synchronous>, transform_indices = @transform_20, window_bounds = array<i64: 1, 32>}, {pipeline_mode = #tpu.pipeline_mode<synchronous>, transform_indices = @transform_21, window_bounds = array<i64: 1, 32>}, {pipeline_mode = #tpu.pipeline_mode<synchronous>, transform_indices = @transform_22, window_bounds = array<i64: 1, 32>}, {pipeline_mode = #tpu.pipeline_mode<synchronous>, transform_indices = @transform_23, window_bounds = array<i64: 32, 64>}, {pipeline_mode = #tpu.pipeline_mode<synchronous>, transform_indices = @transform_24, window_bounds = array<i64: 1, 64>}, {pipeline_mode = #tpu.pipeline_mode<synchronous>, transform_indices = @transform_25, window_bounds = array<i64: 64, 32>}, {pipeline_mode = #tpu.pipeline_mode<synchronous>, transform_indices = @transform_26, window_bounds = array<i64: 1, 32>}, {pipeline_mode = #tpu.pipeline_mode<synchronous>, transform_indices = @transform_27, window_bounds = array<i64: 1, 32>}, {pipeline_mode = #tpu.pipeline_mode<synchronous>, transform_indices = @transform_28, window_bounds = array<i64: 1, 32>}, {pipeline_mode = #tpu.pipeline_mode<synchronous>, transform_indices = @transform_29, window_bounds = array<i64: 32, 128>}, {pipeline_mode = #tpu.pipeline_mode<synchronous>, transform_indices = @transform_30, window_bounds = array<i64: 1, 128>}, {transform_indices = @transform_31, window_bounds = array<i64: 8, 128>}]} {
    %c0 = arith.constant 0 : index
    %c0_0 = arith.constant 0 : index
    %0 = vector.load %arg1[%c0, %c0_0] : memref<8x768xf32, #tpu.memory_space<vmem>>, vector<8x768xf32>
    %c0_1 = arith.constant 0 : index
    %c0_2 = arith.constant 0 : index
    %1 = vector.load %arg3[%c0_1, %c0_2] : memref<768x32xf32, #tpu.memory_space<vmem>>, vector<768x32xf32>
    %cst = arith.constant dense<0.000000e+00> : vector<8x32xf32>
    %2 = tpu.matmul %0, %1, %cst {dimension_numbers = #tpu.dot_dimension_numbers<[1], [0], [0], [1], [0, 0, 1, 1], [], []>} : vector<8x768xf32>, vector<768x32xf32>, vector<8x32xf32> -> vector<8x32xf32>
    %c0_3 = arith.constant 0 : index
    %c0_4 = arith.constant 0 : index
    %3 = vector.load %arg2[%c0_3, %c0_4] : memref<8x32xf32, #tpu.memory_space<vmem>>, vector<8x32xf32>
    %4 = arith.addf %2, %3 : vector<8x32xf32>
    %5 = tpu.iota {dimensions = array<i32: 1>} : vector<8x8xi32>
    %c5_i32 = arith.constant 5 : i32
    %6 = vector.broadcast %c5_i32 : i32 to vector<8x8xi32>
    %7 = arith.cmpi slt, %5, %6 : vector<8x8xi32>
    %c0_5 = arith.constant 0 : index
    %c0_6 = arith.constant 0 : index
    %8 = vector.load %arg4[%c0_5, %c0_6] : memref<1x32xf32, #tpu.memory_space<vmem>>, vector<1x32xf32>
    %c0_7 = arith.constant 0 : index
    %c0_8 = arith.constant 0 : index
    %9 = vector.load %arg5[%c0_7, %c0_8] : memref<1x32xf32, #tpu.memory_space<vmem>>, vector<1x32xf32>
    %cst_9 = arith.constant dense<0.000000e+00> : vector<8xf32>
    %10 = vector.multi_reduction <add>, %4, %cst_9 [1] : vector<8x32xf32> to vector<8xf32>
    %11 = vector.shape_cast %10 : vector<8xf32> to vector<8x1xf32>
    %cst_10 = arith.constant 3.200000e+01 : f32
    %12 = vector.broadcast %cst_10 : f32 to vector<8x1xf32>
    %13 = arith.divf %11, %12 : vector<8x1xf32>
    %14 = vector.broadcast %13 : vector<8x1xf32> to vector<8x32xf32>
    %15 = arith.subf %4, %14 : vector<8x32xf32>
    %16 = arith.mulf %15, %15 : vector<8x32xf32>
    %cst_11 = arith.constant dense<0.000000e+00> : vector<8xf32>
    %17 = vector.multi_reduction <add>, %16, %cst_11 [1] : vector<8x32xf32> to vector<8xf32>
    %18 = vector.shape_cast %17 : vector<8xf32> to vector<8x1xf32>
    %cst_12 = arith.constant 3.200000e+01 : f32
    %19 = vector.broadcast %cst_12 : f32 to vector<8x1xf32>
    %20 = arith.divf %18, %19 : vector<8x1xf32>
    %21 = vector.broadcast %13 : vector<8x1xf32> to vector<8x32xf32>
    %22 = arith.subf %4, %21 : vector<8x32xf32>
    %cst_13 = arith.constant 9.99999997E-7 : f32
    %23 = vector.broadcast %cst_13 : f32 to vector<8x1xf32>
    %24 = arith.addf %20, %23 : vector<8x1xf32>
    %25 = math.rsqrt %24 : vector<8x1xf32>
    %26 = vector.broadcast %25 : vector<8x1xf32> to vector<8x32xf32>
    %27 = arith.mulf %22, %26 : vector<8x32xf32>
    %28 = vector.broadcast %8 : vector<1x32xf32> to vector<8x32xf32>
    %29 = arith.mulf %27, %28 : vector<8x32xf32>
    %30 = vector.broadcast %9 : vector<1x32xf32> to vector<8x32xf32>
    %31 = arith.addf %29, %30 : vector<8x32xf32>
    %c0_14 = arith.constant 0 : index
    %c0_15 = arith.constant 0 : index
    %32 = vector.load %arg6[%c0_14, %c0_15] : memref<32x96xf32, #tpu.memory_space<vmem>>, vector<32x96xf32>
    %cst_16 = arith.constant dense<0.000000e+00> : vector<8x96xf32>
    %33 = tpu.matmul %31, %32, %cst_16 {dimension_numbers = #tpu.dot_dimension_numbers<[1], [0], [0], [1], [0, 0, 1, 1], [], []>} : vector<8x32xf32>, vector<32x96xf32>, vector<8x96xf32> -> vector<8x96xf32>
    %c0_17 = arith.constant 0 : index
    %c0_18 = arith.constant 0 : index
    %34 = vector.load %arg7[%c0_17, %c0_18] : memref<1x96xf32, #tpu.memory_space<vmem>>, vector<1x96xf32>
    %35 = vector.broadcast %34 : vector<1x96xf32> to vector<8x96xf32>
    %36 = arith.addf %33, %35 : vector<8x96xf32>
    %37 = vector.extract_strided_slice %36 {offsets = [0, 0], sizes = [8, 32], strides = [1, 1]} : vector<8x96xf32> to vector<8x32xf32>
    %38 = vector.extract_strided_slice %36 {offsets = [0, 32], sizes = [8, 32], strides = [1, 1]} : vector<8x96xf32> to vector<8x32xf32>
    %39 = vector.extract_strided_slice %36 {offsets = [0, 64], sizes = [8, 32], strides = [1, 1]} : vector<8x96xf32> to vector<8x32xf32>
    %cst_19 = arith.constant 0.000000e+00 : f32
    %40 = vector.broadcast %cst_19 : f32 to vector<8x32xf32>
    %41 = vector.extract_strided_slice %37 {offsets = [0, 0], sizes = [8, 8], strides = [1, 1]} : vector<8x32xf32> to vector<8x8xf32>
    %42 = vector.extract_strided_slice %38 {offsets = [0, 0], sizes = [8, 8], strides = [1, 1]} : vector<8x32xf32> to vector<8x8xf32>
    %43 = vector.extract_strided_slice %39 {offsets = [0, 0], sizes = [8, 8], strides = [1, 1]} : vector<8x32xf32> to vector<8x8xf32>
    %cst_20 = arith.constant dense<0.000000e+00> : vector<8x8xf32>
    %44 = tpu.matmul %41, %42, %cst_20 {dimension_numbers = #tpu.dot_dimension_numbers<[1], [1], [0], [0], [0, 0, 1, 0], [], []>} : vector<8x8xf32>, vector<8x8xf32>, vector<8x8xf32> -> vector<8x8xf32>
    %cst_21 = arith.constant 0.353553385 : f32
    %45 = vector.broadcast %cst_21 : f32 to vector<8x8xf32>
    %46 = arith.mulf %44, %45 : vector<8x8xf32>
    %cst_22 = arith.constant -1.000000e+30 : f32
    %47 = vector.broadcast %cst_22 : f32 to vector<8x8xf32>
    %48 = arith.select %7, %46, %47 : vector<8x8xi1>, vector<8x8xf32>
    %cst_23 = arith.constant dense<0xFF800000> : vector<8xf32>
    %49 = vector.multi_reduction <maximumf>, %48, %cst_23 [1] : vector<8x8xf32> to vector<8xf32>
    %50 = vector.shape_cast %49 : vector<8xf32> to vector<8x1xf32>
    %51 = vector.broadcast %50 : vector<8x1xf32> to vector<8x8xf32>
    %52 = arith.subf %48, %51 : vector<8x8xf32>
    %53 = math.exp %52 : vector<8x8xf32>
    %cst_24 = arith.constant dense<0.000000e+00> : vector<8xf32>
    %54 = vector.multi_reduction <add>, %53, %cst_24 [1] : vector<8x8xf32> to vector<8xf32>
    %55 = vector.shape_cast %54 : vector<8xf32> to vector<8x1xf32>
    %56 = tpu.reciprocal %55 {approx = true} : vector<8x1xf32> -> vector<8x1xf32>
    %57 = vector.broadcast %56 : vector<8x1xf32> to vector<8x8xf32>
    %58 = arith.mulf %53, %57 : vector<8x8xf32>
    %cst_25 = arith.constant dense<0.000000e+00> : vector<8x8xf32>
    %59 = tpu.matmul %58, %43, %cst_25 {dimension_numbers = #tpu.dot_dimension_numbers<[1], [0], [0], [1], [0, 0, 1, 1], [], []>} : vector<8x8xf32>, vector<8x8xf32>, vector<8x8xf32> -> vector<8x8xf32>
    %c0_26 = arith.constant 0 : index
    %c0_27 = arith.constant 0 : index
    %60 = vector.load %arg8[%c0_26, %c0_27] : memref<32x32xf32, #tpu.memory_space<vmem>>, vector<8x32xf32>
    %cst_28 = arith.constant dense<0.000000e+00> : vector<8x32xf32>
    %61 = tpu.matmul %59, %60, %cst_28 {dimension_numbers = #tpu.dot_dimension_numbers<[1], [0], [0], [1], [0, 0, 1, 1], [], []>} : vector<8x8xf32>, vector<8x32xf32>, vector<8x32xf32> -> vector<8x32xf32>
    %62 = arith.addf %40, %61 : vector<8x32xf32>
    %63 = vector.extract_strided_slice %37 {offsets = [0, 8], sizes = [8, 8], strides = [1, 1]} : vector<8x32xf32> to vector<8x8xf32>
    %64 = vector.extract_strided_slice %38 {offsets = [0, 8], sizes = [8, 8], strides = [1, 1]} : vector<8x32xf32> to vector<8x8xf32>
    %65 = vector.extract_strided_slice %39 {offsets = [0, 8], sizes = [8, 8], strides = [1, 1]} : vector<8x32xf32> to vector<8x8xf32>
    %cst_29 = arith.constant dense<0.000000e+00> : vector<8x8xf32>
    %66 = tpu.matmul %63, %64, %cst_29 {dimension_numbers = #tpu.dot_dimension_numbers<[1], [1], [0], [0], [0, 0, 1, 0], [], []>} : vector<8x8xf32>, vector<8x8xf32>, vector<8x8xf32> -> vector<8x8xf32>
    %cst_30 = arith.constant 0.353553385 : f32
    %67 = vector.broadcast %cst_30 : f32 to vector<8x8xf32>
    %68 = arith.mulf %66, %67 : vector<8x8xf32>
    %cst_31 = arith.constant -1.000000e+30 : f32
    %69 = vector.broadcast %cst_31 : f32 to vector<8x8xf32>
    %70 = arith.select %7, %68, %69 : vector<8x8xi1>, vector<8x8xf32>
    %cst_32 = arith.constant dense<0xFF800000> : vector<8xf32>
    %71 = vector.multi_reduction <maximumf>, %70, %cst_32 [1] : vector<8x8xf32> to vector<8xf32>
    %72 = vector.shape_cast %71 : vector<8xf32> to vector<8x1xf32>
    %73 = vector.broadcast %72 : vector<8x1xf32> to vector<8x8xf32>
    %74 = arith.subf %70, %73 : vector<8x8xf32>
    %75 = math.exp %74 : vector<8x8xf32>
    %cst_33 = arith.constant dense<0.000000e+00> : vector<8xf32>
    %76 = vector.multi_reduction <add>, %75, %cst_33 [1] : vector<8x8xf32> to vector<8xf32>
    %77 = vector.shape_cast %76 : vector<8xf32> to vector<8x1xf32>
    %78 = tpu.reciprocal %77 {approx = true} : vector<8x1xf32> -> vector<8x1xf32>
    %79 = vector.broadcast %78 : vector<8x1xf32> to vector<8x8xf32>
    %80 = arith.mulf %75, %79 : vector<8x8xf32>
    %cst_34 = arith.constant dense<0.000000e+00> : vector<8x8xf32>
    %81 = tpu.matmul %80, %65, %cst_34 {dimension_numbers = #tpu.dot_dimension_numbers<[1], [0], [0], [1], [0, 0, 1, 1], [], []>} : vector<8x8xf32>, vector<8x8xf32>, vector<8x8xf32> -> vector<8x8xf32>
    %c8 = arith.constant 8 : index
    %c0_35 = arith.constant 0 : index
    %82 = vector.load %arg8[%c8, %c0_35] : memref<32x32xf32, #tpu.memory_space<vmem>>, vector<8x32xf32>
    %cst_36 = arith.constant dense<0.000000e+00> : vector<8x32xf32>
    %83 = tpu.matmul %81, %82, %cst_36 {dimension_numbers = #tpu.dot_dimension_numbers<[1], [0], [0], [1], [0, 0, 1, 1], [], []>} : vector<8x8xf32>, vector<8x32xf32>, vector<8x32xf32> -> vector<8x32xf32>
    %84 = arith.addf %62, %83 : vector<8x32xf32>
    %85 = vector.extract_strided_slice %37 {offsets = [0, 16], sizes = [8, 8], strides = [1, 1]} : vector<8x32xf32> to vector<8x8xf32>
    %86 = vector.extract_strided_slice %38 {offsets = [0, 16], sizes = [8, 8], strides = [1, 1]} : vector<8x32xf32> to vector<8x8xf32>
    %87 = vector.extract_strided_slice %39 {offsets = [0, 16], sizes = [8, 8], strides = [1, 1]} : vector<8x32xf32> to vector<8x8xf32>
    %cst_37 = arith.constant dense<0.000000e+00> : vector<8x8xf32>
    %88 = tpu.matmul %85, %86, %cst_37 {dimension_numbers = #tpu.dot_dimension_numbers<[1], [1], [0], [0], [0, 0, 1, 0], [], []>} : vector<8x8xf32>, vector<8x8xf32>, vector<8x8xf32> -> vector<8x8xf32>
    %cst_38 = arith.constant 0.353553385 : f32
    %89 = vector.broadcast %cst_38 : f32 to vector<8x8xf32>
    %90 = arith.mulf %88, %89 : vector<8x8xf32>
    %cst_39 = arith.constant -1.000000e+30 : f32
    %91 = vector.broadcast %cst_39 : f32 to vector<8x8xf32>
    %92 = arith.select %7, %90, %91 : vector<8x8xi1>, vector<8x8xf32>
    %cst_40 = arith.constant dense<0xFF800000> : vector<8xf32>
    %93 = vector.multi_reduction <maximumf>, %92, %cst_40 [1] : vector<8x8xf32> to vector<8xf32>
    %94 = vector.shape_cast %93 : vector<8xf32> to vector<8x1xf32>
    %95 = vector.broadcast %94 : vector<8x1xf32> to vector<8x8xf32>
    %96 = arith.subf %92, %95 : vector<8x8xf32>
    %97 = math.exp %96 : vector<8x8xf32>
    %cst_41 = arith.constant dense<0.000000e+00> : vector<8xf32>
    %98 = vector.multi_reduction <add>, %97, %cst_41 [1] : vector<8x8xf32> to vector<8xf32>
    %99 = vector.shape_cast %98 : vector<8xf32> to vector<8x1xf32>
    %100 = tpu.reciprocal %99 {approx = true} : vector<8x1xf32> -> vector<8x1xf32>
    %101 = vector.broadcast %100 : vector<8x1xf32> to vector<8x8xf32>
    %102 = arith.mulf %97, %101 : vector<8x8xf32>
    %cst_42 = arith.constant dense<0.000000e+00> : vector<8x8xf32>
    %103 = tpu.matmul %102, %87, %cst_42 {dimension_numbers = #tpu.dot_dimension_numbers<[1], [0], [0], [1], [0, 0, 1, 1], [], []>} : vector<8x8xf32>, vector<8x8xf32>, vector<8x8xf32> -> vector<8x8xf32>
    %c16 = arith.constant 16 : index
    %c0_43 = arith.constant 0 : index
    %104 = vector.load %arg8[%c16, %c0_43] : memref<32x32xf32, #tpu.memory_space<vmem>>, vector<8x32xf32>
    %cst_44 = arith.constant dense<0.000000e+00> : vector<8x32xf32>
    %105 = tpu.matmul %103, %104, %cst_44 {dimension_numbers = #tpu.dot_dimension_numbers<[1], [0], [0], [1], [0, 0, 1, 1], [], []>} : vector<8x8xf32>, vector<8x32xf32>, vector<8x32xf32> -> vector<8x32xf32>
    %106 = arith.addf %84, %105 : vector<8x32xf32>
    %107 = vector.extract_strided_slice %37 {offsets = [0, 24], sizes = [8, 8], strides = [1, 1]} : vector<8x32xf32> to vector<8x8xf32>
    %108 = vector.extract_strided_slice %38 {offsets = [0, 24], sizes = [8, 8], strides = [1, 1]} : vector<8x32xf32> to vector<8x8xf32>
    %109 = vector.extract_strided_slice %39 {offsets = [0, 24], sizes = [8, 8], strides = [1, 1]} : vector<8x32xf32> to vector<8x8xf32>
    %cst_45 = arith.constant dense<0.000000e+00> : vector<8x8xf32>
    %110 = tpu.matmul %107, %108, %cst_45 {dimension_numbers = #tpu.dot_dimension_numbers<[1], [1], [0], [0], [0, 0, 1, 0], [], []>} : vector<8x8xf32>, vector<8x8xf32>, vector<8x8xf32> -> vector<8x8xf32>
    %cst_46 = arith.constant 0.353553385 : f32
    %111 = vector.broadcast %cst_46 : f32 to vector<8x8xf32>
    %112 = arith.mulf %110, %111 : vector<8x8xf32>
    %cst_47 = arith.constant -1.000000e+30 : f32
    %113 = vector.broadcast %cst_47 : f32 to vector<8x8xf32>
    %114 = arith.select %7, %112, %113 : vector<8x8xi1>, vector<8x8xf32>
    %cst_48 = arith.constant dense<0xFF800000> : vector<8xf32>
    %115 = vector.multi_reduction <maximumf>, %114, %cst_48 [1] : vector<8x8xf32> to vector<8xf32>
    %116 = vector.shape_cast %115 : vector<8xf32> to vector<8x1xf32>
    %117 = vector.broadcast %116 : vector<8x1xf32> to vector<8x8xf32>
    %118 = arith.subf %114, %117 : vector<8x8xf32>
    %119 = math.exp %118 : vector<8x8xf32>
    %cst_49 = arith.constant dense<0.000000e+00> : vector<8xf32>
    %120 = vector.multi_reduction <add>, %119, %cst_49 [1] : vector<8x8xf32> to vector<8xf32>
    %121 = vector.shape_cast %120 : vector<8xf32> to vector<8x1xf32>
    %122 = tpu.reciprocal %121 {approx = true} : vector<8x1xf32> -> vector<8x1xf32>
    %123 = vector.broadcast %122 : vector<8x1xf32> to vector<8x8xf32>
    %124 = arith.mulf %119, %123 : vector<8x8xf32>
    %cst_50 = arith.constant dense<0.000000e+00> : vector<8x8xf32>
    %125 = tpu.matmul %124, %109, %cst_50 {dimension_numbers = #tpu.dot_dimension_numbers<[1], [0], [0], [1], [0, 0, 1, 1], [], []>} : vector<8x8xf32>, vector<8x8xf32>, vector<8x8xf32> -> vector<8x8xf32>
    %c24 = arith.constant 24 : index
    %c0_51 = arith.constant 0 : index
    %126 = vector.load %arg8[%c24, %c0_51] : memref<32x32xf32, #tpu.memory_space<vmem>>, vector<8x32xf32>
    %cst_52 = arith.constant dense<0.000000e+00> : vector<8x32xf32>
    %127 = tpu.matmul %125, %126, %cst_52 {dimension_numbers = #tpu.dot_dimension_numbers<[1], [0], [0], [1], [0, 0, 1, 1], [], []>} : vector<8x8xf32>, vector<8x32xf32>, vector<8x32xf32> -> vector<8x32xf32>
    %128 = arith.addf %106, %127 : vector<8x32xf32>
    %129 = arith.addf %4, %128 : vector<8x32xf32>
    %c0_53 = arith.constant 0 : index
    %c0_54 = arith.constant 0 : index
    %130 = vector.load %arg9[%c0_53, %c0_54] : memref<1x32xf32, #tpu.memory_space<vmem>>, vector<1x32xf32>
    %131 = vector.broadcast %130 : vector<1x32xf32> to vector<8x32xf32>
    %132 = arith.addf %129, %131 : vector<8x32xf32>
    %c0_55 = arith.constant 0 : index
    %c0_56 = arith.constant 0 : index
    %133 = vector.load %arg10[%c0_55, %c0_56] : memref<1x32xf32, #tpu.memory_space<vmem>>, vector<1x32xf32>
    %c0_57 = arith.constant 0 : index
    %c0_58 = arith.constant 0 : index
    %134 = vector.load %arg11[%c0_57, %c0_58] : memref<1x32xf32, #tpu.memory_space<vmem>>, vector<1x32xf32>
    %cst_59 = arith.constant dense<0.000000e+00> : vector<8xf32>
    %135 = vector.multi_reduction <add>, %132, %cst_59 [1] : vector<8x32xf32> to vector<8xf32>
    %136 = vector.shape_cast %135 : vector<8xf32> to vector<8x1xf32>
    %cst_60 = arith.constant 3.200000e+01 : f32
    %137 = vector.broadcast %cst_60 : f32 to vector<8x1xf32>
    %138 = arith.divf %136, %137 : vector<8x1xf32>
    %139 = vector.broadcast %138 : vector<8x1xf32> to vector<8x32xf32>
    %140 = arith.subf %132, %139 : vector<8x32xf32>
    %141 = arith.mulf %140, %140 : vector<8x32xf32>
    %cst_61 = arith.constant dense<0.000000e+00> : vector<8xf32>
    %142 = vector.multi_reduction <add>, %141, %cst_61 [1] : vector<8x32xf32> to vector<8xf32>
    %143 = vector.shape_cast %142 : vector<8xf32> to vector<8x1xf32>
    %cst_62 = arith.constant 3.200000e+01 : f32
    %144 = vector.broadcast %cst_62 : f32 to vector<8x1xf32>
    %145 = arith.divf %143, %144 : vector<8x1xf32>
    %146 = vector.broadcast %138 : vector<8x1xf32> to vector<8x32xf32>
    %147 = arith.subf %132, %146 : vector<8x32xf32>
    %cst_63 = arith.constant 9.99999997E-7 : f32
    %148 = vector.broadcast %cst_63 : f32 to vector<8x1xf32>
    %149 = arith.addf %145, %148 : vector<8x1xf32>
    %150 = math.rsqrt %149 : vector<8x1xf32>
    %151 = vector.broadcast %150 : vector<8x1xf32> to vector<8x32xf32>
    %152 = arith.mulf %147, %151 : vector<8x32xf32>
    %153 = vector.broadcast %133 : vector<1x32xf32> to vector<8x32xf32>
    %154 = arith.mulf %152, %153 : vector<8x32xf32>
    %155 = vector.broadcast %134 : vector<1x32xf32> to vector<8x32xf32>
    %156 = arith.addf %154, %155 : vector<8x32xf32>
    %c0_64 = arith.constant 0 : index
    %c0_65 = arith.constant 0 : index
    %157 = vector.load %arg12[%c0_64, %c0_65] : memref<32x64xf32, #tpu.memory_space<vmem>>, vector<32x64xf32>
    %cst_66 = arith.constant dense<0.000000e+00> : vector<8x64xf32>
    %158 = tpu.matmul %156, %157, %cst_66 {dimension_numbers = #tpu.dot_dimension_numbers<[1], [0], [0], [1], [0, 0, 1, 1], [], []>} : vector<8x32xf32>, vector<32x64xf32>, vector<8x64xf32> -> vector<8x64xf32>
    %c0_67 = arith.constant 0 : index
    %c0_68 = arith.constant 0 : index
    %159 = vector.load %arg13[%c0_67, %c0_68] : memref<1x64xf32, #tpu.memory_space<vmem>>, vector<1x64xf32>
    %160 = vector.broadcast %159 : vector<1x64xf32> to vector<8x64xf32>
    %161 = arith.addf %158, %160 : vector<8x64xf32>
    %162 = arith.mulf %161, %161 : vector<8x64xf32>
    %163 = arith.mulf %161, %162 : vector<8x64xf32>
    %cst_69 = arith.constant 4.471500e-02 : f32
    %164 = vector.broadcast %cst_69 : f32 to vector<8x64xf32>
    %165 = arith.mulf %164, %163 : vector<8x64xf32>
    %166 = arith.addf %161, %165 : vector<8x64xf32>
    %cst_70 = arith.constant 0.797884583 : f32
    %167 = vector.broadcast %cst_70 : f32 to vector<8x64xf32>
    %168 = arith.mulf %167, %166 : vector<8x64xf32>
    %169 = math.tanh %168 : vector<8x64xf32>
    %cst_71 = arith.constant 1.000000e+00 : f32
    %170 = vector.broadcast %cst_71 : f32 to vector<8x64xf32>
    %171 = arith.addf %170, %169 : vector<8x64xf32>
    %cst_72 = arith.constant 5.000000e-01 : f32
    %172 = vector.broadcast %cst_72 : f32 to vector<8x64xf32>
    %173 = arith.mulf %172, %171 : vector<8x64xf32>
    %174 = arith.mulf %161, %173 : vector<8x64xf32>
    %c0_73 = arith.constant 0 : index
    %c0_74 = arith.constant 0 : index
    %175 = vector.load %arg14[%c0_73, %c0_74] : memref<64x32xf32, #tpu.memory_space<vmem>>, vector<64x32xf32>
    %cst_75 = arith.constant dense<0.000000e+00> : vector<8x32xf32>
    %176 = tpu.matmul %174, %175, %cst_75 {dimension_numbers = #tpu.dot_dimension_numbers<[1], [0], [0], [1], [0, 0, 1, 1], [], []>} : vector<8x64xf32>, vector<64x32xf32>, vector<8x32xf32> -> vector<8x32xf32>
    %c0_76 = arith.constant 0 : index
    %c0_77 = arith.constant 0 : index
    %177 = vector.load %arg15[%c0_76, %c0_77] : memref<1x32xf32, #tpu.memory_space<vmem>>, vector<1x32xf32>
    %178 = vector.broadcast %177 : vector<1x32xf32> to vector<8x32xf32>
    %179 = arith.addf %176, %178 : vector<8x32xf32>
    %180 = arith.addf %132, %179 : vector<8x32xf32>
    %c0_78 = arith.constant 0 : index
    %c0_79 = arith.constant 0 : index
    %181 = vector.load %arg16[%c0_78, %c0_79] : memref<1x32xf32, #tpu.memory_space<vmem>>, vector<1x32xf32>
    %c0_80 = arith.constant 0 : index
    %c0_81 = arith.constant 0 : index
    %182 = vector.load %arg17[%c0_80, %c0_81] : memref<1x32xf32, #tpu.memory_space<vmem>>, vector<1x32xf32>
    %cst_82 = arith.constant dense<0.000000e+00> : vector<8xf32>
    %183 = vector.multi_reduction <add>, %180, %cst_82 [1] : vector<8x32xf32> to vector<8xf32>
    %184 = vector.shape_cast %183 : vector<8xf32> to vector<8x1xf32>
    %cst_83 = arith.constant 3.200000e+01 : f32
    %185 = vector.broadcast %cst_83 : f32 to vector<8x1xf32>
    %186 = arith.divf %184, %185 : vector<8x1xf32>
    %187 = vector.broadcast %186 : vector<8x1xf32> to vector<8x32xf32>
    %188 = arith.subf %180, %187 : vector<8x32xf32>
    %189 = arith.mulf %188, %188 : vector<8x32xf32>
    %cst_84 = arith.constant dense<0.000000e+00> : vector<8xf32>
    %190 = vector.multi_reduction <add>, %189, %cst_84 [1] : vector<8x32xf32> to vector<8xf32>
    %191 = vector.shape_cast %190 : vector<8xf32> to vector<8x1xf32>
    %cst_85 = arith.constant 3.200000e+01 : f32
    %192 = vector.broadcast %cst_85 : f32 to vector<8x1xf32>
    %193 = arith.divf %191, %192 : vector<8x1xf32>
    %194 = vector.broadcast %186 : vector<8x1xf32> to vector<8x32xf32>
    %195 = arith.subf %180, %194 : vector<8x32xf32>
    %cst_86 = arith.constant 9.99999997E-7 : f32
    %196 = vector.broadcast %cst_86 : f32 to vector<8x1xf32>
    %197 = arith.addf %193, %196 : vector<8x1xf32>
    %198 = math.rsqrt %197 : vector<8x1xf32>
    %199 = vector.broadcast %198 : vector<8x1xf32> to vector<8x32xf32>
    %200 = arith.mulf %195, %199 : vector<8x32xf32>
    %201 = vector.broadcast %181 : vector<1x32xf32> to vector<8x32xf32>
    %202 = arith.mulf %200, %201 : vector<8x32xf32>
    %203 = vector.broadcast %182 : vector<1x32xf32> to vector<8x32xf32>
    %204 = arith.addf %202, %203 : vector<8x32xf32>
    %c0_87 = arith.constant 0 : index
    %c0_88 = arith.constant 0 : index
    %205 = vector.load %arg18[%c0_87, %c0_88] : memref<32x96xf32, #tpu.memory_space<vmem>>, vector<32x96xf32>
    %cst_89 = arith.constant dense<0.000000e+00> : vector<8x96xf32>
    %206 = tpu.matmul %204, %205, %cst_89 {dimension_numbers = #tpu.dot_dimension_numbers<[1], [0], [0], [1], [0, 0, 1, 1], [], []>} : vector<8x32xf32>, vector<32x96xf32>, vector<8x96xf32> -> vector<8x96xf32>
    %c0_90 = arith.constant 0 : index
    %c0_91 = arith.constant 0 : index
    %207 = vector.load %arg19[%c0_90, %c0_91] : memref<1x96xf32, #tpu.memory_space<vmem>>, vector<1x96xf32>
    %208 = vector.broadcast %207 : vector<1x96xf32> to vector<8x96xf32>
    %209 = arith.addf %206, %208 : vector<8x96xf32>
    %210 = vector.extract_strided_slice %209 {offsets = [0, 0], sizes = [8, 32], strides = [1, 1]} : vector<8x96xf32> to vector<8x32xf32>
    %211 = vector.extract_strided_slice %209 {offsets = [0, 32], sizes = [8, 32], strides = [1, 1]} : vector<8x96xf32> to vector<8x32xf32>
    %212 = vector.extract_strided_slice %209 {offsets = [0, 64], sizes = [8, 32], strides = [1, 1]} : vector<8x96xf32> to vector<8x32xf32>
    %cst_92 = arith.constant 0.000000e+00 : f32
    %213 = vector.broadcast %cst_92 : f32 to vector<8x32xf32>
    %214 = vector.extract_strided_slice %210 {offsets = [0, 0], sizes = [8, 8], strides = [1, 1]} : vector<8x32xf32> to vector<8x8xf32>
    %215 = vector.extract_strided_slice %211 {offsets = [0, 0], sizes = [8, 8], strides = [1, 1]} : vector<8x32xf32> to vector<8x8xf32>
    %216 = vector.extract_strided_slice %212 {offsets = [0, 0], sizes = [8, 8], strides = [1, 1]} : vector<8x32xf32> to vector<8x8xf32>
    %cst_93 = arith.constant dense<0.000000e+00> : vector<8x8xf32>
    %217 = tpu.matmul %214, %215, %cst_93 {dimension_numbers = #tpu.dot_dimension_numbers<[1], [1], [0], [0], [0, 0, 1, 0], [], []>} : vector<8x8xf32>, vector<8x8xf32>, vector<8x8xf32> -> vector<8x8xf32>
    %cst_94 = arith.constant 0.353553385 : f32
    %218 = vector.broadcast %cst_94 : f32 to vector<8x8xf32>
    %219 = arith.mulf %217, %218 : vector<8x8xf32>
    %cst_95 = arith.constant -1.000000e+30 : f32
    %220 = vector.broadcast %cst_95 : f32 to vector<8x8xf32>
    %221 = arith.select %7, %219, %220 : vector<8x8xi1>, vector<8x8xf32>
    %cst_96 = arith.constant dense<0xFF800000> : vector<8xf32>
    %222 = vector.multi_reduction <maximumf>, %221, %cst_96 [1] : vector<8x8xf32> to vector<8xf32>
    %223 = vector.shape_cast %222 : vector<8xf32> to vector<8x1xf32>
    %224 = vector.broadcast %223 : vector<8x1xf32> to vector<8x8xf32>
    %225 = arith.subf %221, %224 : vector<8x8xf32>
    %226 = math.exp %225 : vector<8x8xf32>
    %cst_97 = arith.constant dense<0.000000e+00> : vector<8xf32>
    %227 = vector.multi_reduction <add>, %226, %cst_97 [1] : vector<8x8xf32> to vector<8xf32>
    %228 = vector.shape_cast %227 : vector<8xf32> to vector<8x1xf32>
    %229 = tpu.reciprocal %228 {approx = true} : vector<8x1xf32> -> vector<8x1xf32>
    %230 = vector.broadcast %229 : vector<8x1xf32> to vector<8x8xf32>
    %231 = arith.mulf %226, %230 : vector<8x8xf32>
    %cst_98 = arith.constant dense<0.000000e+00> : vector<8x8xf32>
    %232 = tpu.matmul %231, %216, %cst_98 {dimension_numbers = #tpu.dot_dimension_numbers<[1], [0], [0], [1], [0, 0, 1, 1], [], []>} : vector<8x8xf32>, vector<8x8xf32>, vector<8x8xf32> -> vector<8x8xf32>
    %c0_99 = arith.constant 0 : index
    %c0_100 = arith.constant 0 : index
    %233 = vector.load %arg20[%c0_99, %c0_100] : memref<32x32xf32, #tpu.memory_space<vmem>>, vector<8x32xf32>
    %cst_101 = arith.constant dense<0.000000e+00> : vector<8x32xf32>
    %234 = tpu.matmul %232, %233, %cst_101 {dimension_numbers = #tpu.dot_dimension_numbers<[1], [0], [0], [1], [0, 0, 1, 1], [], []>} : vector<8x8xf32>, vector<8x32xf32>, vector<8x32xf32> -> vector<8x32xf32>
    %235 = arith.addf %213, %234 : vector<8x32xf32>
    %236 = vector.extract_strided_slice %210 {offsets = [0, 8], sizes = [8, 8], strides = [1, 1]} : vector<8x32xf32> to vector<8x8xf32>
    %237 = vector.extract_strided_slice %211 {offsets = [0, 8], sizes = [8, 8], strides = [1, 1]} : vector<8x32xf32> to vector<8x8xf32>
    %238 = vector.extract_strided_slice %212 {offsets = [0, 8], sizes = [8, 8], strides = [1, 1]} : vector<8x32xf32> to vector<8x8xf32>
    %cst_102 = arith.constant dense<0.000000e+00> : vector<8x8xf32>
    %239 = tpu.matmul %236, %237, %cst_102 {dimension_numbers = #tpu.dot_dimension_numbers<[1], [1], [0], [0], [0, 0, 1, 0], [], []>} : vector<8x8xf32>, vector<8x8xf32>, vector<8x8xf32> -> vector<8x8xf32>
    %cst_103 = arith.constant 0.353553385 : f32
    %240 = vector.broadcast %cst_103 : f32 to vector<8x8xf32>
    %241 = arith.mulf %239, %240 : vector<8x8xf32>
    %cst_104 = arith.constant -1.000000e+30 : f32
    %242 = vector.broadcast %cst_104 : f32 to vector<8x8xf32>
    %243 = arith.select %7, %241, %242 : vector<8x8xi1>, vector<8x8xf32>
    %cst_105 = arith.constant dense<0xFF800000> : vector<8xf32>
    %244 = vector.multi_reduction <maximumf>, %243, %cst_105 [1] : vector<8x8xf32> to vector<8xf32>
    %245 = vector.shape_cast %244 : vector<8xf32> to vector<8x1xf32>
    %246 = vector.broadcast %245 : vector<8x1xf32> to vector<8x8xf32>
    %247 = arith.subf %243, %246 : vector<8x8xf32>
    %248 = math.exp %247 : vector<8x8xf32>
    %cst_106 = arith.constant dense<0.000000e+00> : vector<8xf32>
    %249 = vector.multi_reduction <add>, %248, %cst_106 [1] : vector<8x8xf32> to vector<8xf32>
    %250 = vector.shape_cast %249 : vector<8xf32> to vector<8x1xf32>
    %251 = tpu.reciprocal %250 {approx = true} : vector<8x1xf32> -> vector<8x1xf32>
    %252 = vector.broadcast %251 : vector<8x1xf32> to vector<8x8xf32>
    %253 = arith.mulf %248, %252 : vector<8x8xf32>
    %cst_107 = arith.constant dense<0.000000e+00> : vector<8x8xf32>
    %254 = tpu.matmul %253, %238, %cst_107 {dimension_numbers = #tpu.dot_dimension_numbers<[1], [0], [0], [1], [0, 0, 1, 1], [], []>} : vector<8x8xf32>, vector<8x8xf32>, vector<8x8xf32> -> vector<8x8xf32>
    %c8_108 = arith.constant 8 : index
    %c0_109 = arith.constant 0 : index
    %255 = vector.load %arg20[%c8_108, %c0_109] : memref<32x32xf32, #tpu.memory_space<vmem>>, vector<8x32xf32>
    %cst_110 = arith.constant dense<0.000000e+00> : vector<8x32xf32>
    %256 = tpu.matmul %254, %255, %cst_110 {dimension_numbers = #tpu.dot_dimension_numbers<[1], [0], [0], [1], [0, 0, 1, 1], [], []>} : vector<8x8xf32>, vector<8x32xf32>, vector<8x32xf32> -> vector<8x32xf32>
    %257 = arith.addf %235, %256 : vector<8x32xf32>
    %258 = vector.extract_strided_slice %210 {offsets = [0, 16], sizes = [8, 8], strides = [1, 1]} : vector<8x32xf32> to vector<8x8xf32>
    %259 = vector.extract_strided_slice %211 {offsets = [0, 16], sizes = [8, 8], strides = [1, 1]} : vector<8x32xf32> to vector<8x8xf32>
    %260 = vector.extract_strided_slice %212 {offsets = [0, 16], sizes = [8, 8], strides = [1, 1]} : vector<8x32xf32> to vector<8x8xf32>
    %cst_111 = arith.constant dense<0.000000e+00> : vector<8x8xf32>
    %261 = tpu.matmul %258, %259, %cst_111 {dimension_numbers = #tpu.dot_dimension_numbers<[1], [1], [0], [0], [0, 0, 1, 0], [], []>} : vector<8x8xf32>, vector<8x8xf32>, vector<8x8xf32> -> vector<8x8xf32>
    %cst_112 = arith.constant 0.353553385 : f32
    %262 = vector.broadcast %cst_112 : f32 to vector<8x8xf32>
    %263 = arith.mulf %261, %262 : vector<8x8xf32>
    %cst_113 = arith.constant -1.000000e+30 : f32
    %264 = vector.broadcast %cst_113 : f32 to vector<8x8xf32>
    %265 = arith.select %7, %263, %264 : vector<8x8xi1>, vector<8x8xf32>
    %cst_114 = arith.constant dense<0xFF800000> : vector<8xf32>
    %266 = vector.multi_reduction <maximumf>, %265, %cst_114 [1] : vector<8x8xf32> to vector<8xf32>
    %267 = vector.shape_cast %266 : vector<8xf32> to vector<8x1xf32>
    %268 = vector.broadcast %267 : vector<8x1xf32> to vector<8x8xf32>
    %269 = arith.subf %265, %268 : vector<8x8xf32>
    %270 = math.exp %269 : vector<8x8xf32>
    %cst_115 = arith.constant dense<0.000000e+00> : vector<8xf32>
    %271 = vector.multi_reduction <add>, %270, %cst_115 [1] : vector<8x8xf32> to vector<8xf32>
    %272 = vector.shape_cast %271 : vector<8xf32> to vector<8x1xf32>
    %273 = tpu.reciprocal %272 {approx = true} : vector<8x1xf32> -> vector<8x1xf32>
    %274 = vector.broadcast %273 : vector<8x1xf32> to vector<8x8xf32>
    %275 = arith.mulf %270, %274 : vector<8x8xf32>
    %cst_116 = arith.constant dense<0.000000e+00> : vector<8x8xf32>
    %276 = tpu.matmul %275, %260, %cst_116 {dimension_numbers = #tpu.dot_dimension_numbers<[1], [0], [0], [1], [0, 0, 1, 1], [], []>} : vector<8x8xf32>, vector<8x8xf32>, vector<8x8xf32> -> vector<8x8xf32>
    %c16_117 = arith.constant 16 : index
    %c0_118 = arith.constant 0 : index
    %277 = vector.load %arg20[%c16_117, %c0_118] : memref<32x32xf32, #tpu.memory_space<vmem>>, vector<8x32xf32>
    %cst_119 = arith.constant dense<0.000000e+00> : vector<8x32xf32>
    %278 = tpu.matmul %276, %277, %cst_119 {dimension_numbers = #tpu.dot_dimension_numbers<[1], [0], [0], [1], [0, 0, 1, 1], [], []>} : vector<8x8xf32>, vector<8x32xf32>, vector<8x32xf32> -> vector<8x32xf32>
    %279 = arith.addf %257, %278 : vector<8x32xf32>
    %280 = vector.extract_strided_slice %210 {offsets = [0, 24], sizes = [8, 8], strides = [1, 1]} : vector<8x32xf32> to vector<8x8xf32>
    %281 = vector.extract_strided_slice %211 {offsets = [0, 24], sizes = [8, 8], strides = [1, 1]} : vector<8x32xf32> to vector<8x8xf32>
    %282 = vector.extract_strided_slice %212 {offsets = [0, 24], sizes = [8, 8], strides = [1, 1]} : vector<8x32xf32> to vector<8x8xf32>
    %cst_120 = arith.constant dense<0.000000e+00> : vector<8x8xf32>
    %283 = tpu.matmul %280, %281, %cst_120 {dimension_numbers = #tpu.dot_dimension_numbers<[1], [1], [0], [0], [0, 0, 1, 0], [], []>} : vector<8x8xf32>, vector<8x8xf32>, vector<8x8xf32> -> vector<8x8xf32>
    %cst_121 = arith.constant 0.353553385 : f32
    %284 = vector.broadcast %cst_121 : f32 to vector<8x8xf32>
    %285 = arith.mulf %283, %284 : vector<8x8xf32>
    %cst_122 = arith.constant -1.000000e+30 : f32
    %286 = vector.broadcast %cst_122 : f32 to vector<8x8xf32>
    %287 = arith.select %7, %285, %286 : vector<8x8xi1>, vector<8x8xf32>
    %cst_123 = arith.constant dense<0xFF800000> : vector<8xf32>
    %288 = vector.multi_reduction <maximumf>, %287, %cst_123 [1] : vector<8x8xf32> to vector<8xf32>
    %289 = vector.shape_cast %288 : vector<8xf32> to vector<8x1xf32>
    %290 = vector.broadcast %289 : vector<8x1xf32> to vector<8x8xf32>
    %291 = arith.subf %287, %290 : vector<8x8xf32>
    %292 = math.exp %291 : vector<8x8xf32>
    %cst_124 = arith.constant dense<0.000000e+00> : vector<8xf32>
    %293 = vector.multi_reduction <add>, %292, %cst_124 [1] : vector<8x8xf32> to vector<8xf32>
    %294 = vector.shape_cast %293 : vector<8xf32> to vector<8x1xf32>
    %295 = tpu.reciprocal %294 {approx = true} : vector<8x1xf32> -> vector<8x1xf32>
    %296 = vector.broadcast %295 : vector<8x1xf32> to vector<8x8xf32>
    %297 = arith.mulf %292, %296 : vector<8x8xf32>
    %cst_125 = arith.constant dense<0.000000e+00> : vector<8x8xf32>
    %298 = tpu.matmul %297, %282, %cst_125 {dimension_numbers = #tpu.dot_dimension_numbers<[1], [0], [0], [1], [0, 0, 1, 1], [], []>} : vector<8x8xf32>, vector<8x8xf32>, vector<8x8xf32> -> vector<8x8xf32>
    %c24_126 = arith.constant 24 : index
    %c0_127 = arith.constant 0 : index
    %299 = vector.load %arg20[%c24_126, %c0_127] : memref<32x32xf32, #tpu.memory_space<vmem>>, vector<8x32xf32>
    %cst_128 = arith.constant dense<0.000000e+00> : vector<8x32xf32>
    %300 = tpu.matmul %298, %299, %cst_128 {dimension_numbers = #tpu.dot_dimension_numbers<[1], [0], [0], [1], [0, 0, 1, 1], [], []>} : vector<8x8xf32>, vector<8x32xf32>, vector<8x32xf32> -> vector<8x32xf32>
    %301 = arith.addf %279, %300 : vector<8x32xf32>
    %302 = arith.addf %180, %301 : vector<8x32xf32>
    %c0_129 = arith.constant 0 : index
    %c0_130 = arith.constant 0 : index
    %303 = vector.load %arg21[%c0_129, %c0_130] : memref<1x32xf32, #tpu.memory_space<vmem>>, vector<1x32xf32>
    %304 = vector.broadcast %303 : vector<1x32xf32> to vector<8x32xf32>
    %305 = arith.addf %302, %304 : vector<8x32xf32>
    %c0_131 = arith.constant 0 : index
    %c0_132 = arith.constant 0 : index
    %306 = vector.load %arg22[%c0_131, %c0_132] : memref<1x32xf32, #tpu.memory_space<vmem>>, vector<1x32xf32>
    %c0_133 = arith.constant 0 : index
    %c0_134 = arith.constant 0 : index
    %307 = vector.load %arg23[%c0_133, %c0_134] : memref<1x32xf32, #tpu.memory_space<vmem>>, vector<1x32xf32>
    %cst_135 = arith.constant dense<0.000000e+00> : vector<8xf32>
    %308 = vector.multi_reduction <add>, %305, %cst_135 [1] : vector<8x32xf32> to vector<8xf32>
    %309 = vector.shape_cast %308 : vector<8xf32> to vector<8x1xf32>
    %cst_136 = arith.constant 3.200000e+01 : f32
    %310 = vector.broadcast %cst_136 : f32 to vector<8x1xf32>
    %311 = arith.divf %309, %310 : vector<8x1xf32>
    %312 = vector.broadcast %311 : vector<8x1xf32> to vector<8x32xf32>
    %313 = arith.subf %305, %312 : vector<8x32xf32>
    %314 = arith.mulf %313, %313 : vector<8x32xf32>
    %cst_137 = arith.constant dense<0.000000e+00> : vector<8xf32>
    %315 = vector.multi_reduction <add>, %314, %cst_137 [1] : vector<8x32xf32> to vector<8xf32>
    %316 = vector.shape_cast %315 : vector<8xf32> to vector<8x1xf32>
    %cst_138 = arith.constant 3.200000e+01 : f32
    %317 = vector.broadcast %cst_138 : f32 to vector<8x1xf32>
    %318 = arith.divf %316, %317 : vector<8x1xf32>
    %319 = vector.broadcast %311 : vector<8x1xf32> to vector<8x32xf32>
    %320 = arith.subf %305, %319 : vector<8x32xf32>
    %cst_139 = arith.constant 9.99999997E-7 : f32
    %321 = vector.broadcast %cst_139 : f32 to vector<8x1xf32>
    %322 = arith.addf %318, %321 : vector<8x1xf32>
    %323 = math.rsqrt %322 : vector<8x1xf32>
    %324 = vector.broadcast %323 : vector<8x1xf32> to vector<8x32xf32>
    %325 = arith.mulf %320, %324 : vector<8x32xf32>
    %326 = vector.broadcast %306 : vector<1x32xf32> to vector<8x32xf32>
    %327 = arith.mulf %325, %326 : vector<8x32xf32>
    %328 = vector.broadcast %307 : vector<1x32xf32> to vector<8x32xf32>
    %329 = arith.addf %327, %328 : vector<8x32xf32>
    %c0_140 = arith.constant 0 : index
    %c0_141 = arith.constant 0 : index
    %330 = vector.load %arg24[%c0_140, %c0_141] : memref<32x64xf32, #tpu.memory_space<vmem>>, vector<32x64xf32>
    %cst_142 = arith.constant dense<0.000000e+00> : vector<8x64xf32>
    %331 = tpu.matmul %329, %330, %cst_142 {dimension_numbers = #tpu.dot_dimension_numbers<[1], [0], [0], [1], [0, 0, 1, 1], [], []>} : vector<8x32xf32>, vector<32x64xf32>, vector<8x64xf32> -> vector<8x64xf32>
    %c0_143 = arith.constant 0 : index
    %c0_144 = arith.constant 0 : index
    %332 = vector.load %arg25[%c0_143, %c0_144] : memref<1x64xf32, #tpu.memory_space<vmem>>, vector<1x64xf32>
    %333 = vector.broadcast %332 : vector<1x64xf32> to vector<8x64xf32>
    %334 = arith.addf %331, %333 : vector<8x64xf32>
    %335 = arith.mulf %334, %334 : vector<8x64xf32>
    %336 = arith.mulf %334, %335 : vector<8x64xf32>
    %cst_145 = arith.constant 4.471500e-02 : f32
    %337 = vector.broadcast %cst_145 : f32 to vector<8x64xf32>
    %338 = arith.mulf %337, %336 : vector<8x64xf32>
    %339 = arith.addf %334, %338 : vector<8x64xf32>
    %cst_146 = arith.constant 0.797884583 : f32
    %340 = vector.broadcast %cst_146 : f32 to vector<8x64xf32>
    %341 = arith.mulf %340, %339 : vector<8x64xf32>
    %342 = math.tanh %341 : vector<8x64xf32>
    %cst_147 = arith.constant 1.000000e+00 : f32
    %343 = vector.broadcast %cst_147 : f32 to vector<8x64xf32>
    %344 = arith.addf %343, %342 : vector<8x64xf32>
    %cst_148 = arith.constant 5.000000e-01 : f32
    %345 = vector.broadcast %cst_148 : f32 to vector<8x64xf32>
    %346 = arith.mulf %345, %344 : vector<8x64xf32>
    %347 = arith.mulf %334, %346 : vector<8x64xf32>
    %c0_149 = arith.constant 0 : index
    %c0_150 = arith.constant 0 : index
    %348 = vector.load %arg26[%c0_149, %c0_150] : memref<64x32xf32, #tpu.memory_space<vmem>>, vector<64x32xf32>
    %cst_151 = arith.constant dense<0.000000e+00> : vector<8x32xf32>
    %349 = tpu.matmul %347, %348, %cst_151 {dimension_numbers = #tpu.dot_dimension_numbers<[1], [0], [0], [1], [0, 0, 1, 1], [], []>} : vector<8x64xf32>, vector<64x32xf32>, vector<8x32xf32> -> vector<8x32xf32>
    %c0_152 = arith.constant 0 : index
    %c0_153 = arith.constant 0 : index
    %350 = vector.load %arg27[%c0_152, %c0_153] : memref<1x32xf32, #tpu.memory_space<vmem>>, vector<1x32xf32>
    %351 = vector.broadcast %350 : vector<1x32xf32> to vector<8x32xf32>
    %352 = arith.addf %349, %351 : vector<8x32xf32>
    %353 = arith.addf %305, %352 : vector<8x32xf32>
    %c0_154 = arith.constant 0 : index
    %c0_155 = arith.constant 0 : index
    %354 = vector.load %arg28[%c0_154, %c0_155] : memref<1x32xf32, #tpu.memory_space<vmem>>, vector<1x32xf32>
    %c0_156 = arith.constant 0 : index
    %c0_157 = arith.constant 0 : index
    %355 = vector.load %arg29[%c0_156, %c0_157] : memref<1x32xf32, #tpu.memory_space<vmem>>, vector<1x32xf32>
    %cst_158 = arith.constant dense<0.000000e+00> : vector<8xf32>
    %356 = vector.multi_reduction <add>, %353, %cst_158 [1] : vector<8x32xf32> to vector<8xf32>
    %357 = vector.shape_cast %356 : vector<8xf32> to vector<8x1xf32>
    %cst_159 = arith.constant 3.200000e+01 : f32
    %358 = vector.broadcast %cst_159 : f32 to vector<8x1xf32>
    %359 = arith.divf %357, %358 : vector<8x1xf32>
    %360 = vector.broadcast %359 : vector<8x1xf32> to vector<8x32xf32>
    %361 = arith.subf %353, %360 : vector<8x32xf32>
    %362 = arith.mulf %361, %361 : vector<8x32xf32>
    %cst_160 = arith.constant dense<0.000000e+00> : vector<8xf32>
    %363 = vector.multi_reduction <add>, %362, %cst_160 [1] : vector<8x32xf32> to vector<8xf32>
    %364 = vector.shape_cast %363 : vector<8xf32> to vector<8x1xf32>
    %cst_161 = arith.constant 3.200000e+01 : f32
    %365 = vector.broadcast %cst_161 : f32 to vector<8x1xf32>
    %366 = arith.divf %364, %365 : vector<8x1xf32>
    %367 = vector.broadcast %359 : vector<8x1xf32> to vector<8x32xf32>
    %368 = arith.subf %353, %367 : vector<8x32xf32>
    %cst_162 = arith.constant 9.99999997E-7 : f32
    %369 = vector.broadcast %cst_162 : f32 to vector<8x1xf32>
    %370 = arith.addf %366, %369 : vector<8x1xf32>
    %371 = math.rsqrt %370 : vector<8x1xf32>
    %372 = vector.broadcast %371 : vector<8x1xf32> to vector<8x32xf32>
    %373 = arith.mulf %368, %372 : vector<8x32xf32>
    %374 = vector.broadcast %354 : vector<1x32xf32> to vector<8x32xf32>
    %375 = arith.mulf %373, %374 : vector<8x32xf32>
    %376 = vector.broadcast %355 : vector<1x32xf32> to vector<8x32xf32>
    %377 = arith.addf %375, %376 : vector<8x32xf32>
    %c0_163 = arith.constant 0 : index
    %c0_164 = arith.constant 0 : index
    %378 = vector.load %arg30[%c0_163, %c0_164] : memref<32x128xf32, #tpu.memory_space<vmem>>, vector<32x128xf32>
    %cst_165 = arith.constant dense<0.000000e+00> : vector<8x128xf32>
    %379 = tpu.matmul %377, %378, %cst_165 {dimension_numbers = #tpu.dot_dimension_numbers<[1], [0], [0], [1], [0, 0, 1, 1], [], []>} : vector<8x32xf32>, vector<32x128xf32>, vector<8x128xf32> -> vector<8x128xf32>
    %c0_166 = arith.constant 0 : index
    %c0_167 = arith.constant 0 : index
    %380 = vector.load %arg31[%c0_166, %c0_167] : memref<1x128xf32, #tpu.memory_space<vmem>>, vector<1x128xf32>
    %381 = vector.broadcast %380 : vector<1x128xf32> to vector<8x128xf32>
    %382 = arith.addf %379, %381 : vector<8x128xf32>
    %c0_168 = arith.constant 0 : index
    %c0_169 = arith.constant 0 : index
    %383 = vector.load %arg32[%c0_168, %c0_169] : memref<8x128xf32, #tpu.memory_space<vmem>>, vector<8x128xf32>
    tpu.vector_store %arg32[%c0_168, %c0_169], %382 {strides = array<i32>} : memref<8x128xf32, #tpu.memory_space<vmem>>, vector<8x128xf32>,
    return
  }
  func.func @transform_0(%arg0: i32) -> (i32, i32) {
    %c0_i32 = arith.constant 0 : i32
    %c0_i32_0 = arith.constant 0 : i32
    return %arg0, %c0_i32 : i32, i32
  }
  func.func @transform_1(%arg0: i32) -> (i32, i32) {
    %c0_i32 = arith.constant 0 : i32
    %c0_i32_0 = arith.constant 0 : i32
    return %arg0, %c0_i32 : i32, i32
  }
  func.func @transform_2(%arg0: i32) -> (i32, i32) {
    %c0_i32 = arith.constant 0 : i32
    %c0_i32_0 = arith.constant 0 : i32
    %c0_i32_1 = arith.constant 0 : i32
    return %c0_i32, %c0_i32_0 : i32, i32
  }
  func.func @transform_3(%arg0: i32) -> (i32, i32) {
    %c0_i32 = arith.constant 0 : i32
    %c0_i32_0 = arith.constant 0 : i32
    %c0_i32_1 = arith.constant 0 : i32
    return %c0_i32, %c0_i32_0 : i32, i32
  }
  func.func @transform_4(%arg0: i32) -> (i32, i32) {
    %c0_i32 = arith.constant 0 : i32
    %c0_i32_0 = arith.constant 0 : i32
    %c0_i32_1 = arith.constant 0 : i32
    return %c0_i32, %c0_i32_0 : i32, i32
  }
  func.func @transform_5(%arg0: i32) -> (i32, i32) {
    %c0_i32 = arith.constant 0 : i32
    %c0_i32_0 = arith.constant 0 : i32
    %c0_i32_1 = arith.constant 0 : i32
    return %c0_i32, %c0_i32_0 : i32, i32
  }
  func.func @transform_6(%arg0: i32) -> (i32, i32) {
    %c0_i32 = arith.constant 0 : i32
    %c0_i32_0 = arith.constant 0 : i32
    %c0_i32_1 = arith.constant 0 : i32
    return %c0_i32, %c0_i32_0 : i32, i32
  }
  func.func @transform_7(%arg0: i32) -> (i32, i32) {
    %c0_i32 = arith.constant 0 : i32
    %c0_i32_0 = arith.constant 0 : i32
    %c0_i32_1 = arith.constant 0 : i32
    return %c0_i32, %c0_i32_0 : i32, i32
  }
  func.func @transform_8(%arg0: i32) -> (i32, i32) {
    %c0_i32 = arith.constant 0 : i32
    %c0_i32_0 = arith.constant 0 : i32
    %c0_i32_1 = arith.constant 0 : i32
    return %c0_i32, %c0_i32_0 : i32, i32
  }
  func.func @transform_9(%arg0: i32) -> (i32, i32) {
    %c0_i32 = arith.constant 0 : i32
    %c0_i32_0 = arith.constant 0 : i32
    %c0_i32_1 = arith.constant 0 : i32
    return %c0_i32, %c0_i32_0 : i32, i32
  }
  func.func @transform_10(%arg0: i32) -> (i32, i32) {
    %c0_i32 = arith.constant 0 : i32
    %c0_i32_0 = arith.constant 0 : i32
    %c0_i32_1 = arith.constant 0 : i32
    return %c0_i32, %c0_i32_0 : i32, i32
  }
  func.func @transform_11(%arg0: i32) -> (i32, i32) {
    %c0_i32 = arith.constant 0 : i32
    %c0_i32_0 = arith.constant 0 : i32
    %c0_i32_1 = arith.constant 0 : i32
    return %c0_i32, %c0_i32_0 : i32, i32
  }
  func.func @transform_12(%arg0: i32) -> (i32, i32) {
    %c0_i32 = arith.constant 0 : i32
    %c0_i32_0 = arith.constant 0 : i32
    %c0_i32_1 = arith.constant 0 : i32
    return %c0_i32, %c0_i32_0 : i32, i32
  }
  func.func @transform_13(%arg0: i32) -> (i32, i32) {
    %c0_i32 = arith.constant 0 : i32
    %c0_i32_0 = arith.constant 0 : i32
    %c0_i32_1 = arith.constant 0 : i32
    return %c0_i32, %c0_i32_0 : i32, i32
  }
  func.func @transform_14(%arg0: i32) -> (i32, i32) {
    %c0_i32 = arith.constant 0 : i32
    %c0_i32_0 = arith.constant 0 : i32
    %c0_i32_1 = arith.constant 0 : i32
    return %c0_i32, %c0_i32_0 : i32, i32
  }
  func.func @transform_15(%arg0: i32) -> (i32, i32) {
    %c0_i32 = arith.constant 0 : i32
    %c0_i32_0 = arith.constant 0 : i32
    %c0_i32_1 = arith.constant 0 : i32
    return %c0_i32, %c0_i32_0 : i32, i32
  }
  func.func @transform_16(%arg0: i32) -> (i32, i32) {
    %c0_i32 = arith.constant 0 : i32
    %c0_i32_0 = arith.constant 0 : i32
    %c0_i32_1 = arith.constant 0 : i32
    return %c0_i32, %c0_i32_0 : i32, i32
  }
  func.func @transform_17(%arg0: i32) -> (i32, i32) {
    %c0_i32 = arith.constant 0 : i32
    %c0_i32_0 = arith.constant 0 : i32
    %c0_i32_1 = arith.constant 0 : i32
    return %c0_i32, %c0_i32_0 : i32, i32
  }
  func.func @transform_18(%arg0: i32) -> (i32, i32) {
    %c0_i32 = arith.constant 0 : i32
    %c0_i32_0 = arith.constant 0 : i32
    %c0_i32_1 = arith.constant 0 : i32
    return %c0_i32, %c0_i32_0 : i32, i32
  }
  func.func @transform_19(%arg0: i32) -> (i32, i32) {
    %c0_i32 = arith.constant 0 : i32
    %c0_i32_0 = arith.constant 0 : i32
    %c0_i32_1 = arith.constant 0 : i32
    return %c0_i32, %c0_i32_0 : i32, i32
  }
  func.func @transform_20(%arg0: i32) -> (i32, i32) {
    %c0_i32 = arith.constant 0 : i32
    %c0_i32_0 = arith.constant 0 : i32
    %c0_i32_1 = arith.constant 0 : i32
    return %c0_i32, %c0_i32_0 : i32, i32
  }
  func.func @transform_21(%arg0: i32) -> (i32, i32) {
    %c0_i32 = arith.constant 0 : i32
    %c0_i32_0 = arith.constant 0 : i32
    %c0_i32_1 = arith.constant 0 : i32
    return %c0_i32, %c0_i32_0 : i32, i32
  }
  func.func @transform_22(%arg0: i32) -> (i32, i32) {
    %c0_i32 = arith.constant 0 : i32
    %c0_i32_0 = arith.constant 0 : i32
    %c0_i32_1 = arith.constant 0 : i32
    return %c0_i32, %c0_i32_0 : i32, i32
  }
  func.func @transform_23(%arg0: i32) -> (i32, i32) {
    %c0_i32 = arith.constant 0 : i32
    %c0_i32_0 = arith.constant 0 : i32
    %c0_i32_1 = arith.constant 0 : i32
    return %c0_i32, %c0_i32_0 : i32, i32
  }
  func.func @transform_24(%arg0: i32) -> (i32, i32) {
    %c0_i32 = arith.constant 0 : i32
    %c0_i32_0 = arith.constant 0 : i32
    %c0_i32_1 = arith.constant 0 : i32
    return %c0_i32, %c0_i32_0 : i32, i32
  }
  func.func @transform_25(%arg0: i32) -> (i32, i32) {
    %c0_i32 = arith.constant 0 : i32
    %c0_i32_0 = arith.constant 0 : i32
    %c0_i32_1 = arith.constant 0 : i32
    return %c0_i32, %c0_i32_0 : i32, i32
  }
  func.func @transform_26(%arg0: i32) -> (i32, i32) {
    %c0_i32 = arith.constant 0 : i32
    %c0_i32_0 = arith.constant 0 : i32
    %c0_i32_1 = arith.constant 0 : i32
    return %c0_i32, %c0_i32_0 : i32, i32
  }
  func.func @transform_27(%arg0: i32) -> (i32, i32) {
    %c0_i32 = arith.constant 0 : i32
    %c0_i32_0 = arith.constant 0 : i32
    %c0_i32_1 = arith.constant 0 : i32
    return %c0_i32, %c0_i32_0 : i32, i32
  }
  func.func @transform_28(%arg0: i32) -> (i32, i32) {
    %c0_i32 = arith.constant 0 : i32
    %c0_i32_0 = arith.constant 0 : i32
    %c0_i32_1 = arith.constant 0 : i32
    return %c0_i32, %c0_i32_0 : i32, i32
  }
  func.func @transform_29(%arg0: i32) -> (i32, i32) {
    %c0_i32 = arith.constant 0 : i32
    %c0_i32_0 = arith.constant 0 : i32
    %c0_i32_1 = arith.constant 0 : i32
    return %c0_i32, %c0_i32_0 : i32, i32
  }
  func.func @transform_30(%arg0: i32) -> (i32, i32) {
    %c0_i32 = arith.constant 0 : i32
    %c0_i32_0 = arith.constant 0 : i32
    %c0_i32_1 = arith.constant 0 : i32
    return %c0_i32, %c0_i32_0 : i32, i32
  }
  func.func @transform_31(%arg0: i32) -> (i32, i32) {
    %c0_i32 = arith.constant 0 : i32
    %c0_i32_0 = arith.constant 0 : i32
    return %arg0, %c0_i32 : i32, i32
  }
}

</mosaic_0001>

<llo_original>
// kernel: vit_forward.1
$region0: #{vit_forward.1}
  #allocation0 [shape = 'u32[]', space=smem, size = 0x4, offset = 0x4, fixed_abs, tag = 'smem constant byte address 0x4 - core index']
  #allocation1 [shape = 'u32[144,128]{1,0:T(1,128)}', space=vmem, size = 0x12000, scoped, tag = 'internal scratch']
  %s0 = inlined_call_operand.smem [shape: u32[32], index: -1, kind: input, shape index: {}]
  %s1 = sld [smem:[%s0]]
  %s2 = scalar_lea.smem %s0, 1
  %s3 = sld [smem:[%s2]]
  %s4 = scalar_lea.smem %s0, 2
  %s5 = sld [smem:[%s4]]
  %s6 = scalar_lea.smem %s0, 3
  %s7 = sld [smem:[%s6]]
  %s8 = scalar_lea.smem %s0, 4
  %s9 = sld [smem:[%s8]]
  %s10 = scalar_lea.smem %s0, 5
  %s11 = sld [smem:[%s10]]
  %s12 = scalar_lea.smem %s0, 6
  %s13 = sld [smem:[%s12]]
  %s14 = scalar_lea.smem %s0, 7
  %s15 = sld [smem:[%s14]]
  %s16 = scalar_lea.smem %s0, 8
  %s17 = sld [smem:[%s16]]
  %s18 = scalar_lea.smem %s0, 9
  %s19 = sld [smem:[%s18]]
  %s20 = scalar_lea.smem %s0, 10
  %s21 = sld [smem:[%s20]]
  %s22 = scalar_lea.smem %s0, 11
  %s23 = sld [smem:[%s22]]
  %s24 = scalar_lea.smem %s0, 12
  %s25 = sld [smem:[%s24]]
  %s26 = scalar_lea.smem %s0, 13
  %s27 = sld [smem:[%s26]]
  %s28 = scalar_lea.smem %s0, 14
  %s29 = sld [smem:[%s28]]
  %s30 = scalar_lea.smem %s0, 15
  %s31 = sld [smem:[%s30]]
  %s32 = scalar_lea.smem %s0, 16
  %s33 = sld [smem:[%s32]]
  %s34 = scalar_lea.smem %s0, 17
  %s35 = sld [smem:[%s34]]
  %s36 = scalar_lea.smem %s0, 18
  %s37 = sld [smem:[%s36]]
  %s38 = scalar_lea.smem %s0, 19
  %s39 = sld [smem:[%s38]]
  %s40 = scalar_lea.smem %s0, 20
  %s41 = sld [smem:[%s40]]
  %s42 = scalar_lea.smem %s0, 21
  %s43 = sld [smem:[%s42]]
  %s44 = scalar_lea.smem %s0, 22
  %s45 = sld [smem:[%s44]]
  %s46 = scalar_lea.smem %s0, 23
  %s47 = sld [smem:[%s46]]
  %s48 = scalar_lea.smem %s0, 24
  %s49 = sld [smem:[%s48]]
  %s50 = scalar_lea.smem %s0, 25
  %s51 = sld [smem:[%s50]]
  %s52 = scalar_lea.smem %s0, 26
  %s53 = sld [smem:[%s52]]
  %s54 = scalar_lea.smem %s0, 27
  %s55 = sld [smem:[%s54]]
  %s56 = scalar_lea.smem %s0, 28
  %s57 = sld [smem:[%s56]]
  %s58 = scalar_lea.smem %s0, 29
  %s59 = sld [smem:[%s58]]
  %s60 = scalar_lea.smem %s0, 30
  %s61 = sld [smem:[%s60]]
  %s62 = scalar_lea.smem %s0, 31
  %s63 = sld [smem:[%s62]]
  %s64 = sld [smem:[#allocation0]]
  $region157: #{vit_forward.1} parent=0
    _
  %s66 = ssub.s32 1, %s64
  %s67 = scalar_select 0, %s66, %s64
  loop: start=0, step=1, limit=4
  $region2: #{vit_forward.1} parent=0 // loop_pre_header
    _
  $region3: #{vit_forward.1} parent=0 // loop_header
    %s69 = sphi 0, %s73
    %p70 = scmp.ge.s32.totalorder %s69, 4
    %s79 = sphi 0, %s81
    %s82 = sphi 0, %s79
    %s83 = sphi 0, %s82
    %s99 = sphi 0, %s83
    %s105 = sphi 0, %s107
    %s108 = sphi 0, %s105
    %s109 = sphi 0, %s108
    %s125 = sphi 0, %s109
    %s129 = sphi 0, %s129
    %s131 = sphi 0, %s129
    %s132 = sphi 0, %s131
    %s146 = sphi 0, %s132
    %s150 = sphi 0, %s150
    %s152 = sphi 0, %s150
    %s153 = sphi 0, %s152
    %s167 = sphi 0, %s153
    %s171 = sphi 0, %s171
    %s173 = sphi 0, %s171
    %s174 = sphi 0, %s173
    %s188 = sphi 0, %s174
    %s192 = sphi 0, %s192
    %s194 = sphi 0, %s192
    %s195 = sphi 0, %s194
    %s209 = sphi 0, %s195
    %s213 = sphi 0, %s213
    %s215 = sphi 0, %s213
    %s216 = sphi 0, %s215
    %s230 = sphi 0, %s216
    %s234 = sphi 0, %s234
    %s236 = sphi 0, %s234
    %s237 = sphi 0, %s236
    %s251 = sphi 0, %s237
    %s255 = sphi 0, %s255
    %s257 = sphi 0, %s255
    %s258 = sphi 0, %s257
    %s272 = sphi 0, %s258
    %s276 = sphi 0, %s276
    %s278 = sphi 0, %s276
    %s279 = sphi 0, %s278
    %s293 = sphi 0, %s279
    %s297 = sphi 0, %s297
    %s299 = sphi 0, %s297
    %s300 = sphi 0, %s299
    %s314 = sphi 0, %s300
    %s318 = sphi 0, %s318
    %s320 = sphi 0, %s318
    %s321 = sphi 0, %s320
    %s335 = sphi 0, %s321
    %s339 = sphi 0, %s339
    %s341 = sphi 0, %s339
    %s342 = sphi 0, %s341
    %s356 = sphi 0, %s342
    %s360 = sphi 0, %s360
    %s362 = sphi 0, %s360
    %s363 = sphi 0, %s362
    %s377 = sphi 0, %s363
    %s381 = sphi 0, %s381
    %s383 = sphi 0, %s381
    %s384 = sphi 0, %s383
    %s398 = sphi 0, %s384
    %s402 = sphi 0, %s402
    %s404 = sphi 0, %s402
    %s405 = sphi 0, %s404
    %s419 = sphi 0, %s405
    %s423 = sphi 0, %s423
    %s425 = sphi 0, %s423
    %s426 = sphi 0, %s425
    %s440 = sphi 0, %s426
    %s444 = sphi 0, %s444
    %s446 = sphi 0, %s444
    %s447 = sphi 0, %s446
    %s461 = sphi 0, %s447
    %s465 = sphi 0, %s465
    %s467 = sphi 0, %s465
    %s468 = sphi 0, %s467
    %s482 = sphi 0, %s468
    %s486 = sphi 0, %s486
    %s488 = sphi 0, %s486
    %s489 = sphi 0, %s488
    %s503 = sphi 0, %s489
    %s507 = sphi 0, %s507
    %s509 = sphi 0, %s507
    %s510 = sphi 0, %s509
    %s524 = sphi 0, %s510
    %s528 = sphi 0, %s528
    %s530 = sphi 0, %s528
    %s531 = sphi 0, %s530
    %s545 = sphi 0, %s531
    %s549 = sphi 0, %s549
    %s551 = sphi 0, %s549
    %s552 = sphi 0, %s551
    %s566 = sphi 0, %s552
    %s570 = sphi 0, %s570
    %s572 = sphi 0, %s570
    %s573 = sphi 0, %s572
    %s587 = sphi 0, %s573
    %s591 = sphi 0, %s591
    %s593 = sphi 0, %s591
    %s594 = sphi 0, %s593
    %s608 = sphi 0, %s594
    %s612 = sphi 0, %s612
    %s614 = sphi 0, %s612
    %s615 = sphi 0, %s614
    %s629 = sphi 0, %s615
    %s633 = sphi 0, %s633
    %s635 = sphi 0, %s633
    %s636 = sphi 0, %s635
    %s650 = sphi 0, %s636
    %s654 = sphi 0, %s654
    %s656 = sphi 0, %s654
    %s657 = sphi 0, %s656
    %s671 = sphi 0, %s657
    %s675 = sphi 0, %s675
    %s677 = sphi 0, %s675
    %s678 = sphi 0, %s677
    %s692 = sphi 0, %s678
    %s696 = sphi 0, %s696
    %s698 = sphi 0, %s696
    %s699 = sphi 0, %s698
    %s713 = sphi 0, %s699
    %s717 = sphi 0, %s717
    %s719 = sphi 0, %s717
    %s720 = sphi 0, %s719
    %s734 = sphi 0, %s720
    %s740 = sphi 0, %s742
    %s743 = sphi 0, %s740
    %s744 = sphi 0, %s743
    %s760 = sphi 0, %s744
  $region4: #{vit_forward.1} parent=0 // loop_header_branch
    %72 = sbr.rel (%p70) target = $region8
  $region5: #{vit_forward.1} parent=0 // loop_body
    %s74 = ssub.s32 %s69, 1
    %s75 = ssub.s32 %s69, 2
    %s76 = sadd.s32 %s69, 1
    %s77 = ssub.s32 %s69, %s76
    %p78 = scmp.eq.s32.totalorder %s77, 0
    %s80 = sadd.s32 %s79, 1
    %s81 = scalar_select %p78, %s79, %s80
    %p84 = pneg %p78
    %p85 = scmp.eq.s32.totalorder %s69, 1
    %p86 = por %p84, %p85
    %p87 = scmp.ne.s32.totalorder %s79, %s82
    %p88 = scmp.eq.s32.totalorder %s69, 0
    %p89 = por %p87, %p88
    %p90 = scmp.ne.s32.totalorder %s79, %s82
    %p91 = scmp.eq.s32.totalorder %s74, 1
    %p92 = por %p90, %p91
    %p93 = scmp.ne.s32.totalorder %s82, %s83
    %p94 = scmp.eq.s32.totalorder %s74, 0
    %p95 = por %p93, %p94
    %p96 = scmp.ne.s32.totalorder %s82, %s83
    %p97 = scmp.eq.s32.totalorder %s75, 1
    %p98 = por %p96, %p97
    %p100 = scmp.ne.s32.totalorder %s83, %s99
    %p101 = scmp.eq.s32.totalorder %s75, 0
    %p102 = por %p100, %p101
    %s103 = ssub.s32 %s69, %s76
    %p104 = scmp.eq.s32.totalorder %s103, 0
    %s106 = sadd.s32 %s105, 1
    %s107 = scalar_select %p104, %s105, %s106
    %p110 = pneg %p104
    %p111 = scmp.eq.s32.totalorder %s69, 1
    %p112 = por %p110, %p111
    %p113 = scmp.ne.s32.totalorder %s105, %s108
    %p114 = scmp.eq.s32.totalorder %s69, 0
    %p115 = por %p113, %p114
    %p116 = scmp.ne.s32.totalorder %s105, %s108
    %p117 = scmp.eq.s32.totalorder %s74, 1
    %p118 = por %p116, %p117
    %p119 = scmp.ne.s32.totalorder %s108, %s109
    %p120 = scmp.eq.s32.totalorder %s74, 0
    %p121 = por %p119, %p120
    %p122 = scmp.ne.s32.totalorder %s108, %s109
    %p123 = scmp.eq.s32.totalorder %s75, 1
    %p124 = por %p122, %p123
    %p126 = scmp.ne.s32.totalorder %s109, %s125
    %p127 = scmp.eq.s32.totalorder %s75, 0
    %p128 = por %p126, %p127
    %s130 = sadd.s32 %s129, 1
    %p133 = scmp.eq.s32.totalorder %s69, 1
    %p134 = scmp.ne.s32.totalorder %s129, %s131
    %p135 = scmp.eq.s32.totalorder %s69, 0
    %p136 = por %p134, %p135
    %p137 = scmp.ne.s32.totalorder %s129, %s131
    %p138 = scmp.eq.s32.totalorder %s74, 1
    %p139 = por %p137, %p138
    %p140 = scmp.ne.s32.totalorder %s131, %s132
    %p141 = scmp.eq.s32.totalorder %s74, 0
    %p142 = por %p140, %p141
    %p143 = scmp.ne.s32.totalorder %s131, %s132
    %p144 = scmp.eq.s32.totalorder %s75, 1
    %p145 = por %p143, %p144
    %p147 = scmp.ne.s32.totalorder %s132, %s146
    %p148 = scmp.eq.s32.totalorder %s75, 0
    %p149 = por %p147, %p148
    %s151 = sadd.s32 %s150, 1
    %p154 = scmp.eq.s32.totalorder %s69, 1
    %p155 = scmp.ne.s32.totalorder %s150, %s152
    %p156 = scmp.eq.s32.totalorder %s69, 0
    %p157 = por %p155, %p156
    %p158 = scmp.ne.s32.totalorder %s150, %s152
    %p159 = scmp.eq.s32.totalorder %s74, 1
    %p160 = por %p158, %p159
    %p161 = scmp.ne.s32.totalorder %s152, %s153
    %p162 = scmp.eq.s32.totalorder %s74, 0
    %p163 = por %p161, %p162
    %p164 = scmp.ne.s32.totalorder %s152, %s153
    %p165 = scmp.eq.s32.totalorder %s75, 1
    %p166 = por %p164, %p165
    %p168 = scmp.ne.s32.totalorder %s153, %s167
    %p169 = scmp.eq.s32.totalorder %s75, 0
    %p170 = por %p168, %p169
    %s172 = sadd.s32 %s171, 1
    %p175 = scmp.eq.s32.totalorder %s69, 1
    %p176 = scmp.ne.s32.totalorder %s171, %s173
    %p177 = scmp.eq.s32.totalorder %s69, 0
    %p178 = por %p176, %p177
    %p179 = scmp.ne.s32.totalorder %s171, %s173
    %p180 = scmp.eq.s32.totalorder %s74, 1
    %p181 = por %p179, %p180
    %p182 = scmp.ne.s32.totalorder %s173, %s174
    %p183 = scmp.eq.s32.totalorder %s74, 0
    %p184 = por %p182, %p183
    %p185 = scmp.ne.s32.totalorder %s173, %s174
    %p186 = scmp.eq.s32.totalorder %s75, 1
    %p187 = por %p185, %p186
    %p189 = scmp.ne.s32.totalorder %s174, %s188
    %p190 = scmp.eq.s32.totalorder %s75, 0
    %p191 = por %p189, %p190
    %s193 = sadd.s32 %s192, 1
    %p196 = scmp.eq.s32.totalorder %s69, 1
    %p197 = scmp.ne.s32.totalorder %s192, %s194
    %p198 = scmp.eq.s32.totalorder %s69, 0
    %p199 = por %p197, %p198
    %p200 = scmp.ne.s32.totalorder %s192, %s194
    %p201 = scmp.eq.s32.totalorder %s74, 1
    %p202 = por %p200, %p201
    %p203 = scmp.ne.s32.totalorder %s194, %s195
    %p204 = scmp.eq.s32.totalorder %s74, 0
    %p205 = por %p203, %p204
    %p206 = scmp.ne.s32.totalorder %s194, %s195
    %p207 = scmp.eq.s32.totalorder %s75, 1
    %p208 = por %p206, %p207
    %p210 = scmp.ne.s32.totalorder %s195, %s209
    %p211 = scmp.eq.s32.totalorder %s75, 0
    %p212 = por %p210, %p211
    %s214 = sadd.s32 %s213, 1
    %p217 = scmp.eq.s32.totalorder %s69, 1
    %p218 = scmp.ne.s32.totalorder %s213, %s215
    %p219 = scmp.eq.s32.totalorder %s69, 0
    %p220 = por %p218, %p219
    %p221 = scmp.ne.s32.totalorder %s213, %s215
    %p222 = scmp.eq.s32.totalorder %s74, 1
    %p223 = por %p221, %p222
    %p224 = scmp.ne.s32.totalorder %s215, %s216
    %p225 = scmp.eq.s32.totalorder %s74, 0
    %p226 = por %p224, %p225
    %p227 = scmp.ne.s32.totalorder %s215, %s216
    %p228 = scmp.eq.s32.totalorder %s75, 1
    %p229 = por %p227, %p228
    %p231 = scmp.ne.s32.totalorder %s216, %s230
    %p232 = scmp.eq.s32.totalorder %s75, 0
    %p233 = por %p231, %p232
    %s235 = sadd.s32 %s234, 1
    %p238 = scmp.eq.s32.totalorder %s69, 1
    %p239 = scmp.ne.s32.totalorder %s234, %s236
    %p240 = scmp.eq.s32.totalorder %s69, 0
    %p241 = por %p239, %p240
    %p242 = scmp.ne.s32.totalorder %s234, %s236
    %p243 = scmp.eq.s32.totalorder %s74, 1
    %p244 = por %p242, %p243
    %p245 = scmp.ne.s32.totalorder %s236, %s237
    %p246 = scmp.eq.s32.totalorder %s74, 0
    %p247 = por %p245, %p246
    %p248 = scmp.ne.s32.totalorder %s236, %s237
    %p249 = scmp.eq.s32.totalorder %s75, 1
    %p250 = por %p248, %p249
    %p252 = scmp.ne.s32.totalorder %s237, %s251
    %p253 = scmp.eq.s32.totalorder %s75, 0
    %p254 = por %p252, %p253
    %s256 = sadd.s32 %s255, 1
    %p259 = scmp.eq.s32.totalorder %s69, 1
    %p260 = scmp.ne.s32.totalorder %s255, %s257
    %p261 = scmp.eq.s32.totalorder %s69, 0
    %p262 = por %p260, %p261
    %p263 = scmp.ne.s32.totalorder %s255, %s257
    %p264 = scmp.eq.s32.totalorder %s74, 1
    %p265 = por %p263, %p264
    %p266 = scmp.ne.s32.totalorder %s257, %s258
    %p267 = scmp.eq.s32.totalorder %s74, 0
    %p268 = por %p266, %p267
    %p269 = scmp.ne.s32.totalorder %s257, %s258
    %p270 = scmp.eq.s32.totalorder %s75, 1
    %p271 = por %p269, %p270
    %p273 = scmp.ne.s32.totalorder %s258, %s272
    %p274 = scmp.eq.s32.totalorder %s75, 0
    %p275 = por %p273, %p274
    %s277 = sadd.s32 %s276, 1
    %p280 = scmp.eq.s32.totalorder %s69, 1
    %p281 = scmp.ne.s32.totalorder %s276, %s278
    %p282 = scmp.eq.s32.totalorder %s69, 0
    %p283 = por %p281, %p282
    %p284 = scmp.ne.s32.totalorder %s276, %s278
    %p285 = scmp.eq.s32.totalorder %s74, 1
    %p286 = por %p284, %p285
    %p287 = scmp.ne.s32.totalorder %s278, %s279
    %p288 = scmp.eq.s32.totalorder %s74, 0
    %p289 = por %p287, %p288
    %p290 = scmp.ne.s32.totalorder %s278, %s279
    %p291 = scmp.eq.s32.totalorder %s75, 1
    %p292 = por %p290, %p291
    %p294 = scmp.ne.s32.totalorder %s279, %s293
    %p295 = scmp.eq.s32.totalorder %s75, 0
    %p296 = por %p294, %p295
    %s298 = sadd.s32 %s297, 1
    %p301 = scmp.eq.s32.totalorder %s69, 1
    %p302 = scmp.ne.s32.totalorder %s297, %s299
    %p303 = scmp.eq.s32.totalorder %s69, 0
    %p304 = por %p302, %p303
    %p305 = scmp.ne.s32.totalorder %s297, %s299
    %p306 = scmp.eq.s32.totalorder %s74, 1
    %p307 = por %p305, %p306
    %p308 = scmp.ne.s32.totalorder %s299, %s300
    %p309 = scmp.eq.s32.totalorder %s74, 0
    %p310 = por %p308, %p309
    %p311 = scmp.ne.s32.totalorder %s299, %s300
    %p312 = scmp.eq.s32.totalorder %s75, 1
    %p313 = por %p311, %p312
    %p315 = scmp.ne.s32.totalorder %s300, %s314
    %p316 = scmp.eq.s32.totalorder %s75, 0
    %p317 = por %p315, %p316
    %s319 = sadd.s32 %s318, 1
    %p322 = scmp.eq.s32.totalorder %s69, 1
    %p323 = scmp.ne.s32.totalorder %s318, %s320
    %p324 = scmp.eq.s32.totalorder %s69, 0
    %p325 = por %p323, %p324
    %p326 = scmp.ne.s32.totalorder %s318, %s320
    %p327 = scmp.eq.s32.totalorder %s74, 1
    %p328 = por %p326, %p327
    %p329 = scmp.ne.s32.totalorder %s320, %s321
    %p330 = scmp.eq.s32.totalorder %s74, 0
    %p331 = por %p329, %p330
    %p332 = scmp.ne.s32.totalorder %s320, %s321
    %p333 = scmp.eq.s32.totalorder %s75, 1
    %p334 = por %p332, %p333
    %p336 = scmp.ne.s32.totalorder %s321, %s335
    %p337 = scmp.eq.s32.totalorder %s75, 0
    %p338 = por %p336, %p337
    %s340 = sadd.s32 %s339, 1
    %p343 = scmp.eq.s32.totalorder %s69, 1
    %p344 = scmp.ne.s32.totalorder %s339, %s341
    %p345 = scmp.eq.s32.totalorder %s69, 0
    %p346 = por %p344, %p345
    %p347 = scmp.ne.s32.totalorder %s339, %s341
    %p348 = scmp.eq.s32.totalorder %s74, 1
    %p349 = por %p347, %p348
    %p350 = scmp.ne.s32.totalorder %s341, %s342
    %p351 = scmp.eq.s32.totalorder %s74, 0
    %p352 = por %p350, %p351
    %p353 = scmp.ne.s32.totalorder %s341, %s342
    %p354 = scmp.eq.s32.totalorder %s75, 1
    %p355 = por %p353, %p354
    %p357 = scmp.ne.s32.totalorder %s342, %s356
    %p358 = scmp.eq.s32.totalorder %s75, 0
    %p359 = por %p357, %p358
    %s361 = sadd.s32 %s360, 1
    %p364 = scmp.eq.s32.totalorder %s69, 1
    %p365 = scmp.ne.s32.totalorder %s360, %s362
    %p366 = scmp.eq.s32.totalorder %s69, 0
    %p367 = por %p365, %p366
    %p368 = scmp.ne.s32.totalorder %s360, %s362
    %p369 = scmp.eq.s32.totalorder %s74, 1
    %p370 = por %p368, %p369
    %p371 = scmp.ne.s32.totalorder %s362, %s363
    %p372 = scmp.eq.s32.totalorder %s74, 0
    %p373 = por %p371, %p372
    %p374 = scmp.ne.s32.totalorder %s362, %s363
    %p375 = scmp.eq.s32.totalorder %s75, 1
    %p376 = por %p374, %p375
    %p378 = scmp.ne.s32.totalorder %s363, %s377
    %p379 = scmp.eq.s32.totalorder %s75, 0
    %p380 = por %p378, %p379
    %s382 = sadd.s32 %s381, 1
    %p385 = scmp.eq.s32.totalorder %s69, 1
    %p386 = scmp.ne.s32.totalorder %s381, %s383
    %p387 = scmp.eq.s32.totalorder %s69, 0
    %p388 = por %p386, %p387
    %p389 = scmp.ne.s32.totalorder %s381, %s383
    %p390 = scmp.eq.s32.totalorder %s74, 1
    %p391 = por %p389, %p390
    %p392 = scmp.ne.s32.totalorder %s383, %s384
    %p393 = scmp.eq.s32.totalorder %s74, 0
    %p394 = por %p392, %p393
    %p395 = scmp.ne.s32.totalorder %s383, %s384
    %p396 = scmp.eq.s32.totalorder %s75, 1
    %p397 = por %p395, %p396
    %p399 = scmp.ne.s32.totalorder %s384, %s398
    %p400 = scmp.eq.s32.totalorder %s75, 0
    %p401 = por %p399, %p400
    %s403 = sadd.s32 %s402, 1
    %p406 = scmp.eq.s32.totalorder %s69, 1
    %p407 = scmp.ne.s32.totalorder %s402, %s404
    %p408 = scmp.eq.s32.totalorder %s69, 0
    %p409 = por %p407, %p408
    %p410 = scmp.ne.s32.totalorder %s402, %s404
    %p411 = scmp.eq.s32.totalorder %s74, 1
    %p412 = por %p410, %p411
    %p413 = scmp.ne.s32.totalorder %s404, %s405
    %p414 = scmp.eq.s32.totalorder %s74, 0
    %p415 = por %p413, %p414
    %p416 = scmp.ne.s32.totalorder %s404, %s405
    %p417 = scmp.eq.s32.totalorder %s75, 1
    %p418 = por %p416, %p417
    %p420 = scmp.ne.s32.totalorder %s405, %s419
    %p421 = scmp.eq.s32.totalorder %s75, 0
    %p422 = por %p420, %p421
    %s424 = sadd.s32 %s423, 1
    %p427 = scmp.eq.s32.totalorder %s69, 1
    %p428 = scmp.ne.s32.totalorder %s423, %s425
    %p429 = scmp.eq.s32.totalorder %s69, 0
    %p430 = por %p428, %p429
    %p431 = scmp.ne.s32.totalorder %s423, %s425
    %p432 = scmp.eq.s32.totalorder %s74, 1
    %p433 = por %p431, %p432
    %p434 = scmp.ne.s32.totalorder %s425, %s426
    %p435 = scmp.eq.s32.totalorder %s74, 0
    %p436 = por %p434, %p435
    %p437 = scmp.ne.s32.totalorder %s425, %s426
    %p438 = scmp.eq.s32.totalorder %s75, 1
    %p439 = por %p437, %p438
    %p441 = scmp.ne.s32.totalorder %s426, %s440
    %p442 = scmp.eq.s32.totalorder %s75, 0
    %p443 = por %p441, %p442
    %s445 = sadd.s32 %s444, 1
    %p448 = scmp.eq.s32.totalorder %s69, 1
    %p449 = scmp.ne.s32.totalorder %s444, %s446
    %p450 = scmp.eq.s32.totalorder %s69, 0
    %p451 = por %p449, %p450
    %p452 = scmp.ne.s32.totalorder %s444, %s446
    %p453 = scmp.eq.s32.totalorder %s74, 1
    %p454 = por %p452, %p453
    %p455 = scmp.ne.s32.totalorder %s446, %s447
    %p456 = scmp.eq.s32.totalorder %s74, 0
    %p457 = por %p455, %p456
    %p458 = scmp.ne.s32.totalorder %s446, %s447
    %p459 = scmp.eq.s32.totalorder %s75, 1
    %p460 = por %p458, %p459
    %p462 = scmp.ne.s32.totalorder %s447, %s461
    %p463 = scmp.eq.s32.totalorder %s75, 0
    %p464 = por %p462, %p463
    %s466 = sadd.s32 %s465, 1
    %p469 = scmp.eq.s32.totalorder %s69, 1
    %p470 = scmp.ne.s32.totalorder %s465, %s467
    %p471 = scmp.eq.s32.totalorder %s69, 0
    %p472 = por %p470, %p471
    %p473 = scmp.ne.s32.totalorder %s465, %s467
    %p474 = scmp.eq.s32.totalorder %s74, 1
    %p475 = por %p473, %p474
    %p476 = scmp.ne.s32.totalorder %s467, %s468
    %p477 = scmp.eq.s32.totalorder %s74, 0
    %p478 = por %p476, %p477
    %p479 = scmp.ne.s32.totalorder %s467, %s468
    %p480 = scmp.eq.s32.totalorder %s75, 1
    %p481 = por %p479, %p480
    %p483 = scmp.ne.s32.totalorder %s468, %s482
    %p484 = scmp.eq.s32.totalorder %s75, 0
    %p485 = por %p483, %p484
    %s487 = sadd.s32 %s486, 1
    %p490 = scmp.eq.s32.totalorder %s69, 1
    %p491 = scmp.ne.s32.totalorder %s486, %s488
    %p492 = scmp.eq.s32.totalorder %s69, 0
    %p493 = por %p491, %p492
    %p494 = scmp.ne.s32.totalorder %s486, %s488
    %p495 = scmp.eq.s32.totalorder %s74, 1
    %p496 = por %p494, %p495
    %p497 = scmp.ne.s32.totalorder %s488, %s489
    %p498 = scmp.eq.s32.totalorder %s74, 0
    %p499 = por %p497, %p498
    %p500 = scmp.ne.s32.totalorder %s488, %s489
    %p501 = scmp.eq.s32.totalorder %s75, 1
    %p502 = por %p500, %p501
    %p504 = scmp.ne.s32.totalorder %s489, %s503
    %p505 = scmp.eq.s32.totalorder %s75, 0
    %p506 = por %p504, %p505
    %s508 = sadd.s32 %s507, 1
    %p511 = scmp.eq.s32.totalorder %s69, 1
    %p512 = scmp.ne.s32.totalorder %s507, %s509
    %p513 = scmp.eq.s32.totalorder %s69, 0
    %p514 = por %p512, %p513
    %p515 = scmp.ne.s32.totalorder %s507, %s509
    %p516 = scmp.eq.s32.totalorder %s74, 1
    %p517 = por %p515, %p516
    %p518 = scmp.ne.s32.totalorder %s509, %s510
    %p519 = scmp.eq.s32.totalorder %s74, 0
    %p520 = por %p518, %p519
    %p521 = scmp.ne.s32.totalorder %s509, %s510
    %p522 = scmp.eq.s32.totalorder %s75, 1
    %p523 = por %p521, %p522
    %p525 = scmp.ne.s32.totalorder %s510, %s524
    %p526 = scmp.eq.s32.totalorder %s75, 0
    %p527 = por %p525, %p526
    %s529 = sadd.s32 %s528, 1
    %p532 = scmp.eq.s32.totalorder %s69, 1
    %p533 = scmp.ne.s32.totalorder %s528, %s530
    %p534 = scmp.eq.s32.totalorder %s69, 0
    %p535 = por %p533, %p534
    %p536 = scmp.ne.s32.totalorder %s528, %s530
    %p537 = scmp.eq.s32.totalorder %s74, 1
    %p538 = por %p536, %p537
    %p539 = scmp.ne.s32.totalorder %s530, %s531
    %p540 = scmp.eq.s32.totalorder %s74, 0
    %p541 = por %p539, %p540
    %p542 = scmp.ne.s32.totalorder %s530, %s531
    %p543 = scmp.eq.s32.totalorder %s75, 1
    %p544 = por %p542, %p543
    %p546 = scmp.ne.s32.totalorder %s531, %s545
    %p547 = scmp.eq.s32.totalorder %s75, 0
    %p548 = por %p546, %p547
    %s550 = sadd.s32 %s549, 1
    %p553 = scmp.eq.s32.totalorder %s69, 1
    %p554 = scmp.ne.s32.totalorder %s549, %s551
    %p555 = scmp.eq.s32.totalorder %s69, 0
    %p556 = por %p554, %p555
    %p557 = scmp.ne.s32.totalorder %s549, %s551
    %p558 = scmp.eq.s32.totalorder %s74, 1
    %p559 = por %p557, %p558
    %p560 = scmp.ne.s32.totalorder %s551, %s552
    %p561 = scmp.eq.s32.totalorder %s74, 0
    %p562 = por %p560, %p561
    %p563 = scmp.ne.s32.totalorder %s551, %s552
    %p564 = scmp.eq.s32.totalorder %s75, 1
    %p565 = por %p563, %p564
    %p567 = scmp.ne.s32.totalorder %s552, %s566
    %p568 = scmp.eq.s32.totalorder %s75, 0
    %p569 = por %p567, %p568
    %s571 = sadd.s32 %s570, 1
    %p574 = scmp.eq.s32.totalorder %s69, 1
    %p575 = scmp.ne.s32.totalorder %s570, %s572
    %p576 = scmp.eq.s32.totalorder %s69, 0
    %p577 = por %p575, %p576
    %p578 = scmp.ne.s32.totalorder %s570, %s572
    %p579 = scmp.eq.s32.totalorder %s74, 1
    %p580 = por %p578, %p579
    %p581 = scmp.ne.s32.totalorder %s572, %s573
    %p582 = scmp.eq.s32.totalorder %s74, 0
    %p583 = por %p581, %p582
    %p584 = scmp.ne.s32.totalorder %s572, %s573
    %p585 = scmp.eq.s32.totalorder %s75, 1
    %p586 = por %p584, %p585
    %p588 = scmp.ne.s32.totalorder %s573, %s587
    %p589 = scmp.eq.s32.totalorder %s75, 0
    %p590 = por %p588, %p589
    %s592 = sadd.s32 %s591, 1
    %p595 = scmp.eq.s32.totalorder %s69, 1
    %p596 = scmp.ne.s32.totalorder %s591, %s593
    %p597 = scmp.eq.s32.totalorder %s69, 0
    %p598 = por %p596, %p597
    %p599 = scmp.ne.s32.totalorder %s591, %s593
    %p600 = scmp.eq.s32.totalorder %s74, 1
    %p601 = por %p599, %p600
    %p602 = scmp.ne.s32.totalorder %s593, %s594
    %p603 = scmp.eq.s32.totalorder %s74, 0
    %p604 = por %p602, %p603
    %p605 = scmp.ne.s32.totalorder %s593, %s594
    %p606 = scmp.eq.s32.totalorder %s75, 1
    %p607 = por %p605, %p606
    %p609 = scmp.ne.s32.totalorder %s594, %s608
    %p610 = scmp.eq.s32.totalorder %s75, 0
    %p611 = por %p609, %p610
    %s613 = sadd.s32 %s612, 1
    %p616 = scmp.eq.s32.totalorder %s69, 1
    %p617 = scmp.ne.s32.totalorder %s612, %s614
    %p618 = scmp.eq.s32.totalorder %s69, 0
    %p619 = por %p617, %p618
    %p620 = scmp.ne.s32.totalorder %s612, %s614
    %p621 = scmp.eq.s32.totalorder %s74, 1
    %p622 = por %p620, %p621
    %p623 = scmp.ne.s32.totalorder %s614, %s615
    %p624 = scmp.eq.s32.totalorder %s74, 0
    %p625 = por %p623, %p624
    %p626 = scmp.ne.s32.totalorder %s614, %s615
    %p627 = scmp.eq.s32.totalorder %s75, 1
    %p628 = por %p626, %p627
    %p630 = scmp.ne.s32.totalorder %s615, %s629
    %p631 = scmp.eq.s32.totalorder %s75, 0
    %p632 = por %p630, %p631
    %s634 = sadd.s32 %s633, 1
    %p637 = scmp.eq.s32.totalorder %s69, 1
    %p638 = scmp.ne.s32.totalorder %s633, %s635
    %p639 = scmp.eq.s32.totalorder %s69, 0
    %p640 = por %p638, %p639
    %p641 = scmp.ne.s32.totalorder %s633, %s635
    %p642 = scmp.eq.s32.totalorder %s74, 1
    %p643 = por %p641, %p642
    %p644 = scmp.ne.s32.totalorder %s635, %s636
    %p645 = scmp.eq.s32.totalorder %s74, 0
    %p646 = por %p644, %p645
    %p647 = scmp.ne.s32.totalorder %s635, %s636
    %p648 = scmp.eq.s32.totalorder %s75, 1
    %p649 = por %p647, %p648
    %p651 = scmp.ne.s32.totalorder %s636, %s650
    %p652 = scmp.eq.s32.totalorder %s75, 0
    %p653 = por %p651, %p652
    %s655 = sadd.s32 %s654, 1
    %p658 = scmp.eq.s32.totalorder %s69, 1
    %p659 = scmp.ne.s32.totalorder %s654, %s656
    %p660 = scmp.eq.s32.totalorder %s69, 0
    %p661 = por %p659, %p660
    %p662 = scmp.ne.s32.totalorder %s654, %s656
    %p663 = scmp.eq.s32.totalorder %s74, 1
    %p664 = por %p662, %p663
    %p665 = scmp.ne.s32.totalorder %s656, %s657
    %p666 = scmp.eq.s32.totalorder %s74, 0
    %p667 = por %p665, %p666
    %p668 = scmp.ne.s32.totalorder %s656, %s657
    %p669 = scmp.eq.s32.totalorder %s75, 1
    %p670 = por %p668, %p669
    %p672 = scmp.ne.s32.totalorder %s657, %s671
    %p673 = scmp.eq.s32.totalorder %s75, 0
    %p674 = por %p672, %p673
    %s676 = sadd.s32 %s675, 1
    %p679 = scmp.eq.s32.totalorder %s69, 1
    %p680 = scmp.ne.s32.totalorder %s675, %s677
    %p681 = scmp.eq.s32.totalorder %s69, 0
    %p682 = por %p680, %p681
    %p683 = scmp.ne.s32.totalorder %s675, %s677
    %p684 = scmp.eq.s32.totalorder %s74, 1
    %p685 = por %p683, %p684
    %p686 = scmp.ne.s32.totalorder %s677, %s678
    %p687 = scmp.eq.s32.totalorder %s74, 0
    %p688 = por %p686, %p687
    %p689 = scmp.ne.s32.totalorder %s677, %s678
    %p690 = scmp.eq.s32.totalorder %s75, 1
    %p691 = por %p689, %p690
    %p693 = scmp.ne.s32.totalorder %s678, %s692
    %p694 = scmp.eq.s32.totalorder %s75, 0
    %p695 = por %p693, %p694
    %s697 = sadd.s32 %s696, 1
    %p700 = scmp.eq.s32.totalorder %s69, 1
    %p701 = scmp.ne.s32.totalorder %s696, %s698
    %p702 = scmp.eq.s32.totalorder %s69, 0
    %p703 = por %p701, %p702
    %p704 = scmp.ne.s32.totalorder %s696, %s698
    %p705 = scmp.eq.s32.totalorder %s74, 1
    %p706 = por %p704, %p705
    %p707 = scmp.ne.s32.totalorder %s698, %s699
    %p708 = scmp.eq.s32.totalorder %s74, 0
    %p709 = por %p707, %p708
    %p710 = scmp.ne.s32.totalorder %s698, %s699
    %p711 = scmp.eq.s32.totalorder %s75, 1
    %p712 = por %p710, %p711
    %p714 = scmp.ne.s32.totalorder %s699, %s713
    %p715 = scmp.eq.s32.totalorder %s75, 0
    %p716 = por %p714, %p715
    %s718 = sadd.s32 %s717, 1
    %p721 = scmp.eq.s32.totalorder %s69, 1
    %p722 = scmp.ne.s32.totalorder %s717, %s719
    %p723 = scmp.eq.s32.totalorder %s69, 0
    %p724 = por %p722, %p723
    %p725 = scmp.ne.s32.totalorder %s717, %s719
    %p726 = scmp.eq.s32.totalorder %s74, 1
    %p727 = por %p725, %p726
    %p728 = scmp.ne.s32.totalorder %s719, %s720
    %p729 = scmp.eq.s32.totalorder %s74, 0
    %p730 = por %p728, %p729
    %p731 = scmp.ne.s32.totalorder %s719, %s720
    %p732 = scmp.eq.s32.totalorder %s75, 1
    %p733 = por %p731, %p732
    %p735 = scmp.ne.s32.totalorder %s720, %s734
    %p736 = scmp.eq.s32.totalorder %s75, 0
    %p737 = por %p735, %p736
    %s738 = ssub.s32 %s69, %s76
    %p739 = scmp.eq.s32.totalorder %s738, 0
    %s741 = sadd.s32 %s740, 1
    %s742 = scalar_select %p739, %s740, %s741
    %p745 = pneg %p739
    %p746 = scmp.eq.s32.totalorder %s69, 1
    %p747 = por %p745, %p746
    %p748 = scmp.ne.s32.totalorder %s740, %s743
    %p749 = scmp.eq.s32.totalorder %s69, 0
    %p750 = por %p748, %p749
    %p751 = scmp.ne.s32.totalorder %s740, %s743
    %p752 = scmp.eq.s32.totalorder %s74, 1
    %p753 = por %p751, %p752
    %p754 = scmp.ne.s32.totalorder %s743, %s744
    %p755 = scmp.eq.s32.totalorder %s74, 0
    %p756 = por %p754, %p755
    %p757 = scmp.ne.s32.totalorder %s743, %s744
    %p758 = scmp.eq.s32.totalorder %s75, 1
    %p759 = por %p757, %p758
    %p761 = scmp.ne.s32.totalorder %s744, %s760
    %p762 = scmp.eq.s32.totalorder %s75, 0
    %p763 = por %p761, %p762
    %p764 = scmp.le.s32.totalorder 1, %s69
    %p765 = scmp.lt.s32.totalorder %s69, 3
    %p766 = pnand %p764, %p765
    %p767 = pneg %p766
    // Predicated region
    $region9: #{vit_forward.1} parent=5 // pred_check
      _
    $region10: #{vit_forward.1} parent=5 // pred_check_branch
      %769 = sbr.rel (%p766) target = $region12
    $region11: #{vit_forward.1} parent=5 // pred_region
      %s770 = ssub.s32 %s69, 1
      // Predicated region
      $region13: #{vit_forward.1} parent=11 // pred_check
        %p771 = pneg %p142
      $region14: #{vit_forward.1} parent=11 // pred_check_branch
        %773 = sbr.rel (%p771) target = $region16
      $region15: #{vit_forward.1} parent=11 // pred_region
        _
      $region16: #{vit_forward.1} parent=11 // pred_fallthru
        _
      // Predicated region
      $region17: #{vit_forward.1} parent=11 // pred_check
        %p774 = pneg %p163
      $region18: #{vit_forward.1} parent=11 // pred_check_branch
        %776 = sbr.rel (%p774) target = $region20
      $region19: #{vit_forward.1} parent=11 // pred_region
        _
      $region20: #{vit_forward.1} parent=11 // pred_fallthru
        _
      // Predicated region
      $region21: #{vit_forward.1} parent=11 // pred_check
        %p777 = pneg %p184
      $region22: #{vit_forward.1} parent=11 // pred_check_branch
        %779 = sbr.rel (%p777) target = $region24
      $region23: #{vit_forward.1} parent=11 // pred_region
        _
      $region24: #{vit_forward.1} parent=11 // pred_fallthru
        _
      // Predicated region
      $region25: #{vit_forward.1} parent=11 // pred_check
        %p780 = pneg %p205
      $region26: #{vit_forward.1} parent=11 // pred_check_branch
        %782 = sbr.rel (%p780) target = $region28
      $region27: #{vit_forward.1} parent=11 // pred_region
        _
      $region28: #{vit_forward.1} parent=11 // pred_fallthru
        _
      // Predicated region
      $region29: #{vit_forward.1} parent=11 // pred_check
        %p783 = pneg %p226
      $region30: #{vit_forward.1} parent=11 // pred_check_branch
        %785 = sbr.rel (%p783) target = $region32
      $region31: #{vit_forward.1} parent=11 // pred_region
        _
      $region32: #{vit_forward.1} parent=11 // pred_fallthru
        _
      // Predicated region
      $region33: #{vit_forward.1} parent=11 // pred_check
        %p786 = pneg %p247
      $region34: #{vit_forward.1} parent=11 // pred_check_branch
        %788 = sbr.rel (%p786) target = $region36
      $region35: #{vit_forward.1} parent=11 // pred_region
        _
      $region36: #{vit_forward.1} parent=11 // pred_fallthru
        _
      // Predicated region
      $region37: #{vit_forward.1} parent=11 // pred_check
        %p789 = pneg %p268
      $region38: #{vit_forward.1} parent=11 // pred_check_branch
        %791 = sbr.rel (%p789) target = $region40
      $region39: #{vit_forward.1} parent=11 // pred_region
        _
      $region40: #{vit_forward.1} parent=11 // pred_fallthru
        _
      // Predicated region
      $region41: #{vit_forward.1} parent=11 // pred_check
        %p792 = pneg %p289
      $region42: #{vit_forward.1} parent=11 // pred_check_branch
        %794 = sbr.rel (%p792) target = $region44
      $region43: #{vit_forward.1} parent=11 // pred_region
        _
      $region44: #{vit_forward.1} parent=11 // pred_fallthru
        _
      // Predicated region
      $region45: #{vit_forward.1} parent=11 // pred_check
        %p795 = pneg %p310
      $region46: #{vit_forward.1} parent=11 // pred_check_branch
        %797 = sbr.rel (%p795) target = $region48
      $region47: #{vit_forward.1} parent=11 // pred_region
        _
      $region48: #{vit_forward.1} parent=11 // pred_fallthru
        _
      // Predicated region
      $region49: #{vit_forward.1} parent=11 // pred_check
        %p798 = pneg %p331
      $region50: #{vit_forward.1} parent=11 // pred_check_branch
        %800 = sbr.rel (%p798) target = $region52
      $region51: #{vit_forward.1} parent=11 // pred_region
        _
      $region52: #{vit_forward.1} parent=11 // pred_fallthru
        _
      // Predicated region
      $region53: #{vit_forward.1} parent=11 // pred_check
        %p801 = pneg %p352
      $region54: #{vit_forward.1} parent=11 // pred_check_branch
        %803 = sbr.rel (%p801) target = $region56
      $region55: #{vit_forward.1} parent=11 // pred_region
        _
      $region56: #{vit_forward.1} parent=11 // pred_fallthru
        _
      // Predicated region
      $region57: #{vit_forward.1} parent=11 // pred_check
        %p804 = pneg %p373
      $region58: #{vit_forward.1} parent=11 // pred_check_branch
        %806 = sbr.rel (%p804) target = $region60
      $region59: #{vit_forward.1} parent=11 // pred_region
        _
      $region60: #{vit_forward.1} parent=11 // pred_fallthru
        _
      // Predicated region
      $region61: #{vit_forward.1} parent=11 // pred_check
        %p807 = pneg %p394
      $region62: #{vit_forward.1} parent=11 // pred_check_branch
        %809 = sbr.rel (%p807) target = $region64
      $region63: #{vit_forward.1} parent=11 // pred_region
        _
      $region64: #{vit_forward.1} parent=11 // pred_fallthru
        _
      // Predicated region
      $region65: #{vit_forward.1} parent=11 // pred_check
        %p810 = pneg %p415
      $region66: #{vit_forward.1} parent=11 // pred_check_branch
        %812 = sbr.rel (%p810) target = $region68
      $region67: #{vit_forward.1} parent=11 // pred_region
        _
      $region68: #{vit_forward.1} parent=11 // pred_fallthru
        _
      // Predicated region
      $region69: #{vit_forward.1} parent=11 // pred_check
        %p813 = pneg %p436
      $region70: #{vit_forward.1} parent=11 // pred_check_branch
        %815 = sbr.rel (%p813) target = $region72
      $region71: #{vit_forward.1} parent=11 // pred_region
        _
      $region72: #{vit_forward.1} parent=11 // pred_fallthru
        _
      // Predicated region
      $region73: #{vit_forward.1} parent=11 // pred_check
        %p816 = pneg %p457
      $region74: #{vit_forward.1} parent=11 // pred_check_branch
        %818 = sbr.rel (%p816) target = $region76
      $region75: #{vit_forward.1} parent=11 // pred_region
        _
      $region76: #{vit_forward.1} parent=11 // pred_fallthru
        _
      // Predicated region
      $region77: #{vit_forward.1} parent=11 // pred_check
        %p819 = pneg %p478
      $region78: #{vit_forward.1} parent=11 // pred_check_branch
        %821 = sbr.rel (%p819) target = $region80
      $region79: #{vit_forward.1} parent=11 // pred_region
        _
      $region80: #{vit_forward.1} parent=11 // pred_fallthru
        _
      // Predicated region
      $region81: #{vit_forward.1} parent=11 // pred_check
        %p822 = pneg %p499
      $region82: #{vit_forward.1} parent=11 // pred_check_branch
        %824 = sbr.rel (%p822) target = $region84
      $region83: #{vit_forward.1} parent=11 // pred_region
        _
      $region84: #{vit_forward.1} parent=11 // pred_fallthru
        _
      // Predicated region
      $region85: #{vit_forward.1} parent=11 // pred_check
        %p825 = pneg %p520
      $region86: #{vit_forward.1} parent=11 // pred_check_branch
        %827 = sbr.rel (%p825) target = $region88
      $region87: #{vit_forward.1} parent=11 // pred_region
        _
      $region88: #{vit_forward.1} parent=11 // pred_fallthru
        _
      // Predicated region
      $region89: #{vit_forward.1} parent=11 // pred_check
        %p828 = pneg %p541
      $region90: #{vit_forward.1} parent=11 // pred_check_branch
        %830 = sbr.rel (%p828) target = $region92
      $region91: #{vit_forward.1} parent=11 // pred_region
        _
      $region92: #{vit_forward.1} parent=11 // pred_fallthru
        _
      // Predicated region
      $region93: #{vit_forward.1} parent=11 // pred_check
        %p831 = pneg %p562
      $region94: #{vit_forward.1} parent=11 // pred_check_branch
        %833 = sbr.rel (%p831) target = $region96
      $region95: #{vit_forward.1} parent=11 // pred_region
        _
      $region96: #{vit_forward.1} parent=11 // pred_fallthru
        _
      // Predicated region
      $region97: #{vit_forward.1} parent=11 // pred_check
        %p834 = pneg %p583
      $region98: #{vit_forward.1} parent=11 // pred_check_branch
        %836 = sbr.rel (%p834) target = $region100
      $region99: #{vit_forward.1} parent=11 // pred_region
        _
      $region100: #{vit_forward.1} parent=11 // pred_fallthru
        _
      // Predicated region
      $region101: #{vit_forward.1} parent=11 // pred_check
        %p837 = pneg %p604
      $region102: #{vit_forward.1} parent=11 // pred_check_branch
        %839 = sbr.rel (%p837) target = $region104
      $region103: #{vit_forward.1} parent=11 // pred_region
        _
      $region104: #{vit_forward.1} parent=11 // pred_fallthru
        _
      // Predicated region
      $region105: #{vit_forward.1} parent=11 // pred_check
        %p840 = pneg %p625
      $region106: #{vit_forward.1} parent=11 // pred_check_branch
        %842 = sbr.rel (%p840) target = $region108
      $region107: #{vit_forward.1} parent=11 // pred_region
        _
      $region108: #{vit_forward.1} parent=11 // pred_fallthru
        _
      // Predicated region
      $region109: #{vit_forward.1} parent=11 // pred_check
        %p843 = pneg %p646
      $region110: #{vit_forward.1} parent=11 // pred_check_branch
        %845 = sbr.rel (%p843) target = $region112
      $region111: #{vit_forward.1} parent=11 // pred_region
        _
      $region112: #{vit_forward.1} parent=11 // pred_fallthru
        _
      // Predicated region
      $region113: #{vit_forward.1} parent=11 // pred_check
        %p846 = pneg %p667
      $region114: #{vit_forward.1} parent=11 // pred_check_branch
        %848 = sbr.rel (%p846) target = $region116
      $region115: #{vit_forward.1} parent=11 // pred_region
        _
      $region116: #{vit_forward.1} parent=11 // pred_fallthru
        _
      // Predicated region
      $region117: #{vit_forward.1} parent=11 // pred_check
        %p849 = pneg %p688
      $region118: #{vit_forward.1} parent=11 // pred_check_branch
        %851 = sbr.rel (%p849) target = $region120
      $region119: #{vit_forward.1} parent=11 // pred_region
        _
      $region120: #{vit_forward.1} parent=11 // pred_fallthru
        _
      // Predicated region
      $region121: #{vit_forward.1} parent=11 // pred_check
        %p852 = pneg %p709
      $region122: #{vit_forward.1} parent=11 // pred_check_branch
        %854 = sbr.rel (%p852) target = $region124
      $region123: #{vit_forward.1} parent=11 // pred_region
        _
      $region124: #{vit_forward.1} parent=11 // pred_fallthru
        _
      // Predicated region
      $region125: #{vit_forward.1} parent=11 // pred_check
        %p855 = pneg %p730
      $region126: #{vit_forward.1} parent=11 // pred_check_branch
        %857 = sbr.rel (%p855) target = $region128
      $region127: #{vit_forward.1} parent=11 // pred_region
        _
      $region128: #{vit_forward.1} parent=11 // pred_fallthru
        _
    $region12: #{vit_forward.1} parent=5 // pred_fallthru
      _
    %p858 = scmp.lt.s32.totalorder %s69, 2
    // Predicated region
    $region129: #{vit_forward.1} parent=5 // pred_check
      %p859 = pneg %p858
    $region130: #{vit_forward.1} parent=5 // pred_check_branch
      %861 = sbr.rel (%p859) target = $region132
    $region131: #{vit_forward.1} parent=5 // pred_region
      // Predicated region
      $region133: #{vit_forward.1} parent=131 // pred_check
        %p862 = pneg %p89
      $region134: #{vit_forward.1} parent=131 // pred_check_branch
        %864 = sbr.rel (%p862) target = $region136
      $region135: #{vit_forward.1} parent=131 // pred_region
        %p865 = scmp.lt.s32.totalorder %s69, 1
        %s866 = scalar_select %p865, %s69, 1
        %s867 = smul.addr %s866, 6
        %s868 = smul.addr %s867, 8
        %s869 = scalar_lea.vmem %s1, %s868
      $region136: #{vit_forward.1} parent=131 // pred_fallthru
        _
      // Predicated region
      $region137: #{vit_forward.1} parent=131 // pred_check
        %p870 = pneg %p115
      $region138: #{vit_forward.1} parent=131 // pred_check_branch
        %872 = sbr.rel (%p870) target = $region140
      $region139: #{vit_forward.1} parent=131 // pred_region
        %p873 = scmp.lt.s32.totalorder %s69, 1
        %s874 = scalar_select %p873, %s69, 1
        %s875 = smul.addr %s874, 8
        %s876 = scalar_lea.vmem %s3, %s875
      $region140: #{vit_forward.1} parent=131 // pred_fallthru
        _
    $region132: #{vit_forward.1} parent=5 // pred_fallthru
      _
    %p877 = scmp.le.s32.totalorder 1, %s69
    %p878 = scmp.lt.s32.totalorder %s69, 3
    %p879 = pnand %p877, %p878
    %p880 = pneg %p879
    // Predicated region
    $region141: #{vit_forward.1} parent=5 // pred_check
      _
    $region142: #{vit_forward.1} parent=5 // pred_check_branch
      %882 = sbr.rel (%p879) target = $region144
    $region143: #{vit_forward.1} parent=5 // pred_region
      %s883 = ssub.s32 %s69, 1
      %p884 = scmp.lt.s32.totalorder %s74, 1
      %s885 = scalar_select %p884, %s74, 1
      %s886 = smul.addr %s885, 6
      %s887 = smul.addr %s886, 8
      %s888 = scalar_lea.vmem %s1, %s887
      %p889 = pneg %p95
      %p890 = pneg %p92
      %p891 = scmp.lt.s32.totalorder %s74, 1
      %s892 = scalar_select %p891, %s74, 1
      %s893 = smul.addr %s892, 8
      %s894 = scalar_lea.vmem %s3, %s893
      %p895 = pneg %p121
      %p896 = pneg %p118
      %p897 = pneg %p142
      %p898 = pneg %p139
      %p899 = pneg %p163
      %p900 = pneg %p160
      %p901 = pneg %p184
      %p902 = pneg %p181
      %p903 = pneg %p205
      %p904 = pneg %p202
      %p905 = pneg %p226
      %p906 = pneg %p223
      %p907 = pneg %p247
      %p908 = pneg %p244
      %p909 = pneg %p268
      %p910 = pneg %p265
      %p911 = pneg %p289
      %p912 = pneg %p286
      %p913 = pneg %p310
      %p914 = pneg %p307
      %p915 = pneg %p331
      %p916 = pneg %p328
      %p917 = pneg %p352
      %p918 = pneg %p349
      %p919 = pneg %p373
      %p920 = pneg %p370
      %p921 = pneg %p394
      %p922 = pneg %p391
      %p923 = pneg %p415
      %p924 = pneg %p412
      %p925 = pneg %p436
      %p926 = pneg %p433
      %p927 = pneg %p457
      %p928 = pneg %p454
      %p929 = pneg %p478
      %p930 = pneg %p475
      %p931 = pneg %p499
      %p932 = pneg %p496
      %p933 = pneg %p520
      %p934 = pneg %p517
      %p935 = pneg %p541
      %p936 = pneg %p538
      %p937 = pneg %p562
      %p938 = pneg %p559
      %p939 = pneg %p583
      %p940 = pneg %p580
      %p941 = pneg %p604
      %p942 = pneg %p601
      %p943 = pneg %p625
      %p944 = pneg %p622
      %p945 = pneg %p646
      %p946 = pneg %p643
      %p947 = pneg %p667
      %p948 = pneg %p664
      %p949 = pneg %p688
      %p950 = pneg %p685
      %p951 = pneg %p709
      %p952 = pneg %p706
      %p953 = pneg %p730
      %p954 = pneg %p727
      %p955 = pneg %p756
      %p956 = pneg %p753
      %p957 = scmp.lt.s32.totalorder %s74, 1
      %s958 = scalar_select %p957, %s74, 1
      %s959 = smul.addr %s958, 8
      %s960 = scalar_lea.vmem %s63, %s959
      %p961 = scmp.lt.s32.totalorder %s74, 1
      %s962 = scalar_select %p961, %s74, 1
      %s963 = smul.addr %s962, 6
      %s964 = smul.addr %s963, 8
      %s965 = scalar_lea.vmem %s1, %s964
      %p966 = scmp.lt.s32.totalorder %s74, 1
      %s967 = scalar_select %p966, %s74, 1
      %s968 = smul.addr %s967, 8
      %s969 = scalar_lea.vmem %s3, %s968
      %p970 = scmp.lt.s32.totalorder %s74, 1
      %s971 = scalar_select %p970, %s74, 1
      %s972 = smul.addr %s971, 8
      %s973 = scalar_lea.vmem %s63, %s972
      %v974 = vld [vmem:[%s965] sm:$0xff]
      %v975 = vld [vmem:[%s965 + $0x8] sm:$0xff]
      %v976 = vld [vmem:[%s965 + $0x10] sm:$0xff]
      %v977 = vld [vmem:[%s965 + $0x18] sm:$0xff]
      %v978 = vld [vmem:[%s965 + $0x20] sm:$0xff]
      %v979 = vld [vmem:[%s965 + $0x28] sm:$0xff]
      %v980 = vld [vmem:[%s5] sm:$0xff]
      %v981 = vld [vmem:[%s5 + $0x8] sm:$0xff]
      %v982 = vld [vmem:[%s5 + $0x10] sm:$0xff]
      %v983 = vld [vmem:[%s5 + $0x18] sm:$0xff]
      %v984 = vld [vmem:[%s5 + $0x20] sm:$0xff]
      %v985 = vld [vmem:[%s5 + $0x28] sm:$0xff]
      %v986 = vld [vmem:[%s5 + $0x30] sm:$0xff]
      %v987 = vld [vmem:[%s5 + $0x38] sm:$0xff]
      %v988 = vld [vmem:[%s5 + $0x40] sm:$0xff]
      %v989 = vld [vmem:[%s5 + $0x48] sm:$0xff]
      %v990 = vld [vmem:[%s5 + $0x50] sm:$0xff]
      %v991 = vld [vmem:[%s5 + $0x58] sm:$0xff]
      %v992 = vld [vmem:[%s5 + $0x60] sm:$0xff]
      %v993 = vld [vmem:[%s5 + $0x68] sm:$0xff]
      %v994 = vld [vmem:[%s5 + $0x70] sm:$0xff]
      %v995 = vld [vmem:[%s5 + $0x78] sm:$0xff]
      %v996 = vld [vmem:[%s5 + $0x80] sm:$0xff]
      %v997 = vld [vmem:[%s5 + $0x88] sm:$0xff]
      %v998 = vld [vmem:[%s5 + $0x90] sm:$0xff]
      %v999 = vld [vmem:[%s5 + $0x98] sm:$0xff]
      %v1000 = vld [vmem:[%s5 + $0xa0] sm:$0xff]
      %v1001 = vld [vmem:[%s5 + $0xa8] sm:$0xff]
      %v1002 = vld [vmem:[%s5 + $0xb0] sm:$0xff]
      %v1003 = vld [vmem:[%s5 + $0xb8] sm:$0xff]
      %v1004 = vld [vmem:[%s5 + $0xc0] sm:$0xff]
      %v1005 = vld [vmem:[%s5 + $0xc8] sm:$0xff]
      %v1006 = vld [vmem:[%s5 + $0xd0] sm:$0xff]
      %v1007 = vld [vmem:[%s5 + $0xd8] sm:$0xff]
      %v1008 = vld [vmem:[%s5 + $0xe0] sm:$0xff]
      %v1009 = vld [vmem:[%s5 + $0xe8] sm:$0xff]
      %v1010 = vld [vmem:[%s5 + $0xf0] sm:$0xff]
      %v1011 = vld [vmem:[%s5 + $0xf8] sm:$0xff]
      %v1012 = vld [vmem:[%s5 + $0x100] sm:$0xff]
      %v1013 = vld [vmem:[%s5 + $0x108] sm:$0xff]
      %v1014 = vld [vmem:[%s5 + $0x110] sm:$0xff]
      %v1015 = vld [vmem:[%s5 + $0x118] sm:$0xff]
      %v1016 = vld [vmem:[%s5 + $0x120] sm:$0xff]
      %v1017 = vld [vmem:[%s5 + $0x128] sm:$0xff]
      %v1018 = vld [vmem:[%s5 + $0x130] sm:$0xff]
      %v1019 = vld [vmem:[%s5 + $0x138] sm:$0xff]
      %v1020 = vld [vmem:[%s5 + $0x140] sm:$0xff]
      %v1021 = vld [vmem:[%s5 + $0x148] sm:$0xff]
      %v1022 = vld [vmem:[%s5 + $0x150] sm:$0xff]
      %v1023 = vld [vmem:[%s5 + $0x158] sm:$0xff]
      %v1024 = vld [vmem:[%s5 + $0x160] sm:$0xff]
      %v1025 = vld [vmem:[%s5 + $0x168] sm:$0xff]
      %v1026 = vld [vmem:[%s5 + $0x170] sm:$0xff]
      %v1027 = vld [vmem:[%s5 + $0x178] sm:$0xff]
      %v1028 = vld [vmem:[%s5 + $0x180] sm:$0xff]
      %v1029 = vld [vmem:[%s5 + $0x188] sm:$0xff]
      %v1030 = vld [vmem:[%s5 + $0x190] sm:$0xff]
      %v1031 = vld [vmem:[%s5 + $0x198] sm:$0xff]
      %v1032 = vld [vmem:[%s5 + $0x1a0] sm:$0xff]
      %v1033 = vld [vmem:[%s5 + $0x1a8] sm:$0xff]
      %v1034 = vld [vmem:[%s5 + $0x1b0] sm:$0xff]
      %v1035 = vld [vmem:[%s5 + $0x1b8] sm:$0xff]
      %v1036 = vld [vmem:[%s5 + $0x1c0] sm:$0xff]
      %v1037 = vld [vmem:[%s5 + $0x1c8] sm:$0xff]
      %v1038 = vld [vmem:[%s5 + $0x1d0] sm:$0xff]
      %v1039 = vld [vmem:[%s5 + $0x1d8] sm:$0xff]
      %v1040 = vld [vmem:[%s5 + $0x1e0] sm:$0xff]
      %v1041 = vld [vmem:[%s5 + $0x1e8] sm:$0xff]
      %v1042 = vld [vmem:[%s5 + $0x1f0] sm:$0xff]
      %v1043 = vld [vmem:[%s5 + $0x1f8] sm:$0xff]
      %v1044 = vld [vmem:[%s5 + $0x200] sm:$0xff]
      %v1045 = vld [vmem:[%s5 + $0x208] sm:$0xff]
      %v1046 = vld [vmem:[%s5 + $0x210] sm:$0xff]
      %v1047 = vld [vmem:[%s5 + $0x218] sm:$0xff]
      %v1048 = vld [vmem:[%s5 + $0x220] sm:$0xff]
      %v1049 = vld [vmem:[%s5 + $0x228] sm:$0xff]
      %v1050 = vld [vmem:[%s5 + $0x230] sm:$0xff]
      %v1051 = vld [vmem:[%s5 + $0x238] sm:$0xff]
      %v1052 = vld [vmem:[%s5 + $0x240] sm:$0xff]
      %v1053 = vld [vmem:[%s5 + $0x248] sm:$0xff]
      %v1054 = vld [vmem:[%s5 + $0x250] sm:$0xff]
      %v1055 = vld [vmem:[%s5 + $0x258] sm:$0xff]
      %v1056 = vld [vmem:[%s5 + $0x260] sm:$0xff]
      %v1057 = vld [vmem:[%s5 + $0x268] sm:$0xff]
      %v1058 = vld [vmem:[%s5 + $0x270] sm:$0xff]
      %v1059 = vld [vmem:[%s5 + $0x278] sm:$0xff]
      %v1060 = vld [vmem:[%s5 + $0x280] sm:$0xff]
      %v1061 = vld [vmem:[%s5 + $0x288] sm:$0xff]
      %v1062 = vld [vmem:[%s5 + $0x290] sm:$0xff]
      %v1063 = vld [vmem:[%s5 + $0x298] sm:$0xff]
      %v1064 = vld [vmem:[%s5 + $0x2a0] sm:$0xff]
      %v1065 = vld [vmem:[%s5 + $0x2a8] sm:$0xff]
      %v1066 = vld [vmem:[%s5 + $0x2b0] sm:$0xff]
      %v1067 = vld [vmem:[%s5 + $0x2b8] sm:$0xff]
      %v1068 = vld [vmem:[%s5 + $0x2c0] sm:$0xff]
      %v1069 = vld [vmem:[%s5 + $0x2c8] sm:$0xff]
      %v1070 = vld [vmem:[%s5 + $0x2d0] sm:$0xff]
      %v1071 = vld [vmem:[%s5 + $0x2d8] sm:$0xff]
      %v1072 = vld [vmem:[%s5 + $0x2e0] sm:$0xff]
      %v1073 = vld [vmem:[%s5 + $0x2e8] sm:$0xff]
      %v1074 = vld [vmem:[%s5 + $0x2f0] sm:$0xff]
      %v1075 = vld [vmem:[%s5 + $0x2f8] sm:$0xff]
      %v1076 = vld [vmem:[%s969] sm:$0xff]
      %1077 = vmatprep.subr.mxu0 0.0
      %1078 = vmatpush1.msra.mxu0 %v980
      %1079 = vmatprep.subr.mxu0 0.0
      %1080 = vmatpush1.msra.mxu0 %v981
      %1081 = vmatprep.subr.mxu0 0.0
      %1082 = vmatpush1.msra.mxu0 %v982
      %1083 = vmatprep.subr.mxu0 0.0
      %1084 = vmatpush1.msra.mxu0 %v983
      %1085 = vmatprep.subr.mxu0 0.0
      %1086 = vmatpush1.msra.mxu0 %v984
      %1087 = vmatprep.subr.mxu0 0.0
      %1088 = vmatpush1.msra.mxu0 %v985
      %1089 = vmatprep.subr.mxu0 0.0
      %1090 = vmatpush1.msra.mxu0 %v986
      %1091 = vmatprep.subr.mxu0 0.0
      %1092 = vmatpush1.msra.mxu0 %v987
      %1093 = vmatprep.subr.mxu0 0.0
      %1094 = vmatpush1.msra.mxu0 %v988
      %1095 = vmatprep.subr.mxu0 0.0
      %1096 = vmatpush1.msra.mxu0 %v989
      %1097 = vmatprep.subr.mxu0 0.0
      %1098 = vmatpush1.msra.mxu0 %v990
      %1099 = vmatprep.subr.mxu0 0.0
      %1100 = vmatpush1.msra.mxu0 %v991
      %1101 = vmatprep.subr.mxu0 0.0
      %1102 = vmatpush1.msra.mxu0 %v992
      %1103 = vmatprep.subr.mxu0 0.0
      %1104 = vmatpush1.msra.mxu0 %v993
      %1105 = vmatprep.subr.mxu0 0.0
      %1106 = vmatpush1.msra.mxu0 %v994
      %1107 = vmatprep.subr.mxu0 0.0
      %1108 = vmatpush1.msra.mxu0 %v995
      %1109 = vmatprep.subr.mxu0 0.0
      %1110 = vmatpush1.msra.mxu0 %v996
      %1111 = vmatprep.subr.mxu0 0.0
      %1112 = vmatpush1.msra.mxu0 %v997
      %1113 = vmatprep.subr.mxu0 0.0
      %1114 = vmatpush1.msra.mxu0 %v998
      %1115 = vmatprep.subr.mxu0 0.0
      %1116 = vmatpush1.msra.mxu0 %v999
      %1117 = vmatprep.subr.mxu0 0.0
      %1118 = vmatpush1.msra.mxu0 %v1000
      %1119 = vmatprep.subr.mxu0 0.0
      %1120 = vmatpush1.msra.mxu0 %v1001
      %1121 = vmatprep.subr.mxu0 0.0
      %1122 = vmatpush1.msra.mxu0 %v1002
      %1123 = vmatprep.subr.mxu0 0.0
      %1124 = vmatpush1.msra.mxu0 %v1003
      %1125 = vmatprep.subr.mxu0 0.0
      %1126 = vmatpush1.msra.mxu0 %v1004
      %1127 = vmatprep.subr.mxu0 0.0
      %1128 = vmatpush1.msra.mxu0 %v1005
      %1129 = vmatprep.subr.mxu0 0.0
      %1130 = vmatpush1.msra.mxu0 %v1006
      %1131 = vmatprep.subr.mxu0 0.0
      %1132 = vmatpush1.msra.mxu0 %v1007
      %1133 = vmatprep.subr.mxu0 0.0
      %1134 = vmatpush1.msra.mxu0 %v1008
      %1135 = vmatprep.subr.mxu0 0.0
      %1136 = vmatpush1.msra.mxu0 %v1009
      %1137 = vmatprep.subr.mxu0 0.0
      %1138 = vmatpush1.msra.mxu0 %v1010
      %1139 = vmatprep.subr.mxu0 0.0
      %1140 = vmatpush1.msra.mxu0 %v1011
      %1141 = vmatprep.mubr.f32.mxu0 %v975
      %1142 = vmatmul.mubr.f32.gmra.mrb[0].mxu0 %v974
      %v1143 = vpop.f32.mrb[0].mxu0
      %v1144 = vadd.f32 %v1076, %v1143
      %v1145 = vpop.f32.mrb[0].mxu0
      %1146 = vdwg.mxu0
      %1147 = vmatprep.subr.mxu0 0.0
      %1148 = vmatpush1.msra.mxu0 %v1012
      %1149 = vmatprep.subr.mxu0 0.0
      %1150 = vmatpush1.msra.mxu0 %v1013
      %1151 = vmatprep.subr.mxu0 0.0
      %1152 = vmatpush1.msra.mxu0 %v1014
      %1153 = vmatprep.subr.mxu0 0.0
      %1154 = vmatpush1.msra.mxu0 %v1015
      %1155 = vmatprep.subr.mxu0 0.0
      %1156 = vmatpush1.msra.mxu0 %v1016
      %1157 = vmatprep.subr.mxu0 0.0
      %1158 = vmatpush1.msra.mxu0 %v1017
      %1159 = vmatprep.subr.mxu0 0.0
      %1160 = vmatpush1.msra.mxu0 %v1018
      %1161 = vmatprep.subr.mxu0 0.0
      %1162 = vmatpush1.msra.mxu0 %v1019
      %1163 = vmatprep.subr.mxu0 0.0
      %1164 = vmatpush1.msra.mxu0 %v1020
      %1165 = vmatprep.subr.mxu0 0.0
      %1166 = vmatpush1.msra.mxu0 %v1021
      %1167 = vmatprep.subr.mxu0 0.0
      %1168 = vmatpush1.msra.mxu0 %v1022
      %1169 = vmatprep.subr.mxu0 0.0
      %1170 = vmatpush1.msra.mxu0 %v1023
      %1171 = vmatprep.subr.mxu0 0.0
      %1172 = vmatpush1.msra.mxu0 %v1024
      %1173 = vmatprep.subr.mxu0 0.0
      %1174 = vmatpush1.msra.mxu0 %v1025
      %1175 = vmatprep.subr.mxu0 0.0
      %1176 = vmatpush1.msra.mxu0 %v1026
      %1177 = vmatprep.subr.mxu0 0.0
      %1178 = vmatpush1.msra.mxu0 %v1027
      %1179 = vmatprep.subr.mxu0 0.0
      %1180 = vmatpush1.msra.mxu0 %v1028
      %1181 = vmatprep.subr.mxu0 0.0
      %1182 = vmatpush1.msra.mxu0 %v1029
      %1183 = vmatprep.subr.mxu0 0.0
      %1184 = vmatpush1.msra.mxu0 %v1030
      %1185 = vmatprep.subr.mxu0 0.0
      %1186 = vmatpush1.msra.mxu0 %v1031
      %1187 = vmatprep.subr.mxu0 0.0
      %1188 = vmatpush1.msra.mxu0 %v1032
      %1189 = vmatprep.subr.mxu0 0.0
      %1190 = vmatpush1.msra.mxu0 %v1033
      %1191 = vmatprep.subr.mxu0 0.0
      %1192 = vmatpush1.msra.mxu0 %v1034
      %1193 = vmatprep.subr.mxu0 0.0
      %1194 = vmatpush1.msra.mxu0 %v1035
      %1195 = vmatprep.subr.mxu0 0.0
      %1196 = vmatpush1.msra.mxu0 %v1036
      %1197 = vmatprep.subr.mxu0 0.0
      %1198 = vmatpush1.msra.mxu0 %v1037
      %1199 = vmatprep.subr.mxu0 0.0
      %1200 = vmatpush1.msra.mxu0 %v1038
      %1201 = vmatprep.subr.mxu0 0.0
      %1202 = vmatpush1.msra.mxu0 %v1039
      %1203 = vmatprep.subr.mxu0 0.0
      %1204 = vmatpush1.msra.mxu0 %v1040
      %1205 = vmatprep.subr.mxu0 0.0
      %1206 = vmatpush1.msra.mxu0 %v1041
      %1207 = vmatprep.subr.mxu0 0.0
      %1208 = vmatpush1.msra.mxu0 %v1042
      %1209 = vmatprep.subr.mxu0 0.0
      %1210 = vmatpush1.msra.mxu0 %v1043
      %1211 = vmatprep.mubr.f32.mxu0 %v977
      %1212 = vmatmul.mubr.f32.gmra.mrb[0].mxu0 %v976
      %v1213 = vpop.f32.mrb[0].mxu0
      %v1214 = vadd.f32 %v1144, %v1213
      %v1215 = vpop.f32.mrb[0].mxu0
      %1216 = vdwg.mxu0
      %1217 = vmatprep.subr.mxu0 0.0
      %1218 = vmatpush1.msra.mxu0 %v1044
      %1219 = vmatprep.subr.mxu0 0.0
      %1220 = vmatpush1.msra.mxu0 %v1045
      %1221 = vmatprep.subr.mxu0 0.0
      %1222 = vmatpush1.msra.mxu0 %v1046
      %1223 = vmatprep.subr.mxu0 0.0
      %1224 = vmatpush1.msra.mxu0 %v1047
      %1225 = vmatprep.subr.mxu0 0.0
      %1226 = vmatpush1.msra.mxu0 %v1048
      %1227 = vmatprep.subr.mxu0 0.0
      %1228 = vmatpush1.msra.mxu0 %v1049
      %1229 = vmatprep.subr.mxu0 0.0
      %1230 = vmatpush1.msra.mxu0 %v1050
      %1231 = vmatprep.subr.mxu0 0.0
      %1232 = vmatpush1.msra.mxu0 %v1051
      %1233 = vmatprep.subr.mxu0 0.0
      %1234 = vmatpush1.msra.mxu0 %v1052
      %1235 = vmatprep.subr.mxu0 0.0
      %1236 = vmatpush1.msra.mxu0 %v1053
      %1237 = vmatprep.subr.mxu0 0.0
      %1238 = vmatpush1.msra.mxu0 %v1054
      %1239 = vmatprep.subr.mxu0 0.0
      %1240 = vmatpush1.msra.mxu0 %v1055
      %1241 = vmatprep.subr.mxu0 0.0
      %1242 = vmatpush1.msra.mxu0 %v1056
      %1243 = vmatprep.subr.mxu0 0.0
      %1244 = vmatpush1.msra.mxu0 %v1057
      %1245 = vmatprep.subr.mxu0 0.0
      %1246 = vmatpush1.msra.mxu0 %v1058
      %1247 = vmatprep.subr.mxu0 0.0
      %1248 = vmatpush1.msra.mxu0 %v1059
      %1249 = vmatprep.subr.mxu0 0.0
      %1250 = vmatpush1.msra.mxu0 %v1060
      %1251 = vmatprep.subr.mxu0 0.0
      %1252 = vmatpush1.msra.mxu0 %v1061
      %1253 = vmatprep.subr.mxu0 0.0
      %1254 = vmatpush1.msra.mxu0 %v1062
      %1255 = vmatprep.subr.mxu0 0.0
      %1256 = vmatpush1.msra.mxu0 %v1063
      %1257 = vmatprep.subr.mxu0 0.0
      %1258 = vmatpush1.msra.mxu0 %v1064
      %1259 = vmatprep.subr.mxu0 0.0
      %1260 = vmatpush1.msra.mxu0 %v1065
      %1261 = vmatprep.subr.mxu0 0.0
      %1262 = vmatpush1.msra.mxu0 %v1066
      %1263 = vmatprep.subr.mxu0 0.0
      %1264 = vmatpush1.msra.mxu0 %v1067
      %1265 = vmatprep.subr.mxu0 0.0
      %1266 = vmatpush1.msra.mxu0 %v1068
      %1267 = vmatprep.subr.mxu0 0.0
      %1268 = vmatpush1.msra.mxu0 %v1069
      %1269 = vmatprep.subr.mxu0 0.0
      %1270 = vmatpush1.msra.mxu0 %v1070
      %1271 = vmatprep.subr.mxu0 0.0
      %1272 = vmatpush1.msra.mxu0 %v1071
      %1273 = vmatprep.subr.mxu0 0.0
      %1274 = vmatpush1.msra.mxu0 %v1072
      %1275 = vmatprep.subr.mxu0 0.0
      %1276 = vmatpush1.msra.mxu0 %v1073
      %1277 = vmatprep.subr.mxu0 0.0
      %1278 = vmatpush1.msra.mxu0 %v1074
      %1279 = vmatprep.subr.mxu0 0.0
      %1280 = vmatpush1.msra.mxu0 %v1075
      %1281 = vmatprep.mubr.f32.mxu0 %v979
      %1282 = vmatmul.mubr.f32.gmra.mrb[0].mxu0 %v978
      %v1283 = vpop.f32.mrb[0].mxu0
      %v1284 = vadd.f32 %v1214, %v1283
      %v1285 = vpop.f32.mrb[0].mxu0
      %1286 = vdwg.mxu0
      %v1287 = vlaneseq
      %v1288 = vand.u32 %v1287, 127
      %vm1289 = vcmp.lt.s32.totalorder %v1288, 5
      %v1290 = vld [vmem:[%s7] sm:$0x1]
      %v1291 = vld [vmem:[%s9] sm:$0x1]
      %vm1292 = vcmask 261120
      %v1293 = vsel %vm1292, %v1284, 0.0
      %1294 = vadd.xlane.f32.xlu0 %v1293
      %v1295 = vpop.xlane.xlu0 %1294
      %v1296 = vrcp.pop 32.0
      %v1297 = vmul.f32 %v1295, %v1296
      %v1298 = vsub.f32 %v1284, %v1297
      %v1299 = vmul.f32 %v1298, %v1298
      %v1300 = vsel %vm1292, %v1299, 0.0
      %1301 = vadd.xlane.f32.xlu0 %v1300
      %v1302 = vpop.xlane.xlu0 %1301
      %v1303 = vmul.f32 %v1302, %v1296
      %v1304 = vadd.f32 %v1303, 1e-06
      %v1305 = vrsqrt.pop %v1304
      %v1306 = vmul.f32 %v1298, %v1305
      %v1308 = vlaneseq
      %v1309 = vshrl.u32 %v1308, 7
      %v1310 = vsub.s32 0, %v1309
      %v1311 = vrot.slane %v1290, %v1310
      %v1313 = vmul.f32 %v1306, %v1311
      %v1315 = vlaneseq
      %v1316 = vshrl.u32 %v1315, 7
      %v1317 = vsub.s32 0, %v1316
      %v1318 = vrot.slane %v1291, %v1317
      %v1320 = vadd.f32 %v1313, %v1318
      %v1321 = vld [vmem:[%s11] sm:$0xff]
      %v1322 = vld [vmem:[%s11 + $0x8] sm:$0xff]
      %v1323 = vld [vmem:[%s11 + $0x10] sm:$0xff]
      %v1324 = vld [vmem:[%s11 + $0x18] sm:$0xff]
      %v1325 = vld [vmem:[%s13] sm:$0x1]
      %v1327 = vlaneseq
      %v1328 = vshrl.u32 %v1327, 7
      %v1329 = vsub.s32 0, %v1328
      %v1330 = vrot.slane %v1325, %v1329
      %v1333 = vsel %vm1292, %v1320, 0
      %1335 = vmatprep.subr.mxu0 0.0
      %1336 = vmatpush1.msra.mxu0 %v1321
      %1337 = vmatprep.subr.mxu0 0.0
      %1338 = vmatpush1.msra.mxu0 %v1322
      %1339 = vmatprep.subr.mxu0 0.0
      %1340 = vmatpush1.msra.mxu0 %v1323
      %1341 = vmatprep.subr.mxu0 0.0
      %1342 = vmatpush1.msra.mxu0 %v1324
      %1343 = vmatprep.subr.mxu0 0.0
      %1344 = vmatpush1.msra.mxu0 0.0
      %1345 = vmatprep.subr.mxu0 0.0
      %1346 = vmatpush1.msra.mxu0 0.0
      %1347 = vmatprep.subr.mxu0 0.0
      %1348 = vmatpush1.msra.mxu0 0.0
      %1349 = vmatprep.subr.mxu0 0.0
      %1350 = vmatpush1.msra.mxu0 0.0
      %1351 = vmatprep.subr.mxu0 0.0
      %1352 = vmatpush1.msra.mxu0 0.0
      %1353 = vmatprep.subr.mxu0 0.0
      %1354 = vmatpush1.msra.mxu0 0.0
      %1355 = vmatprep.subr.mxu0 0.0
      %1356 = vmatpush1.msra.mxu0 0.0
      %1357 = vmatprep.subr.mxu0 0.0
      %1358 = vmatpush1.msra.mxu0 0.0
      %1359 = vmatprep.subr.mxu0 0.0
      %1360 = vmatpush1.msra.mxu0 0.0
      %1361 = vmatprep.subr.mxu0 0.0
      %1362 = vmatpush1.msra.mxu0 0.0
      %1363 = vmatprep.subr.mxu0 0.0
      %1364 = vmatpush1.msra.mxu0 0.0
      %1365 = vmatprep.subr.mxu0 0.0
      %1366 = vmatpush1.msra.mxu0 0.0
      %1367 = vmatprep.subr.mxu0 0.0
      %1368 = vmatpush1.msra.mxu0 0.0
      %1369 = vmatprep.subr.mxu0 0.0
      %1370 = vmatpush1.msra.mxu0 0.0
      %1371 = vmatprep.subr.mxu0 0.0
      %1372 = vmatpush1.msra.mxu0 0.0
      %1373 = vmatprep.subr.mxu0 0.0
      %1374 = vmatpush1.msra.mxu0 0.0
      %1375 = vmatprep.subr.mxu0 0.0
      %1376 = vmatpush1.msra.mxu0 0.0
      %1377 = vmatprep.subr.mxu0 0.0
      %1378 = vmatpush1.msra.mxu0 0.0
      %1379 = vmatprep.subr.mxu0 0.0
      %1380 = vmatpush1.msra.mxu0 0.0
      %1381 = vmatprep.subr.mxu0 0.0
      %1382 = vmatpush1.msra.mxu0 0.0
      %1383 = vmatprep.subr.mxu0 0.0
      %1384 = vmatpush1.msra.mxu0 0.0
      %1385 = vmatprep.subr.mxu0 0.0
      %1386 = vmatpush1.msra.mxu0 0.0
      %1387 = vmatprep.subr.mxu0 0.0
      %1388 = vmatpush1.msra.mxu0 0.0
      %1389 = vmatprep.subr.mxu0 0.0
      %1390 = vmatpush1.msra.mxu0 0.0
      %1391 = vmatprep.subr.mxu0 0.0
      %1392 = vmatpush1.msra.mxu0 0.0
      %1393 = vmatprep.subr.mxu0 0.0
      %1394 = vmatpush1.msra.mxu0 0.0
      %1395 = vmatprep.subr.mxu0 0.0
      %1396 = vmatpush1.msra.mxu0 0.0
      %1397 = vmatprep.subr.mxu0 0.0
      %1398 = vmatpush1.msra.mxu0 0.0
      %1399 = vmatprep.mubr.f32.mxu0 0.0
      %1400 = vmatmul.mubr.f32.gmra.mrb[0].mxu0 %v1333
      %v1401 = vpop.f32.mrb[0].mxu0
      %v1402 = vadd.f32 %v1330, %v1401
      %v1403 = vpop.f32.mrb[0].mxu0
      %1404 = vdwg.mxu0
      %1406 = vrot.lane.b32.xlu0 %v1402, 96
      %v1407 = vpop.permute.xlu0 %1406
      %vm1408 = vcmask 64512
      %v1409 = vsel %vm1408, %v1402, 0
      %v1411 = vsel %vm1408, %v1407, 0
      %1413 = vmatprep.subr.mxu0 0.0
      %1414 = vmatpush1.xpose.msra.mxu0 %v1411
      %1415 = vmatprep.subr.mxu0 0.0
      %1416 = vmatpush1.xpose.msra.mxu0 0.0
      %1417 = vmatprep.subr.mxu0 0.0
      %1418 = vmatpush1.xpose.msra.mxu0 0.0
      %1419 = vmatprep.subr.mxu0 0.0
      %1420 = vmatpush1.xpose.msra.mxu0 0.0
      %1421 = vmatprep.subr.mxu0 0.0
      %1422 = vmatpush1.xpose.msra.mxu0 0.0
      %1423 = vmatprep.subr.mxu0 0.0
      %1424 = vmatpush1.xpose.msra.mxu0 0.0
      %1425 = vmatprep.subr.mxu0 0.0
      %1426 = vmatpush1.xpose.msra.mxu0 0.0
      %1427 = vmatprep.subr.mxu0 0.0
      %1428 = vmatpush1.xpose.msra.mxu0 0.0
      %1429 = vmatprep.subr.mxu0 0.0
      %1430 = vmatpush1.xpose.msra.mxu0 0.0
      %1431 = vmatprep.subr.mxu0 0.0
      %1432 = vmatpush1.xpose.msra.mxu0 0.0
      %1433 = vmatprep.subr.mxu0 0.0
      %1434 = vmatpush1.xpose.msra.mxu0 0.0
      %1435 = vmatprep.subr.mxu0 0.0
      %1436 = vmatpush1.xpose.msra.mxu0 0.0
      %1437 = vmatprep.subr.mxu0 0.0
      %1438 = vmatpush1.xpose.msra.mxu0 0.0
      %1439 = vmatprep.subr.mxu0 0.0
      %1440 = vmatpush1.xpose.msra.mxu0 0.0
      %1441 = vmatprep.subr.mxu0 0.0
      %1442 = vmatpush1.xpose.msra.mxu0 0.0
      %1443 = vmatprep.subr.mxu0 0.0
      %1444 = vmatpush1.xpose.msra.mxu0 0.0
      %1445 = vmatprep.subr.mxu0 0.0
      %1446 = vmatpush1.xpose.msra.mxu0 0.0
      %1447 = vmatprep.subr.mxu0 0.0
      %1448 = vmatpush1.xpose.msra.mxu0 0.0
      %1449 = vmatprep.subr.mxu0 0.0
      %1450 = vmatpush1.xpose.msra.mxu0 0.0
      %1451 = vmatprep.subr.mxu0 0.0
      %1452 = vmatpush1.xpose.msra.mxu0 0.0
      %1453 = vmatprep.subr.mxu0 0.0
      %1454 = vmatpush1.xpose.msra.mxu0 0.0
      %1455 = vmatprep.subr.mxu0 0.0
      %1456 = vmatpush1.xpose.msra.mxu0 0.0
      %1457 = vmatprep.subr.mxu0 0.0
      %1458 = vmatpush1.xpose.msra.mxu0 0.0
      %1459 = vmatprep.subr.mxu0 0.0
      %1460 = vmatpush1.xpose.msra.mxu0 0.0
      %1461 = vmatprep.subr.mxu0 0.0
      %1462 = vmatpush1.xpose.msra.mxu0 0.0
      %1463 = vmatprep.subr.mxu0 0.0
      %1464 = vmatpush1.xpose.msra.mxu0 0.0
      %1465 = vmatprep.subr.mxu0 0.0
      %1466 = vmatpush1.xpose.msra.mxu0 0.0
      %1467 = vmatprep.subr.mxu0 0.0
      %1468 = vmatpush1.xpose.msra.mxu0 0.0
      %1469 = vmatprep.subr.mxu0 0.0
      %1470 = vmatpush1.xpose.msra.mxu0 0.0
      %1471 = vmatprep.subr.mxu0 0.0
      %1472 = vmatpush1.xpose.msra.mxu0 0.0
      %1473 = vmatprep.subr.mxu0 0.0
      %1474 = vmatpush1.xpose.msra.mxu0 0.0
      %1475 = vmatprep.subr.mxu0 0.0
      %1476 = vmatpush1.xpose.msra.mxu0 0.0
      %1477 = vmatprep.mubr.f32.mxu0 0.0
      %1478 = vmatmul.mubr.f32.gmra.mrb[0].mxu0 %v1409
      %v1479 = vpop.f32.mrb[0].mxu0
      %v1480 = vadd.f32 0.0, %v1479
      %v1481 = vpop.f32.mrb[0].mxu0
      %1482 = vdwg.mxu0
      %v1483 = vmul.f32 %v1480, 0.35355338
      %v1484 = vsel %vm1289, %v1483, -1e+30
      %v1485 = vsel %vm1408, %v1484, -inf
      %1486 = vmax.xlane.f32.xlu0 %v1485
      %v1487 = vpop.xlane.xlu0 %1486
      %v1488 = vsub.f32 %v1484, %v1487
      %v1489 = vmul.f32 %v1488, 1.442695
      %v1490 = vpow.pop %v1489
      %v1491 = vsel %vm1408, %v1490, 0.0
      %1492 = vadd.xlane.f32.xlu0 %v1491
      %v1493 = vpop.xlane.xlu0 %1492
      %v1494 = vrcp.pop %v1493
      %v1495 = vmul.f32 %v1490, %v1494
      %1496 = vrot.lane.b32.xlu0 %v1402, 64
      %v1497 = vpop.permute.xlu0 %1496
      %v1500 = vsel %vm1408, %v1495, 0
      %1502 = vmatprep.subr.mxu0 0.0
      %1503 = vmatpush1.msra.mxu0 %v1497
      %1504 = vmatprep.subr.mxu0 0.0
      %1505 = vmatpush1.msra.mxu0 0.0
      %1506 = vmatprep.subr.mxu0 0.0
      %1507 = vmatpush1.msra.mxu0 0.0
      %1508 = vmatprep.subr.mxu0 0.0
      %1509 = vmatpush1.msra.mxu0 0.0
      %1510 = vmatprep.subr.mxu0 0.0
      %1511 = vmatpush1.msra.mxu0 0.0
      %1512 = vmatprep.subr.mxu0 0.0
      %1513 = vmatpush1.msra.mxu0 0.0
      %1514 = vmatprep.subr.mxu0 0.0
      %1515 = vmatpush1.msra.mxu0 0.0
      %1516 = vmatprep.subr.mxu0 0.0
      %1517 = vmatpush1.msra.mxu0 0.0
      %1518 = vmatprep.subr.mxu0 0.0
      %1519 = vmatpush1.msra.mxu0 0.0
      %1520 = vmatprep.subr.mxu0 0.0
      %1521 = vmatpush1.msra.mxu0 0.0
      %1522 = vmatprep.subr.mxu0 0.0
      %1523 = vmatpush1.msra.mxu0 0.0
      %1524 = vmatprep.subr.mxu0 0.0
      %1525 = vmatpush1.msra.mxu0 0.0
      %1526 = vmatprep.subr.mxu0 0.0
      %1527 = vmatpush1.msra.mxu0 0.0
      %1528 = vmatprep.subr.mxu0 0.0
      %1529 = vmatpush1.msra.mxu0 0.0
      %1530 = vmatprep.subr.mxu0 0.0
      %1531 = vmatpush1.msra.mxu0 0.0
      %1532 = vmatprep.subr.mxu0 0.0
      %1533 = vmatpush1.msra.mxu0 0.0
      %1534 = vmatprep.subr.mxu0 0.0
      %1535 = vmatpush1.msra.mxu0 0.0
      %1536 = vmatprep.subr.mxu0 0.0
      %1537 = vmatpush1.msra.mxu0 0.0
      %1538 = vmatprep.subr.mxu0 0.0
      %1539 = vmatpush1.msra.mxu0 0.0
      %1540 = vmatprep.subr.mxu0 0.0
      %1541 = vmatpush1.msra.mxu0 0.0
      %1542 = vmatprep.subr.mxu0 0.0
      %1543 = vmatpush1.msra.mxu0 0.0
      %1544 = vmatprep.subr.mxu0 0.0
      %1545 = vmatpush1.msra.mxu0 0.0
      %1546 = vmatprep.subr.mxu0 0.0
      %1547 = vmatpush1.msra.mxu0 0.0
      %1548 = vmatprep.subr.mxu0 0.0
      %1549 = vmatpush1.msra.mxu0 0.0
      %1550 = vmatprep.subr.mxu0 0.0
      %1551 = vmatpush1.msra.mxu0 0.0
      %1552 = vmatprep.subr.mxu0 0.0
      %1553 = vmatpush1.msra.mxu0 0.0
      %1554 = vmatprep.subr.mxu0 0.0
      %1555 = vmatpush1.msra.mxu0 0.0
      %1556 = vmatprep.subr.mxu0 0.0
      %1557 = vmatpush1.msra.mxu0 0.0
      %1558 = vmatprep.subr.mxu0 0.0
      %1559 = vmatpush1.msra.mxu0 0.0
      %1560 = vmatprep.subr.mxu0 0.0
      %1561 = vmatpush1.msra.mxu0 0.0
      %1562 = vmatprep.subr.mxu0 0.0
      %1563 = vmatpush1.msra.mxu0 0.0
      %1564 = vmatprep.subr.mxu0 0.0
      %1565 = vmatpush1.msra.mxu0 0.0
      %1566 = vmatprep.mubr.f32.mxu0 0.0
      %1567 = vmatmul.mubr.f32.gmra.mrb[0].mxu0 %v1500
      %v1568 = vpop.f32.mrb[0].mxu0
      %v1569 = vadd.f32 0.0, %v1568
      %v1570 = vpop.f32.mrb[0].mxu0
      %1571 = vdwg.mxu0
      %v1572 = vld [vmem:[%s15] sm:$0xff]
      %1573 = vrot.lane.b32.xlu0 %v1402, 120
      %v1574 = vpop.permute.xlu0 %1573
      %1575 = vrot.lane.b32.xlu0 %v1402, 88
      %v1576 = vpop.permute.xlu0 %1575
      %v1577 = vsel %vm1408, %v1574, 0
      %v1579 = vsel %vm1408, %v1576, 0
      %1581 = vmatprep.subr.mxu0 0.0
      %1582 = vmatpush1.xpose.msra.mxu0 %v1579
      %1583 = vmatprep.subr.mxu0 0.0
      %1584 = vmatpush1.xpose.msra.mxu0 0.0
      %1585 = vmatprep.subr.mxu0 0.0
      %1586 = vmatpush1.xpose.msra.mxu0 0.0
      %1587 = vmatprep.subr.mxu0 0.0
      %1588 = vmatpush1.xpose.msra.mxu0 0.0
      %1589 = vmatprep.subr.mxu0 0.0
      %1590 = vmatpush1.xpose.msra.mxu0 0.0
      %1591 = vmatprep.subr.mxu0 0.0
      %1592 = vmatpush1.xpose.msra.mxu0 0.0
      %1593 = vmatprep.subr.mxu0 0.0
      %1594 = vmatpush1.xpose.msra.mxu0 0.0
      %1595 = vmatprep.subr.mxu0 0.0
      %1596 = vmatpush1.xpose.msra.mxu0 0.0
      %1597 = vmatprep.subr.mxu0 0.0
      %1598 = vmatpush1.xpose.msra.mxu0 0.0
      %1599 = vmatprep.subr.mxu0 0.0
      %1600 = vmatpush1.xpose.msra.mxu0 0.0
      %1601 = vmatprep.subr.mxu0 0.0
      %1602 = vmatpush1.xpose.msra.mxu0 0.0
      %1603 = vmatprep.subr.mxu0 0.0
      %1604 = vmatpush1.xpose.msra.mxu0 0.0
      %1605 = vmatprep.subr.mxu0 0.0
      %1606 = vmatpush1.xpose.msra.mxu0 0.0
      %1607 = vmatprep.subr.mxu0 0.0
      %1608 = vmatpush1.xpose.msra.mxu0 0.0
      %1609 = vmatprep.subr.mxu0 0.0
      %1610 = vmatpush1.xpose.msra.mxu0 0.0
      %1611 = vmatprep.subr.mxu0 0.0
      %1612 = vmatpush1.xpose.msra.mxu0 0.0
      %1613 = vmatprep.subr.mxu0 0.0
      %1614 = vmatpush1.xpose.msra.mxu0 0.0
      %1615 = vmatprep.subr.mxu0 0.0
      %1616 = vmatpush1.xpose.msra.mxu0 0.0
      %1617 = vmatprep.subr.mxu0 0.0
      %1618 = vmatpush1.xpose.msra.mxu0 0.0
      %1619 = vmatprep.subr.mxu0 0.0
      %1620 = vmatpush1.xpose.msra.mxu0 0.0
      %1621 = vmatprep.subr.mxu0 0.0
      %1622 = vmatpush1.xpose.msra.mxu0 0.0
      %1623 = vmatprep.subr.mxu0 0.0
      %1624 = vmatpush1.xpose.msra.mxu0 0.0
      %1625 = vmatprep.subr.mxu0 0.0
      %1626 = vmatpush1.xpose.msra.mxu0 0.0
      %1627 = vmatprep.subr.mxu0 0.0
      %1628 = vmatpush1.xpose.msra.mxu0 0.0
      %1629 = vmatprep.subr.mxu0 0.0
      %1630 = vmatpush1.xpose.msra.mxu0 0.0
      %1631 = vmatprep.subr.mxu0 0.0
      %1632 = vmatpush1.xpose.msra.mxu0 0.0
      %1633 = vmatprep.subr.mxu0 0.0
      %1634 = vmatpush1.xpose.msra.mxu0 0.0
      %1635 = vmatprep.subr.mxu0 0.0
      %1636 = vmatpush1.xpose.msra.mxu0 0.0
      %1637 = vmatprep.subr.mxu0 0.0
      %1638 = vmatpush1.xpose.msra.mxu0 0.0
      %1639 = vmatprep.subr.mxu0 0.0
      %1640 = vmatpush1.xpose.msra.mxu0 0.0
      %1641 = vmatprep.subr.mxu0 0.0
      %1642 = vmatpush1.xpose.msra.mxu0 0.0
      %1643 = vmatprep.subr.mxu0 0.0
      %1644 = vmatpush1.xpose.msra.mxu0 0.0
      %1645 = vmatprep.mubr.f32.mxu0 0.0
      %1646 = vmatmul.mubr.f32.gmra.mrb[0].mxu0 %v1577
      %v1647 = vpop.f32.mrb[0].mxu0
      %v1648 = vadd.f32 0.0, %v1647
      %v1649 = vpop.f32.mrb[0].mxu0
      %1650 = vdwg.mxu0
      %v1651 = vmul.f32 %v1648, 0.35355338
      %v1652 = vsel %vm1289, %v1651, -1e+30
      %v1653 = vsel %vm1408, %v1652, -inf
      %1654 = vmax.xlane.f32.xlu0 %v1653
      %v1655 = vpop.xlane.xlu0 %1654
      %v1656 = vsub.f32 %v1652, %v1655
      %v1657 = vmul.f32 %v1656, 1.442695
      %v1658 = vpow.pop %v1657
      %v1659 = vsel %vm1408, %v1658, 0.0
      %1660 = vadd.xlane.f32.xlu0 %v1659
      %v1661 = vpop.xlane.xlu0 %1660
      %v1662 = vrcp.pop %v1661
      %v1663 = vmul.f32 %v1658, %v1662
      %1664 = vrot.lane.b32.xlu0 %v1402, 56
      %v1665 = vpop.permute.xlu0 %1664
      %v1668 = vsel %vm1408, %v1663, 0
      %1670 = vmatprep.subr.mxu0 0.0
      %1671 = vmatpush1.msra.mxu0 %v1665
      %1672 = vmatprep.subr.mxu0 0.0
      %1673 = vmatpush1.msra.mxu0 0.0
      %1674 = vmatprep.subr.mxu0 0.0
      %1675 = vmatpush1.msra.mxu0 0.0
      %1676 = vmatprep.subr.mxu0 0.0
      %1677 = vmatpush1.msra.mxu0 0.0
      %1678 = vmatprep.subr.mxu0 0.0
      %1679 = vmatpush1.msra.mxu0 0.0
      %1680 = vmatprep.subr.mxu0 0.0
      %1681 = vmatpush1.msra.mxu0 0.0
      %1682 = vmatprep.subr.mxu0 0.0
      %1683 = vmatpush1.msra.mxu0 0.0
      %1684 = vmatprep.subr.mxu0 0.0
      %1685 = vmatpush1.msra.mxu0 0.0
      %1686 = vmatprep.subr.mxu0 0.0
      %1687 = vmatpush1.msra.mxu0 0.0
      %1688 = vmatprep.subr.mxu0 0.0
      %1689 = vmatpush1.msra.mxu0 0.0
      %1690 = vmatprep.subr.mxu0 0.0
      %1691 = vmatpush1.msra.mxu0 0.0
      %1692 = vmatprep.subr.mxu0 0.0
      %1693 = vmatpush1.msra.mxu0 0.0
      %1694 = vmatprep.subr.mxu0 0.0
      %1695 = vmatpush1.msra.mxu0 0.0
      %1696 = vmatprep.subr.mxu0 0.0
      %1697 = vmatpush1.msra.mxu0 0.0
      %1698 = vmatprep.subr.mxu0 0.0
      %1699 = vmatpush1.msra.mxu0 0.0
      %1700 = vmatprep.subr.mxu0 0.0
      %1701 = vmatpush1.msra.mxu0 0.0
      %1702 = vmatprep.subr.mxu0 0.0
      %1703 = vmatpush1.msra.mxu0 0.0
      %1704 = vmatprep.subr.mxu0 0.0
      %1705 = vmatpush1.msra.mxu0 0.0
      %1706 = vmatprep.subr.mxu0 0.0
      %1707 = vmatpush1.msra.mxu0 0.0
      %1708 = vmatprep.subr.mxu0 0.0
      %1709 = vmatpush1.msra.mxu0 0.0
      %1710 = vmatprep.subr.mxu0 0.0
      %1711 = vmatpush1.msra.mxu0 0.0
      %1712 = vmatprep.subr.mxu0 0.0
      %1713 = vmatpush1.msra.mxu0 0.0
      %1714 = vmatprep.subr.mxu0 0.0
      %1715 = vmatpush1.msra.mxu0 0.0
      %1716 = vmatprep.subr.mxu0 0.0
      %1717 = vmatpush1.msra.mxu0 0.0
      %1718 = vmatprep.subr.mxu0 0.0
      %1719 = vmatpush1.msra.mxu0 0.0
      %1720 = vmatprep.subr.mxu0 0.0
      %1721 = vmatpush1.msra.mxu0 0.0
      %1722 = vmatprep.subr.mxu0 0.0
      %1723 = vmatpush1.msra.mxu0 0.0
      %1724 = vmatprep.subr.mxu0 0.0
      %1725 = vmatpush1.msra.mxu0 0.0
      %1726 = vmatprep.subr.mxu0 0.0
      %1727 = vmatpush1.msra.mxu0 0.0
      %1728 = vmatprep.subr.mxu0 0.0
      %1729 = vmatpush1.msra.mxu0 0.0
      %1730 = vmatprep.subr.mxu0 0.0
      %1731 = vmatpush1.msra.mxu0 0.0
      %1732 = vmatprep.subr.mxu0 0.0
      %1733 = vmatpush1.msra.mxu0 0.0
      %1734 = vmatprep.mubr.f32.mxu0 0.0
      %1735 = vmatmul.mubr.f32.gmra.mrb[0].mxu0 %v1668
      %v1736 = vpop.f32.mrb[0].mxu0
      %v1737 = vadd.f32 0.0, %v1736
      %v1738 = vpop.f32.mrb[0].mxu0
      %1739 = vdwg.mxu0
      %v1740 = vld [vmem:[%s15 + $0x8] sm:$0xff]
      %v1742 = vsel %vm1408, %v1737, 0
      %1744 = vmatprep.subr.mxu0 0.0
      %1745 = vmatpush1.msra.mxu0 %v1740
      %1746 = vmatprep.subr.mxu0 0.0
      %1747 = vmatpush1.msra.mxu0 0.0
      %1748 = vmatprep.subr.mxu0 0.0
      %1749 = vmatpush1.msra.mxu0 0.0
      %1750 = vmatprep.subr.mxu0 0.0
      %1751 = vmatpush1.msra.mxu0 0.0
      %1752 = vmatprep.subr.mxu0 0.0
      %1753 = vmatpush1.msra.mxu0 0.0
      %1754 = vmatprep.subr.mxu0 0.0
      %1755 = vmatpush1.msra.mxu0 0.0
      %1756 = vmatprep.subr.mxu0 0.0
      %1757 = vmatpush1.msra.mxu0 0.0
      %1758 = vmatprep.subr.mxu0 0.0
      %1759 = vmatpush1.msra.mxu0 0.0
      %1760 = vmatprep.subr.mxu0 0.0
      %1761 = vmatpush1.msra.mxu0 0.0
      %1762 = vmatprep.subr.mxu0 0.0
      %1763 = vmatpush1.msra.mxu0 0.0
      %1764 = vmatprep.subr.mxu0 0.0
      %1765 = vmatpush1.msra.mxu0 0.0
      %1766 = vmatprep.subr.mxu0 0.0
      %1767 = vmatpush1.msra.mxu0 0.0
      %1768 = vmatprep.subr.mxu0 0.0
      %1769 = vmatpush1.msra.mxu0 0.0
      %1770 = vmatprep.subr.mxu0 0.0
      %1771 = vmatpush1.msra.mxu0 0.0
      %1772 = vmatprep.subr.mxu0 0.0
      %1773 = vmatpush1.msra.mxu0 0.0
      %1774 = vmatprep.subr.mxu0 0.0
      %1775 = vmatpush1.msra.mxu0 0.0
      %1776 = vmatprep.subr.mxu0 0.0
      %1777 = vmatpush1.msra.mxu0 0.0
      %1778 = vmatprep.subr.mxu0 0.0
      %1779 = vmatpush1.msra.mxu0 0.0
      %1780 = vmatprep.subr.mxu0 0.0
      %1781 = vmatpush1.msra.mxu0 0.0
      %1782 = vmatprep.subr.mxu0 0.0
      %1783 = vmatpush1.msra.mxu0 0.0
      %1784 = vmatprep.subr.mxu0 0.0
      %1785 = vmatpush1.msra.mxu0 0.0
      %1786 = vmatprep.subr.mxu0 0.0
      %1787 = vmatpush1.msra.mxu0 0.0
      %1788 = vmatprep.subr.mxu0 0.0
      %1789 = vmatpush1.msra.mxu0 0.0
      %1790 = vmatprep.subr.mxu0 0.0
      %1791 = vmatpush1.msra.mxu0 0.0
      %1792 = vmatprep.subr.mxu0 0.0
      %1793 = vmatpush1.msra.mxu0 0.0
      %1794 = vmatprep.subr.mxu0 0.0
      %1795 = vmatpush1.msra.mxu0 0.0
      %1796 = vmatprep.subr.mxu0 0.0
      %1797 = vmatpush1.msra.mxu0 0.0
      %1798 = vmatprep.subr.mxu0 0.0
      %1799 = vmatpush1.msra.mxu0 0.0
      %1800 = vmatprep.subr.mxu0 0.0
      %1801 = vmatpush1.msra.mxu0 0.0
      %1802 = vmatprep.subr.mxu0 0.0
      %1803 = vmatpush1.msra.mxu0 0.0
      %1804 = vmatprep.subr.mxu0 0.0
      %1805 = vmatpush1.msra.mxu0 0.0
      %1806 = vmatprep.subr.mxu0 0.0
      %1807 = vmatpush1.msra.mxu0 0.0
      %1808 = vmatprep.mubr.f32.mxu0 0.0
      %1809 = vmatmul.mubr.f32.gmra.mrb[0].mxu0 %v1742
      %v1810 = vpop.f32.mrb[0].mxu0
      %v1811 = vadd.f32 0.0, %v1810
      %v1812 = vpop.f32.mrb[0].mxu0
      %1813 = vdwg.mxu0
      %v1815 = vsel %vm1408, %v1569, 0
      %1817 = vmatprep.subr.mxu0 0.0
      %1818 = vmatpush1.msra.mxu0 %v1572
      %1819 = vmatprep.subr.mxu0 0.0
      %1820 = vmatpush1.msra.mxu0 0.0
      %1821 = vmatprep.subr.mxu0 0.0
      %1822 = vmatpush1.msra.mxu0 0.0
      %1823 = vmatprep.subr.mxu0 0.0
      %1824 = vmatpush1.msra.mxu0 0.0
      %1825 = vmatprep.subr.mxu0 0.0
      %1826 = vmatpush1.msra.mxu0 0.0
      %1827 = vmatprep.subr.mxu0 0.0
      %1828 = vmatpush1.msra.mxu0 0.0
      %1829 = vmatprep.subr.mxu0 0.0
      %1830 = vmatpush1.msra.mxu0 0.0
      %1831 = vmatprep.subr.mxu0 0.0
      %1832 = vmatpush1.msra.mxu0 0.0
      %1833 = vmatprep.subr.mxu0 0.0
      %1834 = vmatpush1.msra.mxu0 0.0
      %1835 = vmatprep.subr.mxu0 0.0
      %1836 = vmatpush1.msra.mxu0 0.0
      %1837 = vmatprep.subr.mxu0 0.0
      %1838 = vmatpush1.msra.mxu0 0.0
      %1839 = vmatprep.subr.mxu0 0.0
      %1840 = vmatpush1.msra.mxu0 0.0
      %1841 = vmatprep.subr.mxu0 0.0
      %1842 = vmatpush1.msra.mxu0 0.0
      %1843 = vmatprep.subr.mxu0 0.0
      %1844 = vmatpush1.msra.mxu0 0.0
      %1845 = vmatprep.subr.mxu0 0.0
      %1846 = vmatpush1.msra.mxu0 0.0
      %1847 = vmatprep.subr.mxu0 0.0
      %1848 = vmatpush1.msra.mxu0 0.0
      %1849 = vmatprep.subr.mxu0 0.0
      %1850 = vmatpush1.msra.mxu0 0.0
      %1851 = vmatprep.subr.mxu0 0.0
      %1852 = vmatpush1.msra.mxu0 0.0
      %1853 = vmatprep.subr.mxu0 0.0
      %1854 = vmatpush1.msra.mxu0 0.0
      %1855 = vmatprep.subr.mxu0 0.0
      %1856 = vmatpush1.msra.mxu0 0.0
      %1857 = vmatprep.subr.mxu0 0.0
      %1858 = vmatpush1.msra.mxu0 0.0
      %1859 = vmatprep.subr.mxu0 0.0
      %1860 = vmatpush1.msra.mxu0 0.0
      %1861 = vmatprep.subr.mxu0 0.0
      %1862 = vmatpush1.msra.mxu0 0.0
      %1863 = vmatprep.subr.mxu0 0.0
      %1864 = vmatpush1.msra.mxu0 0.0
      %1865 = vmatprep.subr.mxu0 0.0
      %1866 = vmatpush1.msra.mxu0 0.0
      %1867 = vmatprep.subr.mxu0 0.0
      %1868 = vmatpush1.msra.mxu0 0.0
      %1869 = vmatprep.subr.mxu0 0.0
      %1870 = vmatpush1.msra.mxu0 0.0
      %1871 = vmatprep.subr.mxu0 0.0
      %1872 = vmatpush1.msra.mxu0 0.0
      %1873 = vmatprep.subr.mxu0 0.0
      %1874 = vmatpush1.msra.mxu0 0.0
      %1875 = vmatprep.subr.mxu0 0.0
      %1876 = vmatpush1.msra.mxu0 0.0
      %1877 = vmatprep.subr.mxu0 0.0
      %1878 = vmatpush1.msra.mxu0 0.0
      %1879 = vmatprep.subr.mxu0 0.0
      %1880 = vmatpush1.msra.mxu0 0.0
      %1881 = vmatprep.mubr.f32.mxu0 0.0
      %1882 = vmatmul.mubr.f32.gmra.mrb[0].mxu0 %v1815
      %v1883 = vpop.f32.mrb[0].mxu0
      %v1884 = vadd.f32 %v1811, %v1883
      %v1885 = vpop.f32.mrb[0].mxu0
      %1886 = vdwg.mxu0
      %1887 = vrot.lane.b32.xlu0 %v1402, 112
      %v1888 = vpop.permute.xlu0 %1887
      %1889 = vrot.lane.b32.xlu0 %v1402, 80
      %v1890 = vpop.permute.xlu0 %1889
      %v1891 = vsel %vm1408, %v1888, 0
      %v1893 = vsel %vm1408, %v1890, 0
      %1895 = vmatprep.subr.mxu0 0.0
      %1896 = vmatpush1.xpose.msra.mxu0 %v1893
      %1897 = vmatprep.subr.mxu0 0.0
      %1898 = vmatpush1.xpose.msra.mxu0 0.0
      %1899 = vmatprep.subr.mxu0 0.0
      %1900 = vmatpush1.xpose.msra.mxu0 0.0
      %1901 = vmatprep.subr.mxu0 0.0
      %1902 = vmatpush1.xpose.msra.mxu0 0.0
      %1903 = vmatprep.subr.mxu0 0.0
      %1904 = vmatpush1.xpose.msra.mxu0 0.0
      %1905 = vmatprep.subr.mxu0 0.0
      %1906 = vmatpush1.xpose.msra.mxu0 0.0
      %1907 = vmatprep.subr.mxu0 0.0
      %1908 = vmatpush1.xpose.msra.mxu0 0.0
      %1909 = vmatprep.subr.mxu0 0.0
      %1910 = vmatpush1.xpose.msra.mxu0 0.0
      %1911 = vmatprep.subr.mxu0 0.0
      %1912 = vmatpush1.xpose.msra.mxu0 0.0
      %1913 = vmatprep.subr.mxu0 0.0
      %1914 = vmatpush1.xpose.msra.mxu0 0.0
      %1915 = vmatprep.subr.mxu0 0.0
      %1916 = vmatpush1.xpose.msra.mxu0 0.0
      %1917 = vmatprep.subr.mxu0 0.0
      %1918 = vmatpush1.xpose.msra.mxu0 0.0
      %1919 = vmatprep.subr.mxu0 0.0
      %1920 = vmatpush1.xpose.msra.mxu0 0.0
      %1921 = vmatprep.subr.mxu0 0.0
      %1922 = vmatpush1.xpose.msra.mxu0 0.0
      %1923 = vmatprep.subr.mxu0 0.0
      %1924 = vmatpush1.xpose.msra.mxu0 0.0
      %1925 = vmatprep.subr.mxu0 0.0
      %1926 = vmatpush1.xpose.msra.mxu0 0.0
      %1927 = vmatprep.subr.mxu0 0.0
      %1928 = vmatpush1.xpose.msra.mxu0 0.0
      %1929 = vmatprep.subr.mxu0 0.0
      %1930 = vmatpush1.xpose.msra.mxu0 0.0
      %1931 = vmatprep.subr.mxu0 0.0
      %1932 = vmatpush1.xpose.msra.mxu0 0.0
      %1933 = vmatprep.subr.mxu0 0.0
      %1934 = vmatpush1.xpose.msra.mxu0 0.0
      %1935 = vmatprep.subr.mxu0 0.0
      %1936 = vmatpush1.xpose.msra.mxu0 0.0
      %1937 = vmatprep.subr.mxu0 0.0
      %1938 = vmatpush1.xpose.msra.mxu0 0.0
      %1939 = vmatprep.subr.mxu0 0.0
      %1940 = vmatpush1.xpose.msra.mxu0 0.0
      %1941 = vmatprep.subr.mxu0 0.0
      %1942 = vmatpush1.xpose.msra.mxu0 0.0
      %1943 = vmatprep.subr.mxu0 0.0
      %1944 = vmatpush1.xpose.msra.mxu0 0.0
      %1945 = vmatprep.subr.mxu0 0.0
      %1946 = vmatpush1.xpose.msra.mxu0 0.0
      %1947 = vmatprep.subr.mxu0 0.0
      %1948 = vmatpush1.xpose.msra.mxu0 0.0
      %1949 = vmatprep.subr.mxu0 0.0
      %1950 = vmatpush1.xpose.msra.mxu0 0.0
      %1951 = vmatprep.subr.mxu0 0.0
      %1952 = vmatpush1.xpose.msra.mxu0 0.0
      %1953 = vmatprep.subr.mxu0 0.0
      %1954 = vmatpush1.xpose.msra.mxu0 0.0
      %1955 = vmatprep.subr.mxu0 0.0
      %1956 = vmatpush1.xpose.msra.mxu0 0.0
      %1957 = vmatprep.subr.mxu0 0.0
      %1958 = vmatpush1.xpose.msra.mxu0 0.0
      %1959 = vmatprep.mubr.f32.mxu0 0.0
      %1960 = vmatmul.mubr.f32.gmra.mrb[0].mxu0 %v1891
      %v1961 = vpop.f32.mrb[0].mxu0
      %v1962 = vadd.f32 0.0, %v1961
      %v1963 = vpop.f32.mrb[0].mxu0
      %1964 = vdwg.mxu0
      %v1965 = vmul.f32 %v1962, 0.35355338
      %v1966 = vsel %vm1289, %v1965, -1e+30
      %v1967 = vsel %vm1408, %v1966, -inf
      %1968 = vmax.xlane.f32.xlu0 %v1967
      %v1969 = vpop.xlane.xlu0 %1968
      %v1970 = vsub.f32 %v1966, %v1969
      %v1971 = vmul.f32 %v1970, 1.442695
      %v1972 = vpow.pop %v1971
      %v1973 = vsel %vm1408, %v1972, 0.0
      %1974 = vadd.xlane.f32.xlu0 %v1973
      %v1975 = vpop.xlane.xlu0 %1974
      %v1976 = vrcp.pop %v1975
      %v1977 = vmul.f32 %v1972, %v1976
      %1978 = vrot.lane.b32.xlu0 %v1402, 48
      %v1979 = vpop.permute.xlu0 %1978
      %v1982 = vsel %vm1408, %v1977, 0
      %1984 = vmatprep.subr.mxu0 0.0
      %1985 = vmatpush1.msra.mxu0 %v1979
      %1986 = vmatprep.subr.mxu0 0.0
      %1987 = vmatpush1.msra.mxu0 0.0
      %1988 = vmatprep.subr.mxu0 0.0
      %1989 = vmatpush1.msra.mxu0 0.0
      %1990 = vmatprep.subr.mxu0 0.0
      %1991 = vmatpush1.msra.mxu0 0.0
      %1992 = vmatprep.subr.mxu0 0.0
      %1993 = vmatpush1.msra.mxu0 0.0
      %1994 = vmatprep.subr.mxu0 0.0
      %1995 = vmatpush1.msra.mxu0 0.0
      %1996 = vmatprep.subr.mxu0 0.0
      %1997 = vmatpush1.msra.mxu0 0.0
      %1998 = vmatprep.subr.mxu0 0.0
      %1999 = vmatpush1.msra.mxu0 0.0
      %2000 = vmatprep.subr.mxu0 0.0
      %2001 = vmatpush1.msra.mxu0 0.0
      %2002 = vmatprep.subr.mxu0 0.0
      %2003 = vmatpush1.msra.mxu0 0.0
      %2004 = vmatprep.subr.mxu0 0.0
      %2005 = vmatpush1.msra.mxu0 0.0
      %2006 = vmatprep.subr.mxu0 0.0
      %2007 = vmatpush1.msra.mxu0 0.0
      %2008 = vmatprep.subr.mxu0 0.0
      %2009 = vmatpush1.msra.mxu0 0.0
      %2010 = vmatprep.subr.mxu0 0.0
      %2011 = vmatpush1.msra.mxu0 0.0
      %2012 = vmatprep.subr.mxu0 0.0
      %2013 = vmatpush1.msra.mxu0 0.0
      %2014 = vmatprep.subr.mxu0 0.0
      %2015 = vmatpush1.msra.mxu0 0.0
      %2016 = vmatprep.subr.mxu0 0.0
      %2017 = vmatpush1.msra.mxu0 0.0
      %2018 = vmatprep.subr.mxu0 0.0
      %2019 = vmatpush1.msra.mxu0 0.0
      %2020 = vmatprep.subr.mxu0 0.0
      %2021 = vmatpush1.msra.mxu0 0.0
      %2022 = vmatprep.subr.mxu0 0.0
      %2023 = vmatpush1.msra.mxu0 0.0
      %2024 = vmatprep.subr.mxu0 0.0
      %2025 = vmatpush1.msra.mxu0 0.0
      %2026 = vmatprep.subr.mxu0 0.0
      %2027 = vmatpush1.msra.mxu0 0.0
      %2028 = vmatprep.subr.mxu0 0.0
      %2029 = vmatpush1.msra.mxu0 0.0
      %2030 = vmatprep.subr.mxu0 0.0
      %2031 = vmatpush1.msra.mxu0 0.0
      %2032 = vmatprep.subr.mxu0 0.0
      %2033 = vmatpush1.msra.mxu0 0.0
      %2034 = vmatprep.subr.mxu0 0.0
      %2035 = vmatpush1.msra.mxu0 0.0
      %2036 = vmatprep.subr.mxu0 0.0
      %2037 = vmatpush1.msra.mxu0 0.0
      %2038 = vmatprep.subr.mxu0 0.0
      %2039 = vmatpush1.msra.mxu0 0.0
      %2040 = vmatprep.subr.mxu0 0.0
      %2041 = vmatpush1.msra.mxu0 0.0
      %2042 = vmatprep.subr.mxu0 0.0
      %2043 = vmatpush1.msra.mxu0 0.0
      %2044 = vmatprep.subr.mxu0 0.0
      %2045 = vmatpush1.msra.mxu0 0.0
      %2046 = vmatprep.subr.mxu0 0.0
      %2047 = vmatpush1.msra.mxu0 0.0
      %2048 = vmatprep.mubr.f32.mxu0 0.0
      %2049 = vmatmul.mubr.f32.gmra.mrb[0].mxu0 %v1982
      %v2050 = vpop.f32.mrb[0].mxu0
      %v2051 = vadd.f32 0.0, %v2050
      %v2052 = vpop.f32.mrb[0].mxu0
      %2053 = vdwg.mxu0
      %v2054 = vld [vmem:[%s15 + $0x10] sm:$0xff]
      %v2056 = vsel %vm1408, %v2051, 0
      %2058 = vmatprep.subr.mxu0 0.0
      %2059 = vmatpush1.msra.mxu0 %v2054
      %2060 = vmatprep.subr.mxu0 0.0
      %2061 = vmatpush1.msra.mxu0 0.0
      %2062 = vmatprep.subr.mxu0 0.0
      %2063 = vmatpush1.msra.mxu0 0.0
      %2064 = vmatprep.subr.mxu0 0.0
      %2065 = vmatpush1.msra.mxu0 0.0
      %2066 = vmatprep.subr.mxu0 0.0
      %2067 = vmatpush1.msra.mxu0 0.0
      %2068 = vmatprep.subr.mxu0 0.0
      %2069 = vmatpush1.msra.mxu0 0.0
      %2070 = vmatprep.subr.mxu0 0.0
      %2071 = vmatpush1.msra.mxu0 0.0
      %2072 = vmatprep.subr.mxu0 0.0
      %2073 = vmatpush1.msra.mxu0 0.0
      %2074 = vmatprep.subr.mxu0 0.0
      %2075 = vmatpush1.msra.mxu0 0.0
      %2076 = vmatprep.subr.mxu0 0.0
      %2077 = vmatpush1.msra.mxu0 0.0
      %2078 = vmatprep.subr.mxu0 0.0
      %2079 = vmatpush1.msra.mxu0 0.0
      %2080 = vmatprep.subr.mxu0 0.0
      %2081 = vmatpush1.msra.mxu0 0.0
      %2082 = vmatprep.subr.mxu0 0.0
      %2083 = vmatpush1.msra.mxu0 0.0
      %2084 = vmatprep.subr.mxu0 0.0
      %2085 = vmatpush1.msra.mxu0 0.0
      %2086 = vmatprep.subr.mxu0 0.0
      %2087 = vmatpush1.msra.mxu0 0.0
      %2088 = vmatprep.subr.mxu0 0.0
      %2089 = vmatpush1.msra.mxu0 0.0
      %2090 = vmatprep.subr.mxu0 0.0
      %2091 = vmatpush1.msra.mxu0 0.0
      %2092 = vmatprep.subr.mxu0 0.0
      %2093 = vmatpush1.msra.mxu0 0.0
      %2094 = vmatprep.subr.mxu0 0.0
      %2095 = vmatpush1.msra.mxu0 0.0
      %2096 = vmatprep.subr.mxu0 0.0
      %2097 = vmatpush1.msra.mxu0 0.0
      %2098 = vmatprep.subr.mxu0 0.0
      %2099 = vmatpush1.msra.mxu0 0.0
      %2100 = vmatprep.subr.mxu0 0.0
      %2101 = vmatpush1.msra.mxu0 0.0
      %2102 = vmatprep.subr.mxu0 0.0
      %2103 = vmatpush1.msra.mxu0 0.0
      %2104 = vmatprep.subr.mxu0 0.0
      %2105 = vmatpush1.msra.mxu0 0.0
      %2106 = vmatprep.subr.mxu0 0.0
      %2107 = vmatpush1.msra.mxu0 0.0
      %2108 = vmatprep.subr.mxu0 0.0
      %2109 = vmatpush1.msra.mxu0 0.0
      %2110 = vmatprep.subr.mxu0 0.0
      %2111 = vmatpush1.msra.mxu0 0.0
      %2112 = vmatprep.subr.mxu0 0.0
      %2113 = vmatpush1.msra.mxu0 0.0
      %2114 = vmatprep.subr.mxu0 0.0
      %2115 = vmatpush1.msra.mxu0 0.0
      %2116 = vmatprep.subr.mxu0 0.0
      %2117 = vmatpush1.msra.mxu0 0.0
      %2118 = vmatprep.subr.mxu0 0.0
      %2119 = vmatpush1.msra.mxu0 0.0
      %2120 = vmatprep.subr.mxu0 0.0
      %2121 = vmatpush1.msra.mxu0 0.0
      %2122 = vmatprep.mubr.f32.mxu0 0.0
      %2123 = vmatmul.mubr.f32.gmra.mrb[0].mxu0 %v2056
      %v2124 = vpop.f32.mrb[0].mxu0
      %v2125 = vadd.f32 0.0, %v2124
      %v2126 = vpop.f32.mrb[0].mxu0
      %2127 = vdwg.mxu0
      %v2128 = vadd.f32 %v1884, %v2125
      %2129 = vrot.lane.b32.xlu0 %v1402, 104
      %v2130 = vpop.permute.xlu0 %2129
      %2131 = vrot.lane.b32.xlu0 %v1402, 72
      %v2132 = vpop.permute.xlu0 %2131
      %v2133 = vsel %vm1408, %v2130, 0
      %v2135 = vsel %vm1408, %v2132, 0
      %2137 = vmatprep.subr.mxu0 0.0
      %2138 = vmatpush1.xpose.msra.mxu0 %v2135
      %2139 = vmatprep.subr.mxu0 0.0
      %2140 = vmatpush1.xpose.msra.mxu0 0.0
      %2141 = vmatprep.subr.mxu0 0.0
      %2142 = vmatpush1.xpose.msra.mxu0 0.0
      %2143 = vmatprep.subr.mxu0 0.0
      %2144 = vmatpush1.xpose.msra.mxu0 0.0
      %2145 = vmatprep.subr.mxu0 0.0
      %2146 = vmatpush1.xpose.msra.mxu0 0.0
      %2147 = vmatprep.subr.mxu0 0.0
      %2148 = vmatpush1.xpose.msra.mxu0 0.0
      %2149 = vmatprep.subr.mxu0 0.0
      %2150 = vmatpush1.xpose.msra.mxu0 0.0
      %2151 = vmatprep.subr.mxu0 0.0
      %2152 = vmatpush1.xpose.msra.mxu0 0.0
      %2153 = vmatprep.subr.mxu0 0.0
      %2154 = vmatpush1.xpose.msra.mxu0 0.0
      %2155 = vmatprep.subr.mxu0 0.0
      %2156 = vmatpush1.xpose.msra.mxu0 0.0
      %2157 = vmatprep.subr.mxu0 0.0
      %2158 = vmatpush1.xpose.msra.mxu0 0.0
      %2159 = vmatprep.subr.mxu0 0.0
      %2160 = vmatpush1.xpose.msra.mxu0 0.0
      %2161 = vmatprep.subr.mxu0 0.0
      %2162 = vmatpush1.xpose.msra.mxu0 0.0
      %2163 = vmatprep.subr.mxu0 0.0
      %2164 = vmatpush1.xpose.msra.mxu0 0.0
      %2165 = vmatprep.subr.mxu0 0.0
      %2166 = vmatpush1.xpose.msra.mxu0 0.0
      %2167 = vmatprep.subr.mxu0 0.0
      %2168 = vmatpush1.xpose.msra.mxu0 0.0
      %2169 = vmatprep.subr.mxu0 0.0
      %2170 = vmatpush1.xpose.msra.mxu0 0.0
      %2171 = vmatprep.subr.mxu0 0.0
      %2172 = vmatpush1.xpose.msra.mxu0 0.0
      %2173 = vmatprep.subr.mxu0 0.0
      %2174 = vmatpush1.xpose.msra.mxu0 0.0
      %2175 = vmatprep.subr.mxu0 0.0
      %2176 = vmatpush1.xpose.msra.mxu0 0.0
      %2177 = vmatprep.subr.mxu0 0.0
      %2178 = vmatpush1.xpose.msra.mxu0 0.0
      %2179 = vmatprep.subr.mxu0 0.0
      %2180 = vmatpush1.xpose.msra.mxu0 0.0
      %2181 = vmatprep.subr.mxu0 0.0
      %2182 = vmatpush1.xpose.msra.mxu0 0.0
      %2183 = vmatprep.subr.mxu0 0.0
      %2184 = vmatpush1.xpose.msra.mxu0 0.0
      %2185 = vmatprep.subr.mxu0 0.0
      %2186 = vmatpush1.xpose.msra.mxu0 0.0
      %2187 = vmatprep.subr.mxu0 0.0
      %2188 = vmatpush1.xpose.msra.mxu0 0.0
      %2189 = vmatprep.subr.mxu0 0.0
      %2190 = vmatpush1.xpose.msra.mxu0 0.0
      %2191 = vmatprep.subr.mxu0 0.0
      %2192 = vmatpush1.xpose.msra.mxu0 0.0
      %2193 = vmatprep.subr.mxu0 0.0
      %2194 = vmatpush1.xpose.msra.mxu0 0.0
      %2195 = vmatprep.subr.mxu0 0.0
      %2196 = vmatpush1.xpose.msra.mxu0 0.0
      %2197 = vmatprep.subr.mxu0 0.0
      %2198 = vmatpush1.xpose.msra.mxu0 0.0
      %2199 = vmatprep.subr.mxu0 0.0
      %2200 = vmatpush1.xpose.msra.mxu0 0.0
      %2201 = vmatprep.mubr.f32.mxu0 0.0
      %2202 = vmatmul.mubr.f32.gmra.mrb[0].mxu0 %v2133
      %v2203 = vpop.f32.mrb[0].mxu0
      %v2204 = vadd.f32 0.0, %v2203
      %v2205 = vpop.f32.mrb[0].mxu0
      %2206 = vdwg.mxu0
      %v2207 = vmul.f32 %v2204, 0.35355338
      %v2208 = vsel %vm1289, %v2207, -1e+30
      %v2209 = vsel %vm1408, %v2208, -inf
      %2210 = vmax.xlane.f32.xlu0 %v2209
      %v2211 = vpop.xlane.xlu0 %2210
      %v2212 = vsub.f32 %v2208, %v2211
      %v2213 = vmul.f32 %v2212, 1.442695
      %v2214 = vpow.pop %v2213
      %v2215 = vsel %vm1408, %v2214, 0.0
      %2216 = vadd.xlane.f32.xlu0 %v2215
      %v2217 = vpop.xlane.xlu0 %2216
      %v2218 = vrcp.pop %v2217
      %v2219 = vmul.f32 %v2214, %v2218
      %2220 = vrot.lane.b32.xlu0 %v1402, 40
      %v2221 = vpop.permute.xlu0 %2220
      %v2224 = vsel %vm1408, %v2219, 0
      %2226 = vmatprep.subr.mxu0 0.0
      %2227 = vmatpush1.msra.mxu0 %v2221
      %2228 = vmatprep.subr.mxu0 0.0
      %2229 = vmatpush1.msra.mxu0 0.0
      %2230 = vmatprep.subr.mxu0 0.0
      %2231 = vmatpush1.msra.mxu0 0.0
      %2232 = vmatprep.subr.mxu0 0.0
      %2233 = vmatpush1.msra.mxu0 0.0
      %2234 = vmatprep.subr.mxu0 0.0
      %2235 = vmatpush1.msra.mxu0 0.0
      %2236 = vmatprep.subr.mxu0 0.0
      %2237 = vmatpush1.msra.mxu0 0.0
      %2238 = vmatprep.subr.mxu0 0.0
      %2239 = vmatpush1.msra.mxu0 0.0
      %2240 = vmatprep.subr.mxu0 0.0
      %2241 = vmatpush1.msra.mxu0 0.0
      %2242 = vmatprep.subr.mxu0 0.0
      %2243 = vmatpush1.msra.mxu0 0.0
      %2244 = vmatprep.subr.mxu0 0.0
      %2245 = vmatpush1.msra.mxu0 0.0
      %2246 = vmatprep.subr.mxu0 0.0
      %2247 = vmatpush1.msra.mxu0 0.0
      %2248 = vmatprep.subr.mxu0 0.0
      %2249 = vmatpush1.msra.mxu0 0.0
      %2250 = vmatprep.subr.mxu0 0.0
      %2251 = vmatpush1.msra.mxu0 0.0
      %2252 = vmatprep.subr.mxu0 0.0
      %2253 = vmatpush1.msra.mxu0 0.0
      %2254 = vmatprep.subr.mxu0 0.0
      %2255 = vmatpush1.msra.mxu0 0.0
      %2256 = vmatprep.subr.mxu0 0.0
      %2257 = vmatpush1.msra.mxu0 0.0
      %2258 = vmatprep.subr.mxu0 0.0
      %2259 = vmatpush1.msra.mxu0 0.0
      %2260 = vmatprep.subr.mxu0 0.0
      %2261 = vmatpush1.msra.mxu0 0.0
      %2262 = vmatprep.subr.mxu0 0.0
      %2263 = vmatpush1.msra.mxu0 0.0
      %2264 = vmatprep.subr.mxu0 0.0
      %2265 = vmatpush1.msra.mxu0 0.0
      %2266 = vmatprep.subr.mxu0 0.0
      %2267 = vmatpush1.msra.mxu0 0.0
      %2268 = vmatprep.subr.mxu0 0.0
      %2269 = vmatpush1.msra.mxu0 0.0
      %2270 = vmatprep.subr.mxu0 0.0
      %2271 = vmatpush1.msra.mxu0 0.0
      %2272 = vmatprep.subr.mxu0 0.0
      %2273 = vmatpush1.msra.mxu0 0.0
      %2274 = vmatprep.subr.mxu0 0.0
      %2275 = vmatpush1.msra.mxu0 0.0
      %2276 = vmatprep.subr.mxu0 0.0
      %2277 = vmatpush1.msra.mxu0 0.0
      %2278 = vmatprep.subr.mxu0 0.0
      %2279 = vmatpush1.msra.mxu0 0.0
      %2280 = vmatprep.subr.mxu0 0.0
      %2281 = vmatpush1.msra.mxu0 0.0
      %2282 = vmatprep.subr.mxu0 0.0
      %2283 = vmatpush1.msra.mxu0 0.0
      %2284 = vmatprep.subr.mxu0 0.0
      %2285 = vmatpush1.msra.mxu0 0.0
      %2286 = vmatprep.subr.mxu0 0.0
      %2287 = vmatpush1.msra.mxu0 0.0
      %2288 = vmatprep.subr.mxu0 0.0
      %2289 = vmatpush1.msra.mxu0 0.0
      %2290 = vmatprep.mubr.f32.mxu0 0.0
      %2291 = vmatmul.mubr.f32.gmra.mrb[0].mxu0 %v2224
      %v2292 = vpop.f32.mrb[0].mxu0
      %v2293 = vadd.f32 0.0, %v2292
      %v2294 = vpop.f32.mrb[0].mxu0
      %2295 = vdwg.mxu0
      %v2296 = vld [vmem:[%s15 + $0x18] sm:$0xff]
      %v2298 = vsel %vm1408, %v2293, 0
      %2300 = vmatprep.subr.mxu0 0.0
      %2301 = vmatpush1.msra.mxu0 %v2296
      %2302 = vmatprep.subr.mxu0 0.0
      %2303 = vmatpush1.msra.mxu0 0.0
      %2304 = vmatprep.subr.mxu0 0.0
      %2305 = vmatpush1.msra.mxu0 0.0
      %2306 = vmatprep.subr.mxu0 0.0
      %2307 = vmatpush1.msra.mxu0 0.0
      %2308 = vmatprep.subr.mxu0 0.0
      %2309 = vmatpush1.msra.mxu0 0.0
      %2310 = vmatprep.subr.mxu0 0.0
      %2311 = vmatpush1.msra.mxu0 0.0
      %2312 = vmatprep.subr.mxu0 0.0
      %2313 = vmatpush1.msra.mxu0 0.0
      %2314 = vmatprep.subr.mxu0 0.0
      %2315 = vmatpush1.msra.mxu0 0.0
      %2316 = vmatprep.subr.mxu0 0.0
      %2317 = vmatpush1.msra.mxu0 0.0
      %2318 = vmatprep.subr.mxu0 0.0
      %2319 = vmatpush1.msra.mxu0 0.0
      %2320 = vmatprep.subr.mxu0 0.0
      %2321 = vmatpush1.msra.mxu0 0.0
      %2322 = vmatprep.subr.mxu0 0.0
      %2323 = vmatpush1.msra.mxu0 0.0
      %2324 = vmatprep.subr.mxu0 0.0
      %2325 = vmatpush1.msra.mxu0 0.0
      %2326 = vmatprep.subr.mxu0 0.0
      %2327 = vmatpush1.msra.mxu0 0.0
      %2328 = vmatprep.subr.mxu0 0.0
      %2329 = vmatpush1.msra.mxu0 0.0
      %2330 = vmatprep.subr.mxu0 0.0
      %2331 = vmatpush1.msra.mxu0 0.0
      %2332 = vmatprep.subr.mxu0 0.0
      %2333 = vmatpush1.msra.mxu0 0.0
      %2334 = vmatprep.subr.mxu0 0.0
      %2335 = vmatpush1.msra.mxu0 0.0
      %2336 = vmatprep.subr.mxu0 0.0
      %2337 = vmatpush1.msra.mxu0 0.0
      %2338 = vmatprep.subr.mxu0 0.0
      %2339 = vmatpush1.msra.mxu0 0.0
      %2340 = vmatprep.subr.mxu0 0.0
      %2341 = vmatpush1.msra.mxu0 0.0
      %2342 = vmatprep.subr.mxu0 0.0
      %2343 = vmatpush1.msra.mxu0 0.0
      %2344 = vmatprep.subr.mxu0 0.0
      %2345 = vmatpush1.msra.mxu0 0.0
      %2346 = vmatprep.subr.mxu0 0.0
      %2347 = vmatpush1.msra.mxu0 0.0
      %2348 = vmatprep.subr.mxu0 0.0
      %2349 = vmatpush1.msra.mxu0 0.0
      %2350 = vmatprep.subr.mxu0 0.0
      %2351 = vmatpush1.msra.mxu0 0.0
      %2352 = vmatprep.subr.mxu0 0.0
      %2353 = vmatpush1.msra.mxu0 0.0
      %2354 = vmatprep.subr.mxu0 0.0
      %2355 = vmatpush1.msra.mxu0 0.0
      %2356 = vmatprep.subr.mxu0 0.0
      %2357 = vmatpush1.msra.mxu0 0.0
      %2358 = vmatprep.subr.mxu0 0.0
      %2359 = vmatpush1.msra.mxu0 0.0
      %2360 = vmatprep.subr.mxu0 0.0
      %2361 = vmatpush1.msra.mxu0 0.0
      %2362 = vmatprep.subr.mxu0 0.0
      %2363 = vmatpush1.msra.mxu0 0.0
      %2364 = vmatprep.mubr.f32.mxu0 0.0
      %2365 = vmatmul.mubr.f32.gmra.mrb[0].mxu0 %v2298
      %v2366 = vpop.f32.mrb[0].mxu0
      %v2367 = vadd.f32 0.0, %v2366
      %v2368 = vpop.f32.mrb[0].mxu0
      %2369 = vdwg.mxu0
      %v2370 = vadd.f32 %v2128, %v2367
      %v2371 = vadd.f32 %v1284, %v2370
      %v2372 = vld [vmem:[%s17] sm:$0x1]
      %v2374 = vlaneseq
      %v2375 = vshrl.u32 %v2374, 7
      %v2376 = vsub.s32 0, %v2375
      %v2377 = vrot.slane %v2372, %v2376
      %v2379 = vadd.f32 %v2371, %v2377
      %v2380 = vld [vmem:[%s19] sm:$0x1]
      %v2381 = vld [vmem:[%s21] sm:$0x1]
      %v2382 = vsel %vm1292, %v2379, 0.0
      %2383 = vadd.xlane.f32.xlu0 %v2382
      %v2384 = vpop.xlane.xlu0 %2383
      %v2385 = vmul.f32 %v2384, %v1296
      %v2386 = vsub.f32 %v2379, %v2385
      %v2387 = vmul.f32 %v2386, %v2386
      %v2388 = vsel %vm1292, %v2387, 0.0
      %2389 = vadd.xlane.f32.xlu0 %v2388
      %v2390 = vpop.xlane.xlu0 %2389
      %v2391 = vmul.f32 %v2390, %v1296
      %v2392 = vadd.f32 %v2391, 1e-06
      %v2393 = vrsqrt.pop %v2392
      %v2394 = vmul.f32 %v2386, %v2393
      %v2396 = vlaneseq
      %v2397 = vshrl.u32 %v2396, 7
      %v2398 = vsub.s32 0, %v2397
      %v2399 = vrot.slane %v2380, %v2398
      %v2401 = vmul.f32 %v2394, %v2399
      %v2403 = vlaneseq
      %v2404 = vshrl.u32 %v2403, 7
      %v2405 = vsub.s32 0, %v2404
      %v2406 = vrot.slane %v2381, %v2405
      %v2408 = vadd.f32 %v2401, %v2406
      %v2409 = vld [vmem:[%s23] sm:$0xff]
      %v2410 = vld [vmem:[%s23 + $0x8] sm:$0xff]
      %v2411 = vld [vmem:[%s23 + $0x10] sm:$0xff]
      %v2412 = vld [vmem:[%s23 + $0x18] sm:$0xff]
      %v2413 = vld [vmem:[%s25] sm:$0x1]
      %v2415 = vlaneseq
      %v2416 = vshrl.u32 %v2415, 7
      %v2417 = vsub.s32 0, %v2416
      %v2418 = vrot.slane %v2413, %v2417
      %v2421 = vsel %vm1292, %v2408, 0
      %2423 = vmatprep.subr.mxu0 0.0
      %2424 = vmatpush1.msra.mxu0 %v2409
      %2425 = vmatprep.subr.mxu0 0.0
      %2426 = vmatpush1.msra.mxu0 %v2410
      %2427 = vmatprep.subr.mxu0 0.0
      %2428 = vmatpush1.msra.mxu0 %v2411
      %2429 = vmatprep.subr.mxu0 0.0
      %2430 = vmatpush1.msra.mxu0 %v2412
      %2431 = vmatprep.subr.mxu0 0.0
      %2432 = vmatpush1.msra.mxu0 0.0
      %2433 = vmatprep.subr.mxu0 0.0
      %2434 = vmatpush1.msra.mxu0 0.0
      %2435 = vmatprep.subr.mxu0 0.0
      %2436 = vmatpush1.msra.mxu0 0.0
      %2437 = vmatprep.subr.mxu0 0.0
      %2438 = vmatpush1.msra.mxu0 0.0
      %2439 = vmatprep.subr.mxu0 0.0
      %2440 = vmatpush1.msra.mxu0 0.0
      %2441 = vmatprep.subr.mxu0 0.0
      %2442 = vmatpush1.msra.mxu0 0.0
      %2443 = vmatprep.subr.mxu0 0.0
      %2444 = vmatpush1.msra.mxu0 0.0
      %2445 = vmatprep.subr.mxu0 0.0
      %2446 = vmatpush1.msra.mxu0 0.0
      %2447 = vmatprep.subr.mxu0 0.0
      %2448 = vmatpush1.msra.mxu0 0.0
      %2449 = vmatprep.subr.mxu0 0.0
      %2450 = vmatpush1.msra.mxu0 0.0
      %2451 = vmatprep.subr.mxu0 0.0
      %2452 = vmatpush1.msra.mxu0 0.0
      %2453 = vmatprep.subr.mxu0 0.0
      %2454 = vmatpush1.msra.mxu0 0.0
      %2455 = vmatprep.subr.mxu0 0.0
      %2456 = vmatpush1.msra.mxu0 0.0
      %2457 = vmatprep.subr.mxu0 0.0
      %2458 = vmatpush1.msra.mxu0 0.0
      %2459 = vmatprep.subr.mxu0 0.0
      %2460 = vmatpush1.msra.mxu0 0.0
      %2461 = vmatprep.subr.mxu0 0.0
      %2462 = vmatpush1.msra.mxu0 0.0
      %2463 = vmatprep.subr.mxu0 0.0
      %2464 = vmatpush1.msra.mxu0 0.0
      %2465 = vmatprep.subr.mxu0 0.0
      %2466 = vmatpush1.msra.mxu0 0.0
      %2467 = vmatprep.subr.mxu0 0.0
      %2468 = vmatpush1.msra.mxu0 0.0
      %2469 = vmatprep.subr.mxu0 0.0
      %2470 = vmatpush1.msra.mxu0 0.0
      %2471 = vmatprep.subr.mxu0 0.0
      %2472 = vmatpush1.msra.mxu0 0.0
      %2473 = vmatprep.subr.mxu0 0.0
      %2474 = vmatpush1.msra.mxu0 0.0
      %2475 = vmatprep.subr.mxu0 0.0
      %2476 = vmatpush1.msra.mxu0 0.0
      %2477 = vmatprep.subr.mxu0 0.0
      %2478 = vmatpush1.msra.mxu0 0.0
      %2479 = vmatprep.subr.mxu0 0.0
      %2480 = vmatpush1.msra.mxu0 0.0
      %2481 = vmatprep.subr.mxu0 0.0
      %2482 = vmatpush1.msra.mxu0 0.0
      %2483 = vmatprep.subr.mxu0 0.0
      %2484 = vmatpush1.msra.mxu0 0.0
      %2485 = vmatprep.subr.mxu0 0.0
      %2486 = vmatpush1.msra.mxu0 0.0
      %2487 = vmatprep.mubr.f32.mxu0 0.0
      %2488 = vmatmul.mubr.f32.gmra.mrb[0].mxu0 %v2421
      %v2489 = vpop.f32.mrb[0].mxu0
      %v2490 = vadd.f32 %v2418, %v2489
      %v2491 = vpop.f32.mrb[0].mxu0
      %2492 = vdwg.mxu0
      %v2493 = vmul.f32 %v2490, %v2490
      %v2494 = vmul.f32 %v2490, %v2493
      %v2495 = vmul.f32 %v2494, 0.044715
      %v2496 = vadd.f32 %v2490, %v2495
      %v2497 = vmul.f32 %v2496, 0.7978846
      %v2498 = vtanh.pop %v2497
      %v2499 = vadd.f32 %v2498, 1.0
      %v2500 = vmul.f32 %v2499, 0.5
      %v2501 = vmul.f32 %v2490, %v2500
      %v2502 = vld [vmem:[%s27] sm:$0xff]
      %v2503 = vld [vmem:[%s27 + $0x8] sm:$0xff]
      %v2504 = vld [vmem:[%s27 + $0x10] sm:$0xff]
      %v2505 = vld [vmem:[%s27 + $0x18] sm:$0xff]
      %v2506 = vld [vmem:[%s27 + $0x20] sm:$0xff]
      %v2507 = vld [vmem:[%s27 + $0x28] sm:$0xff]
      %v2508 = vld [vmem:[%s27 + $0x30] sm:$0xff]
      %v2509 = vld [vmem:[%s27 + $0x38] sm:$0xff]
      %v2510 = vld [vmem:[%s29] sm:$0x1]
      %v2512 = vlaneseq
      %v2513 = vshrl.u32 %v2512, 7
      %v2514 = vsub.s32 0, %v2513
      %v2515 = vrot.slane %v2510, %v2514
      %vm2517 = vcmask 523264
      %v2519 = vsel %vm2517, %v2501, 0
      %2521 = vmatprep.subr.mxu0 0.0
      %2522 = vmatpush1.msra.mxu0 %v2502
      %2523 = vmatprep.subr.mxu0 0.0
      %2524 = vmatpush1.msra.mxu0 %v2503
      %2525 = vmatprep.subr.mxu0 0.0
      %2526 = vmatpush1.msra.mxu0 %v2504
      %2527 = vmatprep.subr.mxu0 0.0
      %2528 = vmatpush1.msra.mxu0 %v2505
      %2529 = vmatprep.subr.mxu0 0.0
      %2530 = vmatpush1.msra.mxu0 %v2506
      %2531 = vmatprep.subr.mxu0 0.0
      %2532 = vmatpush1.msra.mxu0 %v2507
      %2533 = vmatprep.subr.mxu0 0.0
      %2534 = vmatpush1.msra.mxu0 %v2508
      %2535 = vmatprep.subr.mxu0 0.0
      %2536 = vmatpush1.msra.mxu0 %v2509
      %2537 = vmatprep.subr.mxu0 0.0
      %2538 = vmatpush1.msra.mxu0 0.0
      %2539 = vmatprep.subr.mxu0 0.0
      %2540 = vmatpush1.msra.mxu0 0.0
      %2541 = vmatprep.subr.mxu0 0.0
      %2542 = vmatpush1.msra.mxu0 0.0
      %2543 = vmatprep.subr.mxu0 0.0
      %2544 = vmatpush1.msra.mxu0 0.0
      %2545 = vmatprep.subr.mxu0 0.0
      %2546 = vmatpush1.msra.mxu0 0.0
      %2547 = vmatprep.subr.mxu0 0.0
      %2548 = vmatpush1.msra.mxu0 0.0
      %2549 = vmatprep.subr.mxu0 0.0
      %2550 = vmatpush1.msra.mxu0 0.0
      %2551 = vmatprep.subr.mxu0 0.0
      %2552 = vmatpush1.msra.mxu0 0.0
      %2553 = vmatprep.subr.mxu0 0.0
      %2554 = vmatpush1.msra.mxu0 0.0
      %2555 = vmatprep.subr.mxu0 0.0
      %2556 = vmatpush1.msra.mxu0 0.0
      %2557 = vmatprep.subr.mxu0 0.0
      %2558 = vmatpush1.msra.mxu0 0.0
      %2559 = vmatprep.subr.mxu0 0.0
      %2560 = vmatpush1.msra.mxu0 0.0
      %2561 = vmatprep.subr.mxu0 0.0
      %2562 = vmatpush1.msra.mxu0 0.0
      %2563 = vmatprep.subr.mxu0 0.0
      %2564 = vmatpush1.msra.mxu0 0.0
      %2565 = vmatprep.subr.mxu0 0.0
      %2566 = vmatpush1.msra.mxu0 0.0
      %2567 = vmatprep.subr.mxu0 0.0
      %2568 = vmatpush1.msra.mxu0 0.0
      %2569 = vmatprep.subr.mxu0 0.0
      %2570 = vmatpush1.msra.mxu0 0.0
      %2571 = vmatprep.subr.mxu0 0.0
      %2572 = vmatpush1.msra.mxu0 0.0
      %2573 = vmatprep.subr.mxu0 0.0
      %2574 = vmatpush1.msra.mxu0 0.0
      %2575 = vmatprep.subr.mxu0 0.0
      %2576 = vmatpush1.msra.mxu0 0.0
      %2577 = vmatprep.subr.mxu0 0.0
      %2578 = vmatpush1.msra.mxu0 0.0
      %2579 = vmatprep.subr.mxu0 0.0
      %2580 = vmatpush1.msra.mxu0 0.0
      %2581 = vmatprep.subr.mxu0 0.0
      %2582 = vmatpush1.msra.mxu0 0.0
      %2583 = vmatprep.subr.mxu0 0.0
      %2584 = vmatpush1.msra.mxu0 0.0
      %2585 = vmatprep.mubr.f32.mxu0 0.0
      %2586 = vmatmul.mubr.f32.gmra.mrb[0].mxu0 %v2519
      %v2587 = vpop.f32.mrb[0].mxu0
      %v2588 = vadd.f32 %v2515, %v2587
      %v2589 = vpop.f32.mrb[0].mxu0
      %2590 = vdwg.mxu0
      %v2591 = vadd.f32 %v2379, %v2588
      %v2592 = vld [vmem:[%s31] sm:$0x1]
      %v2593 = vld [vmem:[%s33] sm:$0x1]
      %v2594 = vsel %vm1292, %v2591, 0.0
      %2595 = vadd.xlane.f32.xlu0 %v2594
      %v2596 = vpop.xlane.xlu0 %2595
      %v2597 = vmul.f32 %v2596, %v1296
      %v2598 = vsub.f32 %v2591, %v2597
      %v2599 = vmul.f32 %v2598, %v2598
      %v2600 = vsel %vm1292, %v2599, 0.0
      %2601 = vadd.xlane.f32.xlu0 %v2600
      %v2602 = vpop.xlane.xlu0 %2601
      %v2603 = vmul.f32 %v2602, %v1296
      %v2604 = vadd.f32 %v2603, 1e-06
      %v2605 = vrsqrt.pop %v2604
      %v2606 = vmul.f32 %v2598, %v2605
      %v2608 = vlaneseq
      %v2609 = vshrl.u32 %v2608, 7
      %v2610 = vsub.s32 0, %v2609
      %v2611 = vrot.slane %v2592, %v2610
      %v2613 = vmul.f32 %v2606, %v2611
      %v2615 = vlaneseq
      %v2616 = vshrl.u32 %v2615, 7
      %v2617 = vsub.s32 0, %v2616
      %v2618 = vrot.slane %v2593, %v2617
      %v2620 = vadd.f32 %v2613, %v2618
      %v2621 = vld [vmem:[%s35] sm:$0xff]
      %v2622 = vld [vmem:[%s35 + $0x8] sm:$0xff]
      %v2623 = vld [vmem:[%s35 + $0x10] sm:$0xff]
      %v2624 = vld [vmem:[%s35 + $0x18] sm:$0xff]
      %v2625 = vld [vmem:[%s37] sm:$0x1]
      %v2627 = vlaneseq
      %v2628 = vshrl.u32 %v2627, 7
      %v2629 = vsub.s32 0, %v2628
      %v2630 = vrot.slane %v2625, %v2629
      %v2633 = vsel %vm1292, %v2620, 0
      %2635 = vmatprep.subr.mxu0 0.0
      %2636 = vmatpush1.msra.mxu0 %v2621
      %2637 = vmatprep.subr.mxu0 0.0
      %2638 = vmatpush1.msra.mxu0 %v2622
      %2639 = vmatprep.subr.mxu0 0.0
      %2640 = vmatpush1.msra.mxu0 %v2623
      %2641 = vmatprep.subr.mxu0 0.0
      %2642 = vmatpush1.msra.mxu0 %v2624
      %2643 = vmatprep.subr.mxu0 0.0
      %2644 = vmatpush1.msra.mxu0 0.0
      %2645 = vmatprep.subr.mxu0 0.0
      %2646 = vmatpush1.msra.mxu0 0.0
      %2647 = vmatprep.subr.mxu0 0.0
      %2648 = vmatpush1.msra.mxu0 0.0
      %2649 = vmatprep.subr.mxu0 0.0
      %2650 = vmatpush1.msra.mxu0 0.0
      %2651 = vmatprep.subr.mxu0 0.0
      %2652 = vmatpush1.msra.mxu0 0.0
      %2653 = vmatprep.subr.mxu0 0.0
      %2654 = vmatpush1.msra.mxu0 0.0
      %2655 = vmatprep.subr.mxu0 0.0
      %2656 = vmatpush1.msra.mxu0 0.0
      %2657 = vmatprep.subr.mxu0 0.0
      %2658 = vmatpush1.msra.mxu0 0.0
      %2659 = vmatprep.subr.mxu0 0.0
      %2660 = vmatpush1.msra.mxu0 0.0
      %2661 = vmatprep.subr.mxu0 0.0
      %2662 = vmatpush1.msra.mxu0 0.0
      %2663 = vmatprep.subr.mxu0 0.0
      %2664 = vmatpush1.msra.mxu0 0.0
      %2665 = vmatprep.subr.mxu0 0.0
      %2666 = vmatpush1.msra.mxu0 0.0
      %2667 = vmatprep.subr.mxu0 0.0
      %2668 = vmatpush1.msra.mxu0 0.0
      %2669 = vmatprep.subr.mxu0 0.0
      %2670 = vmatpush1.msra.mxu0 0.0
      %2671 = vmatprep.subr.mxu0 0.0
      %2672 = vmatpush1.msra.mxu0 0.0
      %2673 = vmatprep.subr.mxu0 0.0
      %2674 = vmatpush1.msra.mxu0 0.0
      %2675 = vmatprep.subr.mxu0 0.0
      %2676 = vmatpush1.msra.mxu0 0.0
      %2677 = vmatprep.subr.mxu0 0.0
      %2678 = vmatpush1.msra.mxu0 0.0
      %2679 = vmatprep.subr.mxu0 0.0
      %2680 = vmatpush1.msra.mxu0 0.0
      %2681 = vmatprep.subr.mxu0 0.0
      %2682 = vmatpush1.msra.mxu0 0.0
      %2683 = vmatprep.subr.mxu0 0.0
      %2684 = vmatpush1.msra.mxu0 0.0
      %2685 = vmatprep.subr.mxu0 0.0
      %2686 = vmatpush1.msra.mxu0 0.0
      %2687 = vmatprep.subr.mxu0 0.0
      %2688 = vmatpush1.msra.mxu0 0.0
      %2689 = vmatprep.subr.mxu0 0.0
      %2690 = vmatpush1.msra.mxu0 0.0
      %2691 = vmatprep.subr.mxu0 0.0
      %2692 = vmatpush1.msra.mxu0 0.0
      %2693 = vmatprep.subr.mxu0 0.0
      %2694 = vmatpush1.msra.mxu0 0.0
      %2695 = vmatprep.subr.mxu0 0.0
      %2696 = vmatpush1.msra.mxu0 0.0
      %2697 = vmatprep.subr.mxu0 0.0
      %2698 = vmatpush1.msra.mxu0 0.0
      %2699 = vmatprep.mubr.f32.mxu0 0.0
      %2700 = vmatmul.mubr.f32.gmra.mrb[0].mxu0 %v2633
      %v2701 = vpop.f32.mrb[0].mxu0
      %v2702 = vadd.f32 %v2630, %v2701
      %v2703 = vpop.f32.mrb[0].mxu0
      %2704 = vdwg.mxu0
      %2706 = vrot.lane.b32.xlu0 %v2702, 96
      %v2707 = vpop.permute.xlu0 %2706
      %v2708 = vsel %vm1408, %v2702, 0
      %v2710 = vsel %vm1408, %v2707, 0
      %2712 = vmatprep.subr.mxu0 0.0
      %2713 = vmatpush1.xpose.msra.mxu0 %v2710
      %2714 = vmatprep.subr.mxu0 0.0
      %2715 = vmatpush1.xpose.msra.mxu0 0.0
      %2716 = vmatprep.subr.mxu0 0.0
      %2717 = vmatpush1.xpose.msra.mxu0 0.0
      %2718 = vmatprep.subr.mxu0 0.0
      %2719 = vmatpush1.xpose.msra.mxu0 0.0
      %2720 = vmatprep.subr.mxu0 0.0
      %2721 = vmatpush1.xpose.msra.mxu0 0.0
      %2722 = vmatprep.subr.mxu0 0.0
      %2723 = vmatpush1.xpose.msra.mxu0 0.0
      %2724 = vmatprep.subr.mxu0 0.0
      %2725 = vmatpush1.xpose.msra.mxu0 0.0
      %2726 = vmatprep.subr.mxu0 0.0
      %2727 = vmatpush1.xpose.msra.mxu0 0.0
      %2728 = vmatprep.subr.mxu0 0.0
      %2729 = vmatpush1.xpose.msra.mxu0 0.0
      %2730 = vmatprep.subr.mxu0 0.0
      %2731 = vmatpush1.xpose.msra.mxu0 0.0
      %2732 = vmatprep.subr.mxu0 0.0
      %2733 = vmatpush1.xpose.msra.mxu0 0.0
      %2734 = vmatprep.subr.mxu0 0.0
      %2735 = vmatpush1.xpose.msra.mxu0 0.0
      %2736 = vmatprep.subr.mxu0 0.0
      %2737 = vmatpush1.xpose.msra.mxu0 0.0
      %2738 = vmatprep.subr.mxu0 0.0
      %2739 = vmatpush1.xpose.msra.mxu0 0.0
      %2740 = vmatprep.subr.mxu0 0.0
      %2741 = vmatpush1.xpose.msra.mxu0 0.0
      %2742 = vmatprep.subr.mxu0 0.0
      %2743 = vmatpush1.xpose.msra.mxu0 0.0
      %2744 = vmatprep.subr.mxu0 0.0
      %2745 = vmatpush1.xpose.msra.mxu0 0.0
      %2746 = vmatprep.subr.mxu0 0.0
      %2747 = vmatpush1.xpose.msra.mxu0 0.0
      %2748 = vmatprep.subr.mxu0 0.0
      %2749 = vmatpush1.xpose.msra.mxu0 0.0
      %2750 = vmatprep.subr.mxu0 0.0
      %2751 = vmatpush1.xpose.msra.mxu0 0.0
      %2752 = vmatprep.subr.mxu0 0.0
      %2753 = vmatpush1.xpose.msra.mxu0 0.0
      %2754 = vmatprep.subr.mxu0 0.0
      %2755 = vmatpush1.xpose.msra.mxu0 0.0
      %2756 = vmatprep.subr.mxu0 0.0
      %2757 = vmatpush1.xpose.msra.mxu0 0.0
      %2758 = vmatprep.subr.mxu0 0.0
      %2759 = vmatpush1.xpose.msra.mxu0 0.0
      %2760 = vmatprep.subr.mxu0 0.0
      %2761 = vmatpush1.xpose.msra.mxu0 0.0
      %2762 = vmatprep.subr.mxu0 0.0
      %2763 = vmatpush1.xpose.msra.mxu0 0.0
      %2764 = vmatprep.subr.mxu0 0.0
      %2765 = vmatpush1.xpose.msra.mxu0 0.0
      %2766 = vmatprep.subr.mxu0 0.0
      %2767 = vmatpush1.xpose.msra.mxu0 0.0
      %2768 = vmatprep.subr.mxu0 0.0
      %2769 = vmatpush1.xpose.msra.mxu0 0.0
      %2770 = vmatprep.subr.mxu0 0.0
      %2771 = vmatpush1.xpose.msra.mxu0 0.0
      %2772 = vmatprep.subr.mxu0 0.0
      %2773 = vmatpush1.xpose.msra.mxu0 0.0
      %2774 = vmatprep.subr.mxu0 0.0
      %2775 = vmatpush1.xpose.msra.mxu0 0.0
      %2776 = vmatprep.mubr.f32.mxu0 0.0
      %2777 = vmatmul.mubr.f32.gmra.mrb[0].mxu0 %v2708
      %v2778 = vpop.f32.mrb[0].mxu0
      %v2779 = vadd.f32 0.0, %v2778
      %v2780 = vpop.f32.mrb[0].mxu0
      %2781 = vdwg.mxu0
      %v2782 = vmul.f32 %v2779, 0.35355338
      %v2783 = vsel %vm1289, %v2782, -1e+30
      %v2784 = vsel %vm1408, %v2783, -inf
      %2785 = vmax.xlane.f32.xlu0 %v2784
      %v2786 = vpop.xlane.xlu0 %2785
      %v2787 = vsub.f32 %v2783, %v2786
      %v2788 = vmul.f32 %v2787, 1.442695
      %v2789 = vpow.pop %v2788
      %v2790 = vsel %vm1408, %v2789, 0.0
      %2791 = vadd.xlane.f32.xlu0 %v2790
      %v2792 = vpop.xlane.xlu0 %2791
      %v2793 = vrcp.pop %v2792
      %v2794 = vmul.f32 %v2789, %v2793
      %2795 = vrot.lane.b32.xlu0 %v2702, 64
      %v2796 = vpop.permute.xlu0 %2795
      %v2799 = vsel %vm1408, %v2794, 0
      %2801 = vmatprep.subr.mxu0 0.0
      %2802 = vmatpush1.msra.mxu0 %v2796
      %2803 = vmatprep.subr.mxu0 0.0
      %2804 = vmatpush1.msra.mxu0 0.0
      %2805 = vmatprep.subr.mxu0 0.0
      %2806 = vmatpush1.msra.mxu0 0.0
      %2807 = vmatprep.subr.mxu0 0.0
      %2808 = vmatpush1.msra.mxu0 0.0
      %2809 = vmatprep.subr.mxu0 0.0
      %2810 = vmatpush1.msra.mxu0 0.0
      %2811 = vmatprep.subr.mxu0 0.0
      %2812 = vmatpush1.msra.mxu0 0.0
      %2813 = vmatprep.subr.mxu0 0.0
      %2814 = vmatpush1.msra.mxu0 0.0
      %2815 = vmatprep.subr.mxu0 0.0
      %2816 = vmatpush1.msra.mxu0 0.0
      %2817 = vmatprep.subr.mxu0 0.0
      %2818 = vmatpush1.msra.mxu0 0.0
      %2819 = vmatprep.subr.mxu0 0.0
      %2820 = vmatpush1.msra.mxu0 0.0
      %2821 = vmatprep.subr.mxu0 0.0
      %2822 = vmatpush1.msra.mxu0 0.0
      %2823 = vmatprep.subr.mxu0 0.0
      %2824 = vmatpush1.msra.mxu0 0.0
      %2825 = vmatprep.subr.mxu0 0.0
      %2826 = vmatpush1.msra.mxu0 0.0
      %2827 = vmatprep.subr.mxu0 0.0
      %2828 = vmatpush1.msra.mxu0 0.0
      %2829 = vmatprep.subr.mxu0 0.0
      %2830 = vmatpush1.msra.mxu0 0.0
      %2831 = vmatprep.subr.mxu0 0.0
      %2832 = vmatpush1.msra.mxu0 0.0
      %2833 = vmatprep.subr.mxu0 0.0
      %2834 = vmatpush1.msra.mxu0 0.0
      %2835 = vmatprep.subr.mxu0 0.0
      %2836 = vmatpush1.msra.mxu0 0.0
      %2837 = vmatprep.subr.mxu0 0.0
      %2838 = vmatpush1.msra.mxu0 0.0
      %2839 = vmatprep.subr.mxu0 0.0
      %2840 = vmatpush1.msra.mxu0 0.0
      %2841 = vmatprep.subr.mxu0 0.0
      %2842 = vmatpush1.msra.mxu0 0.0
      %2843 = vmatprep.subr.mxu0 0.0
      %2844 = vmatpush1.msra.mxu0 0.0
      %2845 = vmatprep.subr.mxu0 0.0
      %2846 = vmatpush1.msra.mxu0 0.0
      %2847 = vmatprep.subr.mxu0 0.0
      %2848 = vmatpush1.msra.mxu0 0.0
      %2849 = vmatprep.subr.mxu0 0.0
      %2850 = vmatpush1.msra.mxu0 0.0
      %2851 = vmatprep.subr.mxu0 0.0
      %2852 = vmatpush1.msra.mxu0 0.0
      %2853 = vmatprep.subr.mxu0 0.0
      %2854 = vmatpush1.msra.mxu0 0.0
      %2855 = vmatprep.subr.mxu0 0.0
      %2856 = vmatpush1.msra.mxu0 0.0
      %2857 = vmatprep.subr.mxu0 0.0
      %2858 = vmatpush1.msra.mxu0 0.0
      %2859 = vmatprep.subr.mxu0 0.0
      %2860 = vmatpush1.msra.mxu0 0.0
      %2861 = vmatprep.subr.mxu0 0.0
      %2862 = vmatpush1.msra.mxu0 0.0
      %2863 = vmatprep.subr.mxu0 0.0
      %2864 = vmatpush1.msra.mxu0 0.0
      %2865 = vmatprep.mubr.f32.mxu0 0.0
      %2866 = vmatmul.mubr.f32.gmra.mrb[0].mxu0 %v2799
      %v2867 = vpop.f32.mrb[0].mxu0
      %v2868 = vadd.f32 0.0, %v2867
      %v2869 = vpop.f32.mrb[0].mxu0
      %2870 = vdwg.mxu0
      %v2871 = vld [vmem:[%s39] sm:$0xff]
      %2872 = vrot.lane.b32.xlu0 %v2702, 120
      %v2873 = vpop.permute.xlu0 %2872
      %2874 = vrot.lane.b32.xlu0 %v2702, 88
      %v2875 = vpop.permute.xlu0 %2874
      %v2876 = vsel %vm1408, %v2873, 0
      %v2878 = vsel %vm1408, %v2875, 0
      %2880 = vmatprep.subr.mxu0 0.0
      %2881 = vmatpush1.xpose.msra.mxu0 %v2878
      %2882 = vmatprep.subr.mxu0 0.0
      %2883 = vmatpush1.xpose.msra.mxu0 0.0
      %2884 = vmatprep.subr.mxu0 0.0
      %2885 = vmatpush1.xpose.msra.mxu0 0.0
      %2886 = vmatprep.subr.mxu0 0.0
      %2887 = vmatpush1.xpose.msra.mxu0 0.0
      %2888 = vmatprep.subr.mxu0 0.0
      %2889 = vmatpush1.xpose.msra.mxu0 0.0
      %2890 = vmatprep.subr.mxu0 0.0
      %2891 = vmatpush1.xpose.msra.mxu0 0.0
      %2892 = vmatprep.subr.mxu0 0.0
      %2893 = vmatpush1.xpose.msra.mxu0 0.0
      %2894 = vmatprep.subr.mxu0 0.0
      %2895 = vmatpush1.xpose.msra.mxu0 0.0
      %2896 = vmatprep.subr.mxu0 0.0
      %2897 = vmatpush1.xpose.msra.mxu0 0.0
      %2898 = vmatprep.subr.mxu0 0.0
      %2899 = vmatpush1.xpose.msra.mxu0 0.0
      %2900 = vmatprep.subr.mxu0 0.0
      %2901 = vmatpush1.xpose.msra.mxu0 0.0
      %2902 = vmatprep.subr.mxu0 0.0
      %2903 = vmatpush1.xpose.msra.mxu0 0.0
      %2904 = vmatprep.subr.mxu0 0.0
      %2905 = vmatpush1.xpose.msra.mxu0 0.0
      %2906 = vmatprep.subr.mxu0 0.0
      %2907 = vmatpush1.xpose.msra.mxu0 0.0
      %2908 = vmatprep.subr.mxu0 0.0
      %2909 = vmatpush1.xpose.msra.mxu0 0.0
      %2910 = vmatprep.subr.mxu0 0.0
      %2911 = vmatpush1.xpose.msra.mxu0 0.0
      %2912 = vmatprep.subr.mxu0 0.0
      %2913 = vmatpush1.xpose.msra.mxu0 0.0
      %2914 = vmatprep.subr.mxu0 0.0
      %2915 = vmatpush1.xpose.msra.mxu0 0.0
      %2916 = vmatprep.subr.mxu0 0.0
      %2917 = vmatpush1.xpose.msra.mxu0 0.0
      %2918 = vmatprep.subr.mxu0 0.0
      %2919 = vmatpush1.xpose.msra.mxu0 0.0
      %2920 = vmatprep.subr.mxu0 0.0
      %2921 = vmatpush1.xpose.msra.mxu0 0.0
      %2922 = vmatprep.subr.mxu0 0.0
      %2923 = vmatpush1.xpose.msra.mxu0 0.0
      %2924 = vmatprep.subr.mxu0 0.0
      %2925 = vmatpush1.xpose.msra.mxu0 0.0
      %2926 = vmatprep.subr.mxu0 0.0
      %2927 = vmatpush1.xpose.msra.mxu0 0.0
      %2928 = vmatprep.subr.mxu0 0.0
      %2929 = vmatpush1.xpose.msra.mxu0 0.0
      %2930 = vmatprep.subr.mxu0 0.0
      %2931 = vmatpush1.xpose.msra.mxu0 0.0
      %2932 = vmatprep.subr.mxu0 0.0
      %2933 = vmatpush1.xpose.msra.mxu0 0.0
      %2934 = vmatprep.subr.mxu0 0.0
      %2935 = vmatpush1.xpose.msra.mxu0 0.0
      %2936 = vmatprep.subr.mxu0 0.0
      %2937 = vmatpush1.xpose.msra.mxu0 0.0
      %2938 = vmatprep.subr.mxu0 0.0
      %2939 = vmatpush1.xpose.msra.mxu0 0.0
      %2940 = vmatprep.subr.mxu0 0.0
      %2941 = vmatpush1.xpose.msra.mxu0 0.0
      %2942 = vmatprep.subr.mxu0 0.0
      %2943 = vmatpush1.xpose.msra.mxu0 0.0
      %2944 = vmatprep.mubr.f32.mxu0 0.0
      %2945 = vmatmul.mubr.f32.gmra.mrb[0].mxu0 %v2876
      %v2946 = vpop.f32.mrb[0].mxu0
      %v2947 = vadd.f32 0.0, %v2946
      %v2948 = vpop.f32.mrb[0].mxu0
      %2949 = vdwg.mxu0
      %v2950 = vmul.f32 %v2947, 0.35355338
      %v2951 = vsel %vm1289, %v2950, -1e+30
      %v2952 = vsel %vm1408, %v2951, -inf
      %2953 = vmax.xlane.f32.xlu0 %v2952
      %v2954 = vpop.xlane.xlu0 %2953
      %v2955 = vsub.f32 %v2951, %v2954
      %v2956 = vmul.f32 %v2955, 1.442695
      %v2957 = vpow.pop %v2956
      %v2958 = vsel %vm1408, %v2957, 0.0
      %2959 = vadd.xlane.f32.xlu0 %v2958
      %v2960 = vpop.xlane.xlu0 %2959
      %v2961 = vrcp.pop %v2960
      %v2962 = vmul.f32 %v2957, %v2961
      %2963 = vrot.lane.b32.xlu0 %v2702, 56
      %v2964 = vpop.permute.xlu0 %2963
      %v2967 = vsel %vm1408, %v2962, 0
      %2969 = vmatprep.subr.mxu0 0.0
      %2970 = vmatpush1.msra.mxu0 %v2964
      %2971 = vmatprep.subr.mxu0 0.0
      %2972 = vmatpush1.msra.mxu0 0.0
      %2973 = vmatprep.subr.mxu0 0.0
      %2974 = vmatpush1.msra.mxu0 0.0
      %2975 = vmatprep.subr.mxu0 0.0
      %2976 = vmatpush1.msra.mxu0 0.0
      %2977 = vmatprep.subr.mxu0 0.0
      %2978 = vmatpush1.msra.mxu0 0.0
      %2979 = vmatprep.subr.mxu0 0.0
      %2980 = vmatpush1.msra.mxu0 0.0
      %2981 = vmatprep.subr.mxu0 0.0
      %2982 = vmatpush1.msra.mxu0 0.0
      %2983 = vmatprep.subr.mxu0 0.0
      %2984 = vmatpush1.msra.mxu0 0.0
      %2985 = vmatprep.subr.mxu0 0.0
      %2986 = vmatpush1.msra.mxu0 0.0
      %2987 = vmatprep.subr.mxu0 0.0
      %2988 = vmatpush1.msra.mxu0 0.0
      %2989 = vmatprep.subr.mxu0 0.0
      %2990 = vmatpush1.msra.mxu0 0.0
      %2991 = vmatprep.subr.mxu0 0.0
      %2992 = vmatpush1.msra.mxu0 0.0
      %2993 = vmatprep.subr.mxu0 0.0
      %2994 = vmatpush1.msra.mxu0 0.0
      %2995 = vmatprep.subr.mxu0 0.0
      %2996 = vmatpush1.msra.mxu0 0.0
      %2997 = vmatprep.subr.mxu0 0.0
      %2998 = vmatpush1.msra.mxu0 0.0
      %2999 = vmatprep.subr.mxu0 0.0
      %3000 = vmatpush1.msra.mxu0 0.0
      %3001 = vmatprep.subr.mxu0 0.0
      %3002 = vmatpush1.msra.mxu0 0.0
      %3003 = vmatprep.subr.mxu0 0.0
      %3004 = vmatpush1.msra.mxu0 0.0
      %3005 = vmatprep.subr.mxu0 0.0
      %3006 = vmatpush1.msra.mxu0 0.0
      %3007 = vmatprep.subr.mxu0 0.0
      %3008 = vmatpush1.msra.mxu0 0.0
      %3009 = vmatprep.subr.mxu0 0.0
      %3010 = vmatpush1.msra.mxu0 0.0
      %3011 = vmatprep.subr.mxu0 0.0
      %3012 = vmatpush1.msra.mxu0 0.0
      %3013 = vmatprep.subr.mxu0 0.0
      %3014 = vmatpush1.msra.mxu0 0.0
      %3015 = vmatprep.subr.mxu0 0.0
      %3016 = vmatpush1.msra.mxu0 0.0
      %3017 = vmatprep.subr.mxu0 0.0
      %3018 = vmatpush1.msra.mxu0 0.0
      %3019 = vmatprep.subr.mxu0 0.0
      %3020 = vmatpush1.msra.mxu0 0.0
      %3021 = vmatprep.subr.mxu0 0.0
      %3022 = vmatpush1.msra.mxu0 0.0
      %3023 = vmatprep.subr.mxu0 0.0
      %3024 = vmatpush1.msra.mxu0 0.0
      %3025 = vmatprep.subr.mxu0 0.0
      %3026 = vmatpush1.msra.mxu0 0.0
      %3027 = vmatprep.subr.mxu0 0.0
      %3028 = vmatpush1.msra.mxu0 0.0
      %3029 = vmatprep.subr.mxu0 0.0
      %3030 = vmatpush1.msra.mxu0 0.0
      %3031 = vmatprep.subr.mxu0 0.0
      %3032 = vmatpush1.msra.mxu0 0.0
      %3033 = vmatprep.mubr.f32.mxu0 0.0
      %3034 = vmatmul.mubr.f32.gmra.mrb[0].mxu0 %v2967
      %v3035 = vpop.f32.mrb[0].mxu0
      %v3036 = vadd.f32 0.0, %v3035
      %v3037 = vpop.f32.mrb[0].mxu0
      %3038 = vdwg.mxu0
      %v3039 = vld [vmem:[%s39 + $0x8] sm:$0xff]
      %v3041 = vsel %vm1408, %v3036, 0
      %3043 = vmatprep.subr.mxu0 0.0
      %3044 = vmatpush1.msra.mxu0 %v3039
      %3045 = vmatprep.subr.mxu0 0.0
      %3046 = vmatpush1.msra.mxu0 0.0
      %3047 = vmatprep.subr.mxu0 0.0
      %3048 = vmatpush1.msra.mxu0 0.0
      %3049 = vmatprep.subr.mxu0 0.0
      %3050 = vmatpush1.msra.mxu0 0.0
      %3051 = vmatprep.subr.mxu0 0.0
      %3052 = vmatpush1.msra.mxu0 0.0
      %3053 = vmatprep.subr.mxu0 0.0
      %3054 = vmatpush1.msra.mxu0 0.0
      %3055 = vmatprep.subr.mxu0 0.0
      %3056 = vmatpush1.msra.mxu0 0.0
      %3057 = vmatprep.subr.mxu0 0.0
      %3058 = vmatpush1.msra.mxu0 0.0
      %3059 = vmatprep.subr.mxu0 0.0
      %3060 = vmatpush1.msra.mxu0 0.0
      %3061 = vmatprep.subr.mxu0 0.0
      %3062 = vmatpush1.msra.mxu0 0.0
      %3063 = vmatprep.subr.mxu0 0.0
      %3064 = vmatpush1.msra.mxu0 0.0
      %3065 = vmatprep.subr.mxu0 0.0
      %3066 = vmatpush1.msra.mxu0 0.0
      %3067 = vmatprep.subr.mxu0 0.0
      %3068 = vmatpush1.msra.mxu0 0.0
      %3069 = vmatprep.subr.mxu0 0.0
      %3070 = vmatpush1.msra.mxu0 0.0
      %3071 = vmatprep.subr.mxu0 0.0
      %3072 = vmatpush1.msra.mxu0 0.0
      %3073 = vmatprep.subr.mxu0 0.0
      %3074 = vmatpush1.msra.mxu0 0.0
      %3075 = vmatprep.subr.mxu0 0.0
      %3076 = vmatpush1.msra.mxu0 0.0
      %3077 = vmatprep.subr.mxu0 0.0
      %3078 = vmatpush1.msra.mxu0 0.0
      %3079 = vmatprep.subr.mxu0 0.0
      %3080 = vmatpush1.msra.mxu0 0.0
      %3081 = vmatprep.subr.mxu0 0.0
      %3082 = vmatpush1.msra.mxu0 0.0
      %3083 = vmatprep.subr.mxu0 0.0
      %3084 = vmatpush1.msra.mxu0 0.0
      %3085 = vmatprep.subr.mxu0 0.0
      %3086 = vmatpush1.msra.mxu0 0.0
      %3087 = vmatprep.subr.mxu0 0.0
      %3088 = vmatpush1.msra.mxu0 0.0
      %3089 = vmatprep.subr.mxu0 0.0
      %3090 = vmatpush1.msra.mxu0 0.0
      %3091 = vmatprep.subr.mxu0 0.0
      %3092 = vmatpush1.msra.mxu0 0.0
      %3093 = vmatprep.subr.mxu0 0.0
      %3094 = vmatpush1.msra.mxu0 0.0
      %3095 = vmatprep.subr.mxu0 0.0
      %3096 = vmatpush1.msra.mxu0 0.0
      %3097 = vmatprep.subr.mxu0 0.0
      %3098 = vmatpush1.msra.mxu0 0.0
      %3099 = vmatprep.subr.mxu0 0.0
      %3100 = vmatpush1.msra.mxu0 0.0
      %3101 = vmatprep.subr.mxu0 0.0
      %3102 = vmatpush1.msra.mxu0 0.0
      %3103 = vmatprep.subr.mxu0 0.0
      %3104 = vmatpush1.msra.mxu0 0.0
      %3105 = vmatprep.subr.mxu0 0.0
      %3106 = vmatpush1.msra.mxu0 0.0
      %3107 = vmatprep.mubr.f32.mxu0 0.0
      %3108 = vmatmul.mubr.f32.gmra.mrb[0].mxu0 %v3041
      %v3109 = vpop.f32.mrb[0].mxu0
      %v3110 = vadd.f32 0.0, %v3109
      %v3111 = vpop.f32.mrb[0].mxu0
      %3112 = vdwg.mxu0
      %v3114 = vsel %vm1408, %v2868, 0
      %3116 = vmatprep.subr.mxu0 0.0
      %3117 = vmatpush1.msra.mxu0 %v2871
      %3118 = vmatprep.subr.mxu0 0.0
      %3119 = vmatpush1.msra.mxu0 0.0
      %3120 = vmatprep.subr.mxu0 0.0
      %3121 = vmatpush1.msra.mxu0 0.0
      %3122 = vmatprep.subr.mxu0 0.0
      %3123 = vmatpush1.msra.mxu0 0.0
      %3124 = vmatprep.subr.mxu0 0.0
      %3125 = vmatpush1.msra.mxu0 0.0
      %3126 = vmatprep.subr.mxu0 0.0
      %3127 = vmatpush1.msra.mxu0 0.0
      %3128 = vmatprep.subr.mxu0 0.0
      %3129 = vmatpush1.msra.mxu0 0.0
      %3130 = vmatprep.subr.mxu0 0.0
      %3131 = vmatpush1.msra.mxu0 0.0
      %3132 = vmatprep.subr.mxu0 0.0
      %3133 = vmatpush1.msra.mxu0 0.0
      %3134 = vmatprep.subr.mxu0 0.0
      %3135 = vmatpush1.msra.mxu0 0.0
      %3136 = vmatprep.subr.mxu0 0.0
      %3137 = vmatpush1.msra.mxu0 0.0
      %3138 = vmatprep.subr.mxu0 0.0
      %3139 = vmatpush1.msra.mxu0 0.0
      %3140 = vmatprep.subr.mxu0 0.0
      %3141 = vmatpush1.msra.mxu0 0.0
      %3142 = vmatprep.subr.mxu0 0.0
      %3143 = vmatpush1.msra.mxu0 0.0
      %3144 = vmatprep.subr.mxu0 0.0
      %3145 = vmatpush1.msra.mxu0 0.0
      %3146 = vmatprep.subr.mxu0 0.0
      %3147 = vmatpush1.msra.mxu0 0.0
      %3148 = vmatprep.subr.mxu0 0.0
      %3149 = vmatpush1.msra.mxu0 0.0
      %3150 = vmatprep.subr.mxu0 0.0
      %3151 = vmatpush1.msra.mxu0 0.0
      %3152 = vmatprep.subr.mxu0 0.0
      %3153 = vmatpush1.msra.mxu0 0.0
      %3154 = vmatprep.subr.mxu0 0.0
      %3155 = vmatpush1.msra.mxu0 0.0
      %3156 = vmatprep.subr.mxu0 0.0
      %3157 = vmatpush1.msra.mxu0 0.0
      %3158 = vmatprep.subr.mxu0 0.0
      %3159 = vmatpush1.msra.mxu0 0.0
      %3160 = vmatprep.subr.mxu0 0.0
      %3161 = vmatpush1.msra.mxu0 0.0
      %3162 = vmatprep.subr.mxu0 0.0
      %3163 = vmatpush1.msra.mxu0 0.0
      %3164 = vmatprep.subr.mxu0 0.0
      %3165 = vmatpush1.msra.mxu0 0.0
      %3166 = vmatprep.subr.mxu0 0.0
      %3167 = vmatpush1.msra.mxu0 0.0
      %3168 = vmatprep.subr.mxu0 0.0
      %3169 = vmatpush1.msra.mxu0 0.0
      %3170 = vmatprep.subr.mxu0 0.0
      %3171 = vmatpush1.msra.mxu0 0.0
      %3172 = vmatprep.subr.mxu0 0.0
      %3173 = vmatpush1.msra.mxu0 0.0
      %3174 = vmatprep.subr.mxu0 0.0
      %3175 = vmatpush1.msra.mxu0 0.0
      %3176 = vmatprep.subr.mxu0 0.0
      %3177 = vmatpush1.msra.mxu0 0.0
      %3178 = vmatprep.subr.mxu0 0.0
      %3179 = vmatpush1.msra.mxu0 0.0
      %3180 = vmatprep.mubr.f32.mxu0 0.0
      %3181 = vmatmul.mubr.f32.gmra.mrb[0].mxu0 %v3114
      %v3182 = vpop.f32.mrb[0].mxu0
      %v3183 = vadd.f32 %v3110, %v3182
      %v3184 = vpop.f32.mrb[0].mxu0
      %3185 = vdwg.mxu0
      %3186 = vrot.lane.b32.xlu0 %v2702, 112
      %v3187 = vpop.permute.xlu0 %3186
      %3188 = vrot.lane.b32.xlu0 %v2702, 80
      %v3189 = vpop.permute.xlu0 %3188
      %v3190 = vsel %vm1408, %v3187, 0
      %v3192 = vsel %vm1408, %v3189, 0
      %3194 = vmatprep.subr.mxu0 0.0
      %3195 = vmatpush1.xpose.msra.mxu0 %v3192
      %3196 = vmatprep.subr.mxu0 0.0
      %3197 = vmatpush1.xpose.msra.mxu0 0.0
      %3198 = vmatprep.subr.mxu0 0.0
      %3199 = vmatpush1.xpose.msra.mxu0 0.0
      %3200 = vmatprep.subr.mxu0 0.0
      %3201 = vmatpush1.xpose.msra.mxu0 0.0
      %3202 = vmatprep.subr.mxu0 0.0
      %3203 = vmatpush1.xpose.msra.mxu0 0.0
      %3204 = vmatprep.subr.mxu0 0.0
      %3205 = vmatpush1.xpose.msra.mxu0 0.0
      %3206 = vmatprep.subr.mxu0 0.0
      %3207 = vmatpush1.xpose.msra.mxu0 0.0
      %3208 = vmatprep.subr.mxu0 0.0
      %3209 = vmatpush1.xpose.msra.mxu0 0.0
      %3210 = vmatprep.subr.mxu0 0.0
      %3211 = vmatpush1.xpose.msra.mxu0 0.0
      %3212 = vmatprep.subr.mxu0 0.0
      %3213 = vmatpush1.xpose.msra.mxu0 0.0
      %3214 = vmatprep.subr.mxu0 0.0
      %3215 = vmatpush1.xpose.msra.mxu0 0.0
      %3216 = vmatprep.subr.mxu0 0.0
      %3217 = vmatpush1.xpose.msra.mxu0 0.0
      %3218 = vmatprep.subr.mxu0 0.0
      %3219 = vmatpush1.xpose.msra.mxu0 0.0
      %3220 = vmatprep.subr.mxu0 0.0
      %3221 = vmatpush1.xpose.msra.mxu0 0.0
      %3222 = vmatprep.subr.mxu0 0.0
      %3223 = vmatpush1.xpose.msra.mxu0 0.0
      %3224 = vmatprep.subr.mxu0 0.0
      %3225 = vmatpush1.xpose.msra.mxu0 0.0
      %3226 = vmatprep.subr.mxu0 0.0
      %3227 = vmatpush1.xpose.msra.mxu0 0.0
      %3228 = vmatprep.subr.mxu0 0.0
      %3229 = vmatpush1.xpose.msra.mxu0 0.0
      %3230 = vmatprep.subr.mxu0 0.0
      %3231 = vmatpush1.xpose.msra.mxu0 0.0
      %3232 = vmatprep.subr.mxu0 0.0
      %3233 = vmatpush1.xpose.msra.mxu0 0.0
      %3234 = vmatprep.subr.mxu0 0.0
      %3235 = vmatpush1.xpose.msra.mxu0 0.0
      %3236 = vmatprep.subr.mxu0 0.0
      %3237 = vmatpush1.xpose.msra.mxu0 0.0
      %3238 = vmatprep.subr.mxu0 0.0
      %3239 = vmatpush1.xpose.msra.mxu0 0.0
      %3240 = vmatprep.subr.mxu0 0.0
      %3241 = vmatpush1.xpose.msra.mxu0 0.0
      %3242 = vmatprep.subr.mxu0 0.0
      %3243 = vmatpush1.xpose.msra.mxu0 0.0
      %3244 = vmatprep.subr.mxu0 0.0
      %3245 = vmatpush1.xpose.msra.mxu0 0.0
      %3246 = vmatprep.subr.mxu0 0.0
      %3247 = vmatpush1.xpose.msra.mxu0 0.0
      %3248 = vmatprep.subr.mxu0 0.0
      %3249 = vmatpush1.xpose.msra.mxu0 0.0
      %3250 = vmatprep.subr.mxu0 0.0
      %3251 = vmatpush1.xpose.msra.mxu0 0.0
      %3252 = vmatprep.subr.mxu0 0.0
      %3253 = vmatpush1.xpose.msra.mxu0 0.0
      %3254 = vmatprep.subr.mxu0 0.0
      %3255 = vmatpush1.xpose.msra.mxu0 0.0
      %3256 = vmatprep.subr.mxu0 0.0
      %3257 = vmatpush1.xpose.msra.mxu0 0.0
      %3258 = vmatprep.mubr.f32.mxu0 0.0
      %3259 = vmatmul.mubr.f32.gmra.mrb[0].mxu0 %v3190
      %v3260 = vpop.f32.mrb[0].mxu0
      %v3261 = vadd.f32 0.0, %v3260
      %v3262 = vpop.f32.mrb[0].mxu0
      %3263 = vdwg.mxu0
      %v3264 = vmul.f32 %v3261, 0.35355338
      %v3265 = vsel %vm1289, %v3264, -1e+30
      %v3266 = vsel %vm1408, %v3265, -inf
      %3267 = vmax.xlane.f32.xlu0 %v3266
      %v3268 = vpop.xlane.xlu0 %3267
      %v3269 = vsub.f32 %v3265, %v3268
      %v3270 = vmul.f32 %v3269, 1.442695
      %v3271 = vpow.pop %v3270
      %v3272 = vsel %vm1408, %v3271, 0.0
      %3273 = vadd.xlane.f32.xlu0 %v3272
      %v3274 = vpop.xlane.xlu0 %3273
      %v3275 = vrcp.pop %v3274
      %v3276 = vmul.f32 %v3271, %v3275
      %3277 = vrot.lane.b32.xlu0 %v2702, 48
      %v3278 = vpop.permute.xlu0 %3277
      %v3281 = vsel %vm1408, %v3276, 0
      %3283 = vmatprep.subr.mxu0 0.0
      %3284 = vmatpush1.msra.mxu0 %v3278
      %3285 = vmatprep.subr.mxu0 0.0
      %3286 = vmatpush1.msra.mxu0 0.0
      %3287 = vmatprep.subr.mxu0 0.0
      %3288 = vmatpush1.msra.mxu0 0.0
      %3289 = vmatprep.subr.mxu0 0.0
      %3290 = vmatpush1.msra.mxu0 0.0
      %3291 = vmatprep.subr.mxu0 0.0
      %3292 = vmatpush1.msra.mxu0 0.0
      %3293 = vmatprep.subr.mxu0 0.0
      %3294 = vmatpush1.msra.mxu0 0.0
      %3295 = vmatprep.subr.mxu0 0.0
      %3296 = vmatpush1.msra.mxu0 0.0
      %3297 = vmatprep.subr.mxu0 0.0
      %3298 = vmatpush1.msra.mxu0 0.0
      %3299 = vmatprep.subr.mxu0 0.0
      %3300 = vmatpush1.msra.mxu0 0.0
      %3301 = vmatprep.subr.mxu0 0.0
      %3302 = vmatpush1.msra.mxu0 0.0
      %3303 = vmatprep.subr.mxu0 0.0
      %3304 = vmatpush1.msra.mxu0 0.0
      %3305 = vmatprep.subr.mxu0 0.0
      %3306 = vmatpush1.msra.mxu0 0.0
      %3307 = vmatprep.subr.mxu0 0.0
      %3308 = vmatpush1.msra.mxu0 0.0
      %3309 = vmatprep.subr.mxu0 0.0
      %3310 = vmatpush1.msra.mxu0 0.0
      %3311 = vmatprep.subr.mxu0 0.0
      %3312 = vmatpush1.msra.mxu0 0.0
      %3313 = vmatprep.subr.mxu0 0.0
      %3314 = vmatpush1.msra.mxu0 0.0
      %3315 = vmatprep.subr.mxu0 0.0
      %3316 = vmatpush1.msra.mxu0 0.0
      %3317 = vmatprep.subr.mxu0 0.0
      %3318 = vmatpush1.msra.mxu0 0.0
      %3319 = vmatprep.subr.mxu0 0.0
      %3320 = vmatpush1.msra.mxu0 0.0
      %3321 = vmatprep.subr.mxu0 0.0
      %3322 = vmatpush1.msra.mxu0 0.0
      %3323 = vmatprep.subr.mxu0 0.0
      %3324 = vmatpush1.msra.mxu0 0.0
      %3325 = vmatprep.subr.mxu0 0.0
      %3326 = vmatpush1.msra.mxu0 0.0
      %3327 = vmatprep.subr.mxu0 0.0
      %3328 = vmatpush1.msra.mxu0 0.0
      %3329 = vmatprep.subr.mxu0 0.0
      %3330 = vmatpush1.msra.mxu0 0.0
      %3331 = vmatprep.subr.mxu0 0.0
      %3332 = vmatpush1.msra.mxu0 0.0
      %3333 = vmatprep.subr.mxu0 0.0
      %3334 = vmatpush1.msra.mxu0 0.0
      %3335 = vmatprep.subr.mxu0 0.0
      %3336 = vmatpush1.msra.mxu0 0.0
      %3337 = vmatprep.subr.mxu0 0.0
      %3338 = vmatpush1.msra.mxu0 0.0
      %3339 = vmatprep.subr.mxu0 0.0
      %3340 = vmatpush1.msra.mxu0 0.0
      %3341 = vmatprep.subr.mxu0 0.0
      %3342 = vmatpush1.msra.mxu0 0.0
      %3343 = vmatprep.subr.mxu0 0.0
      %3344 = vmatpush1.msra.mxu0 0.0
      %3345 = vmatprep.subr.mxu0 0.0
      %3346 = vmatpush1.msra.mxu0 0.0
      %3347 = vmatprep.mubr.f32.mxu0 0.0
      %3348 = vmatmul.mubr.f32.gmra.mrb[0].mxu0 %v3281
      %v3349 = vpop.f32.mrb[0].mxu0
      %v3350 = vadd.f32 0.0, %v3349
      %v3351 = vpop.f32.mrb[0].mxu0
      %3352 = vdwg.mxu0
      %v3353 = vld [vmem:[%s39 + $0x10] sm:$0xff]
      %v3355 = vsel %vm1408, %v3350, 0
      %3357 = vmatprep.subr.mxu0 0.0
      %3358 = vmatpush1.msra.mxu0 %v3353
      %3359 = vmatprep.subr.mxu0 0.0
      %3360 = vmatpush1.msra.mxu0 0.0
      %3361 = vmatprep.subr.mxu0 0.0
      %3362 = vmatpush1.msra.mxu0 0.0
      %3363 = vmatprep.subr.mxu0 0.0
      %3364 = vmatpush1.msra.mxu0 0.0
      %3365 = vmatprep.subr.mxu0 0.0
      %3366 = vmatpush1.msra.mxu0 0.0
      %3367 = vmatprep.subr.mxu0 0.0
      %3368 = vmatpush1.msra.mxu0 0.0
      %3369 = vmatprep.subr.mxu0 0.0
      %3370 = vmatpush1.msra.mxu0 0.0
      %3371 = vmatprep.subr.mxu0 0.0
      %3372 = vmatpush1.msra.mxu0 0.0
      %3373 = vmatprep.subr.mxu0 0.0
      %3374 = vmatpush1.msra.mxu0 0.0
      %3375 = vmatprep.subr.mxu0 0.0
      %3376 = vmatpush1.msra.mxu0 0.0
      %3377 = vmatprep.subr.mxu0 0.0
      %3378 = vmatpush1.msra.mxu0 0.0
      %3379 = vmatprep.subr.mxu0 0.0
      %3380 = vmatpush1.msra.mxu0 0.0
      %3381 = vmatprep.subr.mxu0 0.0
      %3382 = vmatpush1.msra.mxu0 0.0
      %3383 = vmatprep.subr.mxu0 0.0
      %3384 = vmatpush1.msra.mxu0 0.0
      %3385 = vmatprep.subr.mxu0 0.0
      %3386 = vmatpush1.msra.mxu0 0.0
      %3387 = vmatprep.subr.mxu0 0.0
      %3388 = vmatpush1.msra.mxu0 0.0
      %3389 = vmatprep.subr.mxu0 0.0
      %3390 = vmatpush1.msra.mxu0 0.0
      %3391 = vmatprep.subr.mxu0 0.0
      %3392 = vmatpush1.msra.mxu0 0.0
      %3393 = vmatprep.subr.mxu0 0.0
      %3394 = vmatpush1.msra.mxu0 0.0
      %3395 = vmatprep.subr.mxu0 0.0
      %3396 = vmatpush1.msra.mxu0 0.0
      %3397 = vmatprep.subr.mxu0 0.0
      %3398 = vmatpush1.msra.mxu0 0.0
      %3399 = vmatprep.subr.mxu0 0.0
      %3400 = vmatpush1.msra.mxu0 0.0
      %3401 = vmatprep.subr.mxu0 0.0
      %3402 = vmatpush1.msra.mxu0 0.0
      %3403 = vmatprep.subr.mxu0 0.0
      %3404 = vmatpush1.msra.mxu0 0.0
      %3405 = vmatprep.subr.mxu0 0.0
      %3406 = vmatpush1.msra.mxu0 0.0
      %3407 = vmatprep.subr.mxu0 0.0
      %3408 = vmatpush1.msra.mxu0 0.0
      %3409 = vmatprep.subr.mxu0 0.0
      %3410 = vmatpush1.msra.mxu0 0.0
      %3411 = vmatprep.subr.mxu0 0.0
      %3412 = vmatpush1.msra.mxu0 0.0
      %3413 = vmatprep.subr.mxu0 0.0
      %3414 = vmatpush1.msra.mxu0 0.0
      %3415 = vmatprep.subr.mxu0 0.0
      %3416 = vmatpush1.msra.mxu0 0.0
      %3417 = vmatprep.subr.mxu0 0.0
      %3418 = vmatpush1.msra.mxu0 0.0
      %3419 = vmatprep.subr.mxu0 0.0
      %3420 = vmatpush1.msra.mxu0 0.0
      %3421 = vmatprep.mubr.f32.mxu0 0.0
      %3422 = vmatmul.mubr.f32.gmra.mrb[0].mxu0 %v3355
      %v3423 = vpop.f32.mrb[0].mxu0
      %v3424 = vadd.f32 0.0, %v3423
      %v3425 = vpop.f32.mrb[0].mxu0
      %3426 = vdwg.mxu0
      %v3427 = vadd.f32 %v3183, %v3424
      %3428 = vrot.lane.b32.xlu0 %v2702, 104
      %v3429 = vpop.permute.xlu0 %3428
      %3430 = vrot.lane.b32.xlu0 %v2702, 72
      %v3431 = vpop.permute.xlu0 %3430
      %v3432 = vsel %vm1408, %v3429, 0
      %v3434 = vsel %vm1408, %v3431, 0
      %3436 = vmatprep.subr.mxu0 0.0
      %3437 = vmatpush1.xpose.msra.mxu0 %v3434
      %3438 = vmatprep.subr.mxu0 0.0
      %3439 = vmatpush1.xpose.msra.mxu0 0.0
      %3440 = vmatprep.subr.mxu0 0.0
      %3441 = vmatpush1.xpose.msra.mxu0 0.0
      %3442 = vmatprep.subr.mxu0 0.0
      %3443 = vmatpush1.xpose.msra.mxu0 0.0
      %3444 = vmatprep.subr.mxu0 0.0
      %3445 = vmatpush1.xpose.msra.mxu0 0.0
      %3446 = vmatprep.subr.mxu0 0.0
      %3447 = vmatpush1.xpose.msra.mxu0 0.0
      %3448 = vmatprep.subr.mxu0 0.0
      %3449 = vmatpush1.xpose.msra.mxu0 0.0
      %3450 = vmatprep.subr.mxu0 0.0
      %3451 = vmatpush1.xpose.msra.mxu0 0.0
      %3452 = vmatprep.subr.mxu0 0.0
      %3453 = vmatpush1.xpose.msra.mxu0 0.0
      %3454 = vmatprep.subr.mxu0 0.0
      %3455 = vmatpush1.xpose.msra.mxu0 0.0
      %3456 = vmatprep.subr.mxu0 0.0
      %3457 = vmatpush1.xpose.msra.mxu0 0.0
      %3458 = vmatprep.subr.mxu0 0.0
      %3459 = vmatpush1.xpose.msra.mxu0 0.0
      %3460 = vmatprep.subr.mxu0 0.0
      %3461 = vmatpush1.xpose.msra.mxu0 0.0
      %3462 = vmatprep.subr.mxu0 0.0
      %3463 = vmatpush1.xpose.msra.mxu0 0.0
      %3464 = vmatprep.subr.mxu0 0.0
      %3465 = vmatpush1.xpose.msra.mxu0 0.0
      %3466 = vmatprep.subr.mxu0 0.0
      %3467 = vmatpush1.xpose.msra.mxu0 0.0
      %3468 = vmatprep.subr.mxu0 0.0
      %3469 = vmatpush1.xpose.msra.mxu0 0.0
      %3470 = vmatprep.subr.mxu0 0.0
      %3471 = vmatpush1.xpose.msra.mxu0 0.0
      %3472 = vmatprep.subr.mxu0 0.0
      %3473 = vmatpush1.xpose.msra.mxu0 0.0
      %3474 = vmatprep.subr.mxu0 0.0
      %3475 = vmatpush1.xpose.msra.mxu0 0.0
      %3476 = vmatprep.subr.mxu0 0.0
      %3477 = vmatpush1.xpose.msra.mxu0 0.0
      %3478 = vmatprep.subr.mxu0 0.0
      %3479 = vmatpush1.xpose.msra.mxu0 0.0
      %3480 = vmatprep.subr.mxu0 0.0
      %3481 = vmatpush1.xpose.msra.mxu0 0.0
      %3482 = vmatprep.subr.mxu0 0.0
      %3483 = vmatpush1.xpose.msra.mxu0 0.0
      %3484 = vmatprep.subr.mxu0 0.0
      %3485 = vmatpush1.xpose.msra.mxu0 0.0
      %3486 = vmatprep.subr.mxu0 0.0
      %3487 = vmatpush1.xpose.msra.mxu0 0.0
      %3488 = vmatprep.subr.mxu0 0.0
      %3489 = vmatpush1.xpose.msra.mxu0 0.0
      %3490 = vmatprep.subr.mxu0 0.0
      %3491 = vmatpush1.xpose.msra.mxu0 0.0
      %3492 = vmatprep.subr.mxu0 0.0
      %3493 = vmatpush1.xpose.msra.mxu0 0.0
      %3494 = vmatprep.subr.mxu0 0.0
      %3495 = vmatpush1.xpose.msra.mxu0 0.0
      %3496 = vmatprep.subr.mxu0 0.0
      %3497 = vmatpush1.xpose.msra.mxu0 0.0
      %3498 = vmatprep.subr.mxu0 0.0
      %3499 = vmatpush1.xpose.msra.mxu0 0.0
      %3500 = vmatprep.mubr.f32.mxu0 0.0
      %3501 = vmatmul.mubr.f32.gmra.mrb[0].mxu0 %v3432
      %v3502 = vpop.f32.mrb[0].mxu0
      %v3503 = vadd.f32 0.0, %v3502
      %v3504 = vpop.f32.mrb[0].mxu0
      %3505 = vdwg.mxu0
      %v3506 = vmul.f32 %v3503, 0.35355338
      %v3507 = vsel %vm1289, %v3506, -1e+30
      %v3508 = vsel %vm1408, %v3507, -inf
      %3509 = vmax.xlane.f32.xlu0 %v3508
      %v3510 = vpop.xlane.xlu0 %3509
      %v3511 = vsub.f32 %v3507, %v3510
      %v3512 = vmul.f32 %v3511, 1.442695
      %v3513 = vpow.pop %v3512
      %v3514 = vsel %vm1408, %v3513, 0.0
      %3515 = vadd.xlane.f32.xlu0 %v3514
      %v3516 = vpop.xlane.xlu0 %3515
      %v3517 = vrcp.pop %v3516
      %v3518 = vmul.f32 %v3513, %v3517
      %3519 = vrot.lane.b32.xlu0 %v2702, 40
      %v3520 = vpop.permute.xlu0 %3519
      %v3523 = vsel %vm1408, %v3518, 0
      %3525 = vmatprep.subr.mxu0 0.0
      %3526 = vmatpush1.msra.mxu0 %v3520
      %3527 = vmatprep.subr.mxu0 0.0
      %3528 = vmatpush1.msra.mxu0 0.0
      %3529 = vmatprep.subr.mxu0 0.0
      %3530 = vmatpush1.msra.mxu0 0.0
      %3531 = vmatprep.subr.mxu0 0.0
      %3532 = vmatpush1.msra.mxu0 0.0
      %3533 = vmatprep.subr.mxu0 0.0
      %3534 = vmatpush1.msra.mxu0 0.0
      %3535 = vmatprep.subr.mxu0 0.0
      %3536 = vmatpush1.msra.mxu0 0.0
      %3537 = vmatprep.subr.mxu0 0.0
      %3538 = vmatpush1.msra.mxu0 0.0
      %3539 = vmatprep.subr.mxu0 0.0
      %3540 = vmatpush1.msra.mxu0 0.0
      %3541 = vmatprep.subr.mxu0 0.0
      %3542 = vmatpush1.msra.mxu0 0.0
      %3543 = vmatprep.subr.mxu0 0.0
      %3544 = vmatpush1.msra.mxu0 0.0
      %3545 = vmatprep.subr.mxu0 0.0
      %3546 = vmatpush1.msra.mxu0 0.0
      %3547 = vmatprep.subr.mxu0 0.0
      %3548 = vmatpush1.msra.mxu0 0.0
      %3549 = vmatprep.subr.mxu0 0.0
      %3550 = vmatpush1.msra.mxu0 0.0
      %3551 = vmatprep.subr.mxu0 0.0
      %3552 = vmatpush1.msra.mxu0 0.0
      %3553 = vmatprep.subr.mxu0 0.0
      %3554 = vmatpush1.msra.mxu0 0.0
      %3555 = vmatprep.subr.mxu0 0.0
      %3556 = vmatpush1.msra.mxu0 0.0
      %3557 = vmatprep.subr.mxu0 0.0
      %3558 = vmatpush1.msra.mxu0 0.0
      %3559 = vmatprep.subr.mxu0 0.0
      %3560 = vmatpush1.msra.mxu0 0.0
      %3561 = vmatprep.subr.mxu0 0.0
      %3562 = vmatpush1.msra.mxu0 0.0
      %3563 = vmatprep.subr.mxu0 0.0
      %3564 = vmatpush1.msra.mxu0 0.0
      %3565 = vmatprep.subr.mxu0 0.0
      %3566 = vmatpush1.msra.mxu0 0.0
      %3567 = vmatprep.subr.mxu0 0.0
      %3568 = vmatpush1.msra.mxu0 0.0
      %3569 = vmatprep.subr.mxu0 0.0
      %3570 = vmatpush1.msra.mxu0 0.0
      %3571 = vmatprep.subr.mxu0 0.0
      %3572 = vmatpush1.msra.mxu0 0.0
      %3573 = vmatprep.subr.mxu0 0.0
      %3574 = vmatpush1.msra.mxu0 0.0
      %3575 = vmatprep.subr.mxu0 0.0
      %3576 = vmatpush1.msra.mxu0 0.0
      %3577 = vmatprep.subr.mxu0 0.0
      %3578 = vmatpush1.msra.mxu0 0.0
      %3579 = vmatprep.subr.mxu0 0.0
      %3580 = vmatpush1.msra.mxu0 0.0
      %3581 = vmatprep.subr.mxu0 0.0
      %3582 = vmatpush1.msra.mxu0 0.0
      %3583 = vmatprep.subr.mxu0 0.0
      %3584 = vmatpush1.msra.mxu0 0.0
      %3585 = vmatprep.subr.mxu0 0.0
      %3586 = vmatpush1.msra.mxu0 0.0
      %3587 = vmatprep.subr.mxu0 0.0
      %3588 = vmatpush1.msra.mxu0 0.0
      %3589 = vmatprep.mubr.f32.mxu0 0.0
      %3590 = vmatmul.mubr.f32.gmra.mrb[0].mxu0 %v3523
      %v3591 = vpop.f32.mrb[0].mxu0
      %v3592 = vadd.f32 0.0, %v3591
      %v3593 = vpop.f32.mrb[0].mxu0
      %3594 = vdwg.mxu0
      %v3595 = vld [vmem:[%s39 + $0x18] sm:$0xff]
      %v3597 = vsel %vm1408, %v3592, 0
      %3599 = vmatprep.subr.mxu0 0.0
      %3600 = vmatpush1.msra.mxu0 %v3595
      %3601 = vmatprep.subr.mxu0 0.0
      %3602 = vmatpush1.msra.mxu0 0.0
      %3603 = vmatprep.subr.mxu0 0.0
      %3604 = vmatpush1.msra.mxu0 0.0
      %3605 = vmatprep.subr.mxu0 0.0
      %3606 = vmatpush1.msra.mxu0 0.0
      %3607 = vmatprep.subr.mxu0 0.0
      %3608 = vmatpush1.msra.mxu0 0.0
      %3609 = vmatprep.subr.mxu0 0.0
      %3610 = vmatpush1.msra.mxu0 0.0
      %3611 = vmatprep.subr.mxu0 0.0
      %3612 = vmatpush1.msra.mxu0 0.0
      %3613 = vmatprep.subr.mxu0 0.0
      %3614 = vmatpush1.msra.mxu0 0.0
      %3615 = vmatprep.subr.mxu0 0.0
      %3616 = vmatpush1.msra.mxu0 0.0
      %3617 = vmatprep.subr.mxu0 0.0
      %3618 = vmatpush1.msra.mxu0 0.0
      %3619 = vmatprep.subr.mxu0 0.0
      %3620 = vmatpush1.msra.mxu0 0.0
      %3621 = vmatprep.subr.mxu0 0.0
      %3622 = vmatpush1.msra.mxu0 0.0
      %3623 = vmatprep.subr.mxu0 0.0
      %3624 = vmatpush1.msra.mxu0 0.0
      %3625 = vmatprep.subr.mxu0 0.0
      %3626 = vmatpush1.msra.mxu0 0.0
      %3627 = vmatprep.subr.mxu0 0.0
      %3628 = vmatpush1.msra.mxu0 0.0
      %3629 = vmatprep.subr.mxu0 0.0
      %3630 = vmatpush1.msra.mxu0 0.0
      %3631 = vmatprep.subr.mxu0 0.0
      %3632 = vmatpush1.msra.mxu0 0.0
      %3633 = vmatprep.subr.mxu0 0.0
      %3634 = vmatpush1.msra.mxu0 0.0
      %3635 = vmatprep.subr.mxu0 0.0
      %3636 = vmatpush1.msra.mxu0 0.0
      %3637 = vmatprep.subr.mxu0 0.0
      %3638 = vmatpush1.msra.mxu0 0.0
      %3639 = vmatprep.subr.mxu0 0.0
      %3640 = vmatpush1.msra.mxu0 0.0
      %3641 = vmatprep.subr.mxu0 0.0
      %3642 = vmatpush1.msra.mxu0 0.0
      %3643 = vmatprep.subr.mxu0 0.0
      %3644 = vmatpush1.msra.mxu0 0.0
      %3645 = vmatprep.subr.mxu0 0.0
      %3646 = vmatpush1.msra.mxu0 0.0
      %3647 = vmatprep.subr.mxu0 0.0
      %3648 = vmatpush1.msra.mxu0 0.0
      %3649 = vmatprep.subr.mxu0 0.0
      %3650 = vmatpush1.msra.mxu0 0.0
      %3651 = vmatprep.subr.mxu0 0.0
      %3652 = vmatpush1.msra.mxu0 0.0
      %3653 = vmatprep.subr.mxu0 0.0
      %3654 = vmatpush1.msra.mxu0 0.0
      %3655 = vmatprep.subr.mxu0 0.0
      %3656 = vmatpush1.msra.mxu0 0.0
      %3657 = vmatprep.subr.mxu0 0.0
      %3658 = vmatpush1.msra.mxu0 0.0
      %3659 = vmatprep.subr.mxu0 0.0
      %3660 = vmatpush1.msra.mxu0 0.0
      %3661 = vmatprep.subr.mxu0 0.0
      %3662 = vmatpush1.msra.mxu0 0.0
      %3663 = vmatprep.mubr.f32.mxu0 0.0
      %3664 = vmatmul.mubr.f32.gmra.mrb[0].mxu0 %v3597
      %v3665 = vpop.f32.mrb[0].mxu0
      %v3666 = vadd.f32 0.0, %v3665
      %v3667 = vpop.f32.mrb[0].mxu0
      %3668 = vdwg.mxu0
      %v3669 = vadd.f32 %v3427, %v3666
      %v3670 = vadd.f32 %v2591, %v3669
      %v3671 = vld [vmem:[%s41] sm:$0x1]
      %v3673 = vlaneseq
      %v3674 = vshrl.u32 %v3673, 7
      %v3675 = vsub.s32 0, %v3674
      %v3676 = vrot.slane %v3671, %v3675
      %v3678 = vadd.f32 %v3670, %v3676
      %v3679 = vld [vmem:[%s43] sm:$0x1]
      %v3680 = vld [vmem:[%s45] sm:$0x1]
      %v3681 = vsel %vm1292, %v3678, 0.0
      %3682 = vadd.xlane.f32.xlu0 %v3681
      %v3683 = vpop.xlane.xlu0 %3682
      %v3684 = vmul.f32 %v3683, %v1296
      %v3685 = vsub.f32 %v3678, %v3684
      %v3686 = vmul.f32 %v3685, %v3685
      %v3687 = vsel %vm1292, %v3686, 0.0
      %3688 = vadd.xlane.f32.xlu0 %v3687
      %v3689 = vpop.xlane.xlu0 %3688
      %v3690 = vmul.f32 %v3689, %v1296
      %v3691 = vadd.f32 %v3690, 1e-06
      %v3692 = vrsqrt.pop %v3691
      %v3693 = vmul.f32 %v3685, %v3692
      %v3695 = vlaneseq
      %v3696 = vshrl.u32 %v3695, 7
      %v3697 = vsub.s32 0, %v3696
      %v3698 = vrot.slane %v3679, %v3697
      %v3700 = vmul.f32 %v3693, %v3698
      %v3702 = vlaneseq
      %v3703 = vshrl.u32 %v3702, 7
      %v3704 = vsub.s32 0, %v3703
      %v3705 = vrot.slane %v3680, %v3704
      %v3707 = vadd.f32 %v3700, %v3705
      %v3708 = vld [vmem:[%s47] sm:$0xff]
      %v3709 = vld [vmem:[%s47 + $0x8] sm:$0xff]
      %v3710 = vld [vmem:[%s47 + $0x10] sm:$0xff]
      %v3711 = vld [vmem:[%s47 + $0x18] sm:$0xff]
      %v3712 = vld [vmem:[%s49] sm:$0x1]
      %v3714 = vlaneseq
      %v3715 = vshrl.u32 %v3714, 7
      %v3716 = vsub.s32 0, %v3715
      %v3717 = vrot.slane %v3712, %v3716
      %v3720 = vsel %vm1292, %v3707, 0
      %3722 = vmatprep.subr.mxu0 0.0
      %3723 = vmatpush1.msra.mxu0 %v3708
      %3724 = vmatprep.subr.mxu0 0.0
      %3725 = vmatpush1.msra.mxu0 %v3709
      %3726 = vmatprep.subr.mxu0 0.0
      %3727 = vmatpush1.msra.mxu0 %v3710
      %3728 = vmatprep.subr.mxu0 0.0
      %3729 = vmatpush1.msra.mxu0 %v3711
      %3730 = vmatprep.subr.mxu0 0.0
      %3731 = vmatpush1.msra.mxu0 0.0
      %3732 = vmatprep.subr.mxu0 0.0
      %3733 = vmatpush1.msra.mxu0 0.0
      %3734 = vmatprep.subr.mxu0 0.0
      %3735 = vmatpush1.msra.mxu0 0.0
      %3736 = vmatprep.subr.mxu0 0.0
      %3737 = vmatpush1.msra.mxu0 0.0
      %3738 = vmatprep.subr.mxu0 0.0
      %3739 = vmatpush1.msra.mxu0 0.0
      %3740 = vmatprep.subr.mxu0 0.0
      %3741 = vmatpush1.msra.mxu0 0.0
      %3742 = vmatprep.subr.mxu0 0.0
      %3743 = vmatpush1.msra.mxu0 0.0
      %3744 = vmatprep.subr.mxu0 0.0
      %3745 = vmatpush1.msra.mxu0 0.0
      %3746 = vmatprep.subr.mxu0 0.0
      %3747 = vmatpush1.msra.mxu0 0.0
      %3748 = vmatprep.subr.mxu0 0.0
      %3749 = vmatpush1.msra.mxu0 0.0
      %3750 = vmatprep.subr.mxu0 0.0
      %3751 = vmatpush1.msra.mxu0 0.0
      %3752 = vmatprep.subr.mxu0 0.0
      %3753 = vmatpush1.msra.mxu0 0.0
      %3754 = vmatprep.subr.mxu0 0.0
      %3755 = vmatpush1.msra.mxu0 0.0
      %3756 = vmatprep.subr.mxu0 0.0
      %3757 = vmatpush1.msra.mxu0 0.0
      %3758 = vmatprep.subr.mxu0 0.0
      %3759 = vmatpush1.msra.mxu0 0.0
      %3760 = vmatprep.subr.mxu0 0.0
      %3761 = vmatpush1.msra.mxu0 0.0
      %3762 = vmatprep.subr.mxu0 0.0
      %3763 = vmatpush1.msra.mxu0 0.0
      %3764 = vmatprep.subr.mxu0 0.0
      %3765 = vmatpush1.msra.mxu0 0.0
      %3766 = vmatprep.subr.mxu0 0.0
      %3767 = vmatpush1.msra.mxu0 0.0
      %3768 = vmatprep.subr.mxu0 0.0
      %3769 = vmatpush1.msra.mxu0 0.0
      %3770 = vmatprep.subr.mxu0 0.0
      %3771 = vmatpush1.msra.mxu0 0.0
      %3772 = vmatprep.subr.mxu0 0.0
      %3773 = vmatpush1.msra.mxu0 0.0
      %3774 = vmatprep.subr.mxu0 0.0
      %3775 = vmatpush1.msra.mxu0 0.0
      %3776 = vmatprep.subr.mxu0 0.0
      %3777 = vmatpush1.msra.mxu0 0.0
      %3778 = vmatprep.subr.mxu0 0.0
      %3779 = vmatpush1.msra.mxu0 0.0
      %3780 = vmatprep.subr.mxu0 0.0
      %3781 = vmatpush1.msra.mxu0 0.0
      %3782 = vmatprep.subr.mxu0 0.0
      %3783 = vmatpush1.msra.mxu0 0.0
      %3784 = vmatprep.subr.mxu0 0.0
      %3785 = vmatpush1.msra.mxu0 0.0
      %3786 = vmatprep.mubr.f32.mxu0 0.0
      %3787 = vmatmul.mubr.f32.gmra.mrb[0].mxu0 %v3720
      %v3788 = vpop.f32.mrb[0].mxu0
      %v3789 = vadd.f32 %v3717, %v3788
      %v3790 = vpop.f32.mrb[0].mxu0
      %3791 = vdwg.mxu0
      %v3792 = vmul.f32 %v3789, %v3789
      %v3793 = vmul.f32 %v3789, %v3792
      %v3794 = vmul.f32 %v3793, 0.044715
      %v3795 = vadd.f32 %v3789, %v3794
      %v3796 = vmul.f32 %v3795, 0.7978846
      %v3797 = vtanh.pop %v3796
      %v3798 = vadd.f32 %v3797, 1.0
      %v3799 = vmul.f32 %v3798, 0.5
      %v3800 = vmul.f32 %v3789, %v3799
      %v3801 = vld [vmem:[%s51] sm:$0xff]
      %v3802 = vld [vmem:[%s51 + $0x8] sm:$0xff]
      %v3803 = vld [vmem:[%s51 + $0x10] sm:$0xff]
      %v3804 = vld [vmem:[%s51 + $0x18] sm:$0xff]
      %v3805 = vld [vmem:[%s51 + $0x20] sm:$0xff]
      %v3806 = vld [vmem:[%s51 + $0x28] sm:$0xff]
      %v3807 = vld [vmem:[%s51 + $0x30] sm:$0xff]
      %v3808 = vld [vmem:[%s51 + $0x38] sm:$0xff]
      %v3809 = vld [vmem:[%s53] sm:$0x1]
      %v3811 = vlaneseq
      %v3812 = vshrl.u32 %v3811, 7
      %v3813 = vsub.s32 0, %v3812
      %v3814 = vrot.slane %v3809, %v3813
      %v3817 = vsel %vm2517, %v3800, 0
      %3819 = vmatprep.subr.mxu0 0.0
      %3820 = vmatpush1.msra.mxu0 %v3801
      %3821 = vmatprep.subr.mxu0 0.0
      %3822 = vmatpush1.msra.mxu0 %v3802
      %3823 = vmatprep.subr.mxu0 0.0
      %3824 = vmatpush1.msra.mxu0 %v3803
      %3825 = vmatprep.subr.mxu0 0.0
      %3826 = vmatpush1.msra.mxu0 %v3804
      %3827 = vmatprep.subr.mxu0 0.0
      %3828 = vmatpush1.msra.mxu0 %v3805
      %3829 = vmatprep.subr.mxu0 0.0
      %3830 = vmatpush1.msra.mxu0 %v3806
      %3831 = vmatprep.subr.mxu0 0.0
      %3832 = vmatpush1.msra.mxu0 %v3807
      %3833 = vmatprep.subr.mxu0 0.0
      %3834 = vmatpush1.msra.mxu0 %v3808
      %3835 = vmatprep.subr.mxu0 0.0
      %3836 = vmatpush1.msra.mxu0 0.0
      %3837 = vmatprep.subr.mxu0 0.0
      %3838 = vmatpush1.msra.mxu0 0.0
      %3839 = vmatprep.subr.mxu0 0.0
      %3840 = vmatpush1.msra.mxu0 0.0
      %3841 = vmatprep.subr.mxu0 0.0
      %3842 = vmatpush1.msra.mxu0 0.0
      %3843 = vmatprep.subr.mxu0 0.0
      %3844 = vmatpush1.msra.mxu0 0.0
      %3845 = vmatprep.subr.mxu0 0.0
      %3846 = vmatpush1.msra.mxu0 0.0
      %3847 = vmatprep.subr.mxu0 0.0
      %3848 = vmatpush1.msra.mxu0 0.0
      %3849 = vmatprep.subr.mxu0 0.0
      %3850 = vmatpush1.msra.mxu0 0.0
      %3851 = vmatprep.subr.mxu0 0.0
      %3852 = vmatpush1.msra.mxu0 0.0
      %3853 = vmatprep.subr.mxu0 0.0
      %3854 = vmatpush1.msra.mxu0 0.0
      %3855 = vmatprep.subr.mxu0 0.0
      %3856 = vmatpush1.msra.mxu0 0.0
      %3857 = vmatprep.subr.mxu0 0.0
      %3858 = vmatpush1.msra.mxu0 0.0
      %3859 = vmatprep.subr.mxu0 0.0
      %3860 = vmatpush1.msra.mxu0 0.0
      %3861 = vmatprep.subr.mxu0 0.0
      %3862 = vmatpush1.msra.mxu0 0.0
      %3863 = vmatprep.subr.mxu0 0.0
      %3864 = vmatpush1.msra.mxu0 0.0
      %3865 = vmatprep.subr.mxu0 0.0
      %3866 = vmatpush1.msra.mxu0 0.0
      %3867 = vmatprep.subr.mxu0 0.0
      %3868 = vmatpush1.msra.mxu0 0.0
      %3869 = vmatprep.subr.mxu0 0.0
      %3870 = vmatpush1.msra.mxu0 0.0
      %3871 = vmatprep.subr.mxu0 0.0
      %3872 = vmatpush1.msra.mxu0 0.0
      %3873 = vmatprep.subr.mxu0 0.0
      %3874 = vmatpush1.msra.mxu0 0.0
      %3875 = vmatprep.subr.mxu0 0.0
      %3876 = vmatpush1.msra.mxu0 0.0
      %3877 = vmatprep.subr.mxu0 0.0
      %3878 = vmatpush1.msra.mxu0 0.0
      %3879 = vmatprep.subr.mxu0 0.0
      %3880 = vmatpush1.msra.mxu0 0.0
      %3881 = vmatprep.subr.mxu0 0.0
      %3882 = vmatpush1.msra.mxu0 0.0
      %3883 = vmatprep.mubr.f32.mxu0 0.0
      %3884 = vmatmul.mubr.f32.gmra.mrb[0].mxu0 %v3817
      %v3885 = vpop.f32.mrb[0].mxu0
      %v3886 = vadd.f32 %v3814, %v3885
      %v3887 = vpop.f32.mrb[0].mxu0
      %3888 = vdwg.mxu0
      %v3889 = vadd.f32 %v3678, %v3886
      %v3890 = vld [vmem:[%s55] sm:$0x1]
      %v3891 = vld [vmem:[%s57] sm:$0x1]
      %v3892 = vsel %vm1292, %v3889, 0.0
      %3893 = vadd.xlane.f32.xlu0 %v3892
      %v3894 = vpop.xlane.xlu0 %3893
      %v3895 = vmul.f32 %v3894, %v1296
      %v3896 = vsub.f32 %v3889, %v3895
      %v3897 = vmul.f32 %v3896, %v3896
      %v3898 = vsel %vm1292, %v3897, 0.0
      %3899 = vadd.xlane.f32.xlu0 %v3898
      %v3900 = vpop.xlane.xlu0 %3899
      %v3901 = vmul.f32 %v3900, %v1296
      %v3902 = vadd.f32 %v3901, 1e-06
      %v3903 = vrsqrt.pop %v3902
      %v3904 = vmul.f32 %v3896, %v3903
      %v3906 = vlaneseq
      %v3907 = vshrl.u32 %v3906, 7
      %v3908 = vsub.s32 0, %v3907
      %v3909 = vrot.slane %v3890, %v3908
      %v3911 = vmul.f32 %v3904, %v3909
      %v3913 = vlaneseq
      %v3914 = vshrl.u32 %v3913, 7
      %v3915 = vsub.s32 0, %v3914
      %v3916 = vrot.slane %v3891, %v3915
      %v3918 = vadd.f32 %v3911, %v3916
      %v3919 = vld [vmem:[%s59] sm:$0xff]
      %v3920 = vld [vmem:[%s59 + $0x8] sm:$0xff]
      %v3921 = vld [vmem:[%s59 + $0x10] sm:$0xff]
      %v3922 = vld [vmem:[%s59 + $0x18] sm:$0xff]
      %v3923 = vld [vmem:[%s61] sm:$0x1]
      %v3925 = vlaneseq
      %v3926 = vshrl.u32 %v3925, 7
      %v3927 = vsub.s32 0, %v3926
      %v3928 = vrot.slane %v3923, %v3927
      %v3931 = vsel %vm1292, %v3918, 0
      %3933 = vmatprep.subr.mxu0 0.0
      %3934 = vmatpush1.msra.mxu0 %v3919
      %3935 = vmatprep.subr.mxu0 0.0
      %3936 = vmatpush1.msra.mxu0 %v3920
      %3937 = vmatprep.subr.mxu0 0.0
      %3938 = vmatpush1.msra.mxu0 %v3921
      %3939 = vmatprep.subr.mxu0 0.0
      %3940 = vmatpush1.msra.mxu0 %v3922
      %3941 = vmatprep.subr.mxu0 0.0
      %3942 = vmatpush1.msra.mxu0 0.0
      %3943 = vmatprep.subr.mxu0 0.0
      %3944 = vmatpush1.msra.mxu0 0.0
      %3945 = vmatprep.subr.mxu0 0.0
      %3946 = vmatpush1.msra.mxu0 0.0
      %3947 = vmatprep.subr.mxu0 0.0
      %3948 = vmatpush1.msra.mxu0 0.0
      %3949 = vmatprep.subr.mxu0 0.0
      %3950 = vmatpush1.msra.mxu0 0.0
      %3951 = vmatprep.subr.mxu0 0.0
      %3952 = vmatpush1.msra.mxu0 0.0
      %3953 = vmatprep.subr.mxu0 0.0
      %3954 = vmatpush1.msra.mxu0 0.0
      %3955 = vmatprep.subr.mxu0 0.0
      %3956 = vmatpush1.msra.mxu0 0.0
      %3957 = vmatprep.subr.mxu0 0.0
      %3958 = vmatpush1.msra.mxu0 0.0
      %3959 = vmatprep.subr.mxu0 0.0
      %3960 = vmatpush1.msra.mxu0 0.0
      %3961 = vmatprep.subr.mxu0 0.0
      %3962 = vmatpush1.msra.mxu0 0.0
      %3963 = vmatprep.subr.mxu0 0.0
      %3964 = vmatpush1.msra.mxu0 0.0
      %3965 = vmatprep.subr.mxu0 0.0
      %3966 = vmatpush1.msra.mxu0 0.0
      %3967 = vmatprep.subr.mxu0 0.0
      %3968 = vmatpush1.msra.mxu0 0.0
      %3969 = vmatprep.subr.mxu0 0.0
      %3970 = vmatpush1.msra.mxu0 0.0
      %3971 = vmatprep.subr.mxu0 0.0
      %3972 = vmatpush1.msra.mxu0 0.0
      %3973 = vmatprep.subr.mxu0 0.0
      %3974 = vmatpush1.msra.mxu0 0.0
      %3975 = vmatprep.subr.mxu0 0.0
      %3976 = vmatpush1.msra.mxu0 0.0
      %3977 = vmatprep.subr.mxu0 0.0
      %3978 = vmatpush1.msra.mxu0 0.0
      %3979 = vmatprep.subr.mxu0 0.0
      %3980 = vmatpush1.msra.mxu0 0.0
      %3981 = vmatprep.subr.mxu0 0.0
      %3982 = vmatpush1.msra.mxu0 0.0
      %3983 = vmatprep.subr.mxu0 0.0
      %3984 = vmatpush1.msra.mxu0 0.0
      %3985 = vmatprep.subr.mxu0 0.0
      %3986 = vmatpush1.msra.mxu0 0.0
      %3987 = vmatprep.subr.mxu0 0.0
      %3988 = vmatpush1.msra.mxu0 0.0
      %3989 = vmatprep.subr.mxu0 0.0
      %3990 = vmatpush1.msra.mxu0 0.0
      %3991 = vmatprep.subr.mxu0 0.0
      %3992 = vmatpush1.msra.mxu0 0.0
      %3993 = vmatprep.subr.mxu0 0.0
      %3994 = vmatpush1.msra.mxu0 0.0
      %3995 = vmatprep.subr.mxu0 0.0
      %3996 = vmatpush1.msra.mxu0 0.0
      %3997 = vmatprep.mubr.f32.mxu0 0.0
      %3998 = vmatmul.mubr.f32.gmra.mrb[0].mxu0 %v3931
      %v3999 = vpop.f32.mrb[0].mxu0
      %v4000 = vadd.f32 %v3928, %v3999
      %v4001 = vpop.f32.mrb[0].mxu0
      %4002 = vdwg.mxu0
      %4003 = vst [vmem:[%s973] sm:$0xff] %v4000
      %p4004 = scmp.lt.s32.totalorder %s74, 1
      %s4005 = scalar_select %p4004, %s74, 1
      %s4006 = smul.addr %s4005, 8
      %s4007 = scalar_lea.vmem %s63, %s4006
      // Predicated region
      $region145: #{vit_forward.1} parent=143 // pred_check
        %p4008 = pneg %p753
      $region146: #{vit_forward.1} parent=143 // pred_check_branch
        %4010 = sbr.rel (%p4008) target = $region148
      $region147: #{vit_forward.1} parent=143 // pred_region
        _
      $region148: #{vit_forward.1} parent=143 // pred_fallthru
        _
    $region144: #{vit_forward.1} parent=5 // pred_fallthru
      _
    %p4011 = scmp.le.s32.totalorder 2, %s69
    // Predicated region
    $region149: #{vit_forward.1} parent=5 // pred_check
      %p4012 = pneg %p4011
    $region150: #{vit_forward.1} parent=5 // pred_check_branch
      %4014 = sbr.rel (%p4012) target = $region152
    $region151: #{vit_forward.1} parent=5 // pred_region
      %s4015 = ssub.s32 %s69, 2
      // Predicated region
      $region153: #{vit_forward.1} parent=151 // pred_check
        %p4016 = pneg %p759
      $region154: #{vit_forward.1} parent=151 // pred_check_branch
        %4018 = sbr.rel (%p4016) target = $region156
      $region155: #{vit_forward.1} parent=151 // pred_region
        %p4019 = scmp.lt.s32.totalorder %s75, 1
        %s4020 = scalar_select %p4019, %s75, 1
        %s4021 = smul.addr %s4020, 8
        %s4022 = scalar_lea.vmem %s63, %s4021
      $region156: #{vit_forward.1} parent=151 // pred_fallthru
        _
    $region152: #{vit_forward.1} parent=5 // pred_fallthru
      _
  $region6: #{vit_forward.1} parent=0 // loop_footer
    %s73 = sadd.s32 1, %s69
  $region7: #{vit_forward.1} parent=0 // loop_footer_branch
    %68 = sbr.rel target = $region3
  $region8: #{vit_forward.1} parent=0 // loop_exit
    _

</llo_original>
